<compile_context>
chip_gen: v6e
topology: v6e:2x2x1
jax: 0.10.0
libtpu: 0.0.40
codegen_flags: <defaults>
</compile_context>

<pallas_src>
import numpy as np
import jax
import jax.numpy as jnp
from jax import lax
from jax.experimental import pallas as pl
from jax.experimental.pallas import tpu as pltpu

BN_EPS = 1e-5


def _log2(v):
    l = int(np.log2(v))
    assert (1 << l) == v, f"{v} must be a power of two"
    return l


# ------------------------------- fused kernel --------------------------------
def _build_fused_kernel(h, w, c):
    """Fused layer13s forward for one (h, w) image per grid step.
    Activation layout inside the kernel: (c channels on sublanes, H*W on lanes)."""
    assert h % 4 == 0 and w % 4 == 0, "two 2x2 maxpools need h, w divisible by 4"
    _log2(h), _log2(w)
    assert h * w >= 128
    # per-stage spatial dims and lane-container sizes (containers >= 128 lanes)
    h1, w1, l1 = h, w, h * w
    h2, w2 = h1 // 2, w1 // 2
    l2 = max(128, h2 * w2)
    h3, w3 = h2 // 2, w2 // 2
    l3 = max(128, h3 * w3)

    def conv_stage(A, w_ref, b_ref, first_layer, H, W, L):
        # A: (c, L) f32; valid spatial positions are lanes [0, H*W).
        p = lax.broadcasted_iota(jnp.int32, (c, L), 1)
        x_pos = jnp.bitwise_and(p, W - 1)
        y_pos = jnp.right_shift(p, _log2(W))
        vx = {-1: x_pos >= 1, 0: None, 1: x_pos <= W - 2}
        vy = {-1: y_pos >= 1, 0: None, 1: y_pos <= H - 2}
        for layer in range(first_layer, first_layer + 3):
            pieces = []
            for dy in (-1, 0, 1):
                for dx in (-1, 0, 1):
                    off = dy * W + dx                      # flat-spatial tap offset
                    shift = (-off) % L
                    tap = pltpu.roll(A, shift, axis=1) if shift else A
                    masks = [m for m in (vy[dy], vx[dx]) if m is not None]
                    if masks:
                        m = masks[0] if len(masks) == 1 else jnp.logical_and(*masks)
                        tap = jnp.where(m, tap, 0.0)       # zero "SAME" padding taps
                    pieces.append(tap)
            patches = jnp.concatenate(pieces, axis=0)       # (9c, L) f32
            patches = patches.astype(jnp.bfloat16)          # bf16 MXU operands
            y = jnp.dot(w_ref[layer], patches,              # (c, 9c) @ (9c, L)
                        preferred_element_type=jnp.float32)  # f32 accumulation
            A = jnp.maximum(y + b_ref[layer], 0.0)          # folded-BN bias + ReLU (f32)
        return A

    def maxpool2x2(A, H, W, L_src, L_dst):
        # A: (c, L_src) f32 -> (c, L_dst) f32 with pooled image in lanes [0, H*W/4)
        Ho, Wo = H // 2, W // 2
        r1 = pltpu.roll(A, (L_src - 1) % L_src, axis=1)          # A[p + 1]
        r2 = pltpu.roll(A, (L_src - W) % L_src, axis=1)          # A[p + W]
        r3 = pltpu.roll(A, (L_src - W - 1) % L_src, axis=1)      # A[p + W + 1]
        vm = jnp.maximum(jnp.maximum(A, r1), jnp.maximum(r2, r3))
        # selection matrix: dest lane i = yo*Wo+xo pulls source lane 2*yo*W + 2*xo
        j = lax.broadcasted_iota(jnp.int32, (L_src, L_dst), 0)   # source lane
        i = lax.broadcasted_iota(jnp.int32, (L_src, L_dst), 1)   # dest lane
        yo = jnp.right_shift(i, _log2(Wo))
        xo = jnp.bitwise_and(i, Wo - 1)
        tgt = yo * (2 * W) + xo * 2
        tgt = jnp.where(i < Ho * Wo, tgt, -1)
        sel = jnp.where(j == tgt, 1.0, 0.0).astype(jnp.float32)
        return jnp.dot(vm, sel, preferred_element_type=jnp.float32)

    def kernel(x_ref, w_ref, b_ref, wfc_ref, bfc_ref, o_ref):
        A = x_ref[...]                                           # (c, h*w) f32
        A = conv_stage(A, w_ref, b_ref, 0, h1, w1, l1)
        A = maxpool2x2(A, h1, w1, l1, l2)
        A = conv_stage(A, w_ref, b_ref, 3, h2, w2, l2)
        A = maxpool2x2(A, h2, w2, l2, l3)
        A = conv_stage(A, w_ref, b_ref, 6, h3, w3, l3)
        # fused global spatial mean (only the h3*w3 valid lanes) + Linear
        lane = lax.broadcasted_iota(jnp.int32, (c, l3), 1)
        A = jnp.where(lane < h3 * w3, A, 0.0)
        feat = jnp.sum(A, axis=1, keepdims=True) * (1.0 / float(h3 * w3))   # (c, 1)
        logits = jnp.sum(wfc_ref[...] * feat, axis=0, keepdims=True) + bfc_ref[...]
        o_ref[...] = logits.astype(o_ref.dtype)

    return kernel


# ------------------------------ parameter packing -----------------------------
def _fold_and_pack_conv_params(conv_params, c):
    """Fold eval-mode BN into conv weight/bias, zero-pad channels to width `c`,
    pack as (9, c, 9c) bf16 weights and (9, c, 1) f32 biases."""
    ws, bs = [], []
    for p in conv_params:
        wv, bv = p['w'], p['b']
        cin, cout = wv.shape[2], wv.shape[3]
        scale = p['gamma'] / jnp.sqrt(p['var'] + BN_EPS)
        bias = p['beta'] + (bv - p['mean']) * scale
        wf = wv * scale                                          # BN scale folded into conv
        wf = jnp.pad(wf, ((0, 0), (0, 0), (0, c - cin), (0, c - cout)))
        bias = jnp.pad(bias, (0, c - cout))
        # (ky,kx,ci,co) -> (co,ky,kx,ci) -> (c, 9c); row index = (ky*3+kx)*c + ci
        wf = jnp.transpose(wf, (3, 0, 1, 2)).reshape(c, 9 * c)
        ws.append(wf)
        bs.append(bias.reshape(c, 1))
    return (jnp.stack(ws).astype(jnp.bfloat16),
            jnp.stack(bs).astype(jnp.float32))


# ----------------------------------- wrapper ----------------------------------
def layer13s_forward(x_nchw, conv_params, w_fc, b_fc):
    n, cin, h, w = x_nchw.shape
    t = w_fc.shape[-1]
    max_ch = max([cin] + [p['w'].shape[3] for p in conv_params] + [w_fc.shape[0]])
    c = max(16, -(-max_ch // 16) * 16)          # padded channel width (mult. of 16)

    # glue (tiny, one-time): NCHW -> (N, C_pad, H*W) with zero-padded channels
    x = x_nchw.reshape(n, cin, h * w).astype(jnp.float32)
    x = jnp.pad(x, ((0, 0), (0, c - cin), (0, 0)))

    w_all, b_all = _fold_and_pack_conv_params(conv_params, c)
    wfc = jnp.pad(w_fc.astype(jnp.float32), ((0, c - w_fc.shape[0]), (0, 0)))   # (c, t)
    bfc = b_fc.reshape(1, t).astype(jnp.float32)

    kernel = _build_fused_kernel(h, w, c)
    out = pl.pallas_call(
        kernel,
        out_shape=jax.ShapeDtypeStruct((n, 1, t), jnp.float32),
        grid=(n,),
        in_specs=[
            pl.BlockSpec((None, c, h * w), lambda i: (i, 0, 0)),   # one image / step
            pl.BlockSpec((9, c, 9 * c), lambda i: (0, 0, 0)),      # all conv weights
            pl.BlockSpec((9, c, 1), lambda i: (0, 0, 0)),          # all conv biases
            pl.BlockSpec((c, t), lambda i: (0, 0)),                # FC weight
            pl.BlockSpec((1, t), lambda i: (0, 0)),                # FC bias
        ],
        out_specs=pl.BlockSpec((None, 1, t), lambda i: (i, 0, 0)),
        compiler_params=pltpu.CompilerParams(dimension_semantics=("parallel",)),
    )(x, w_all, b_all, wfc, bfc)
    return out.reshape(n, t)


# ----------------------------------- params -----------------------------------
def init_params(key, num_targets=10, in_channels=3, k=8):
    chans = [(in_channels, k), (k, k), (k, 2 * k),
             (2 * k, 2 * k), (2 * k, 2 * k), (2 * k, 2 * k),
             (2 * k, 2 * k), (2 * k, 2 * k), (2 * k, 2 * k)]
    params = []
    for (cin, cout) in chans:
        key, k1, k2, k3, k4, k5, k6 = jax.random.split(key, 7)
        params.append(dict(
            w=jax.random.normal(k1, (3, 3, cin, cout), jnp.float32) * (2.0 / (9 * cin)) ** 0.5,
            b=jax.random.normal(k2, (cout,), jnp.float32) * 0.05,
            gamma=1.0 + 0.1 * jax.random.normal(k3, (cout,), jnp.float32),
            beta=0.1 * jax.random.normal(k4, (cout,), jnp.float32),
            mean=0.1 * jax.random.normal(k5, (cout,), jnp.float32),
            var=0.5 + jax.random.uniform(k6, (cout,), jnp.float32),
        ))
    key, kf1, kf2 = jax.random.split(key, 3)
    feat = 2 * k
    w_fc = jax.random.normal(kf1, (feat, num_targets), jnp.float32) * (1.0 / feat) ** 0.5
    b_fc = jax.random.normal(kf2, (num_targets,), jnp.float32) * 0.05
    return params, w_fc, b_fc


# ------------------------------ pure-JAX reference ----------------------------
def ref_forward(x_nchw, conv_params, w_fc, b_fc, matmul_dtype=jnp.float32):
    """Reference model. matmul_dtype=jnp.bfloat16 mirrors the kernel's MXU
    operand precision (f32 accumulation); jnp.float32 is the full-f32 model."""
    x = jnp.transpose(x_nchw, (0, 2, 3, 1))

    def block(x, p):
        scale = p['gamma'] / jnp.sqrt(p['var'] + BN_EPS)
        wf = (p['w'] * scale).astype(matmul_dtype)
        bias = p['beta'] + (p['b'] - p['mean']) * scale
        y = lax.conv_general_dilated(x.astype(matmul_dtype), wf, (1, 1), 'SAME',
                                     dimension_numbers=('NHWC', 'HWIO', 'NHWC'),
                                     preferred_element_type=jnp.float32)
        return jnp.maximum(y + bias, 0.0)

    def pool(x):
        return lax.reduce_window(x, -jnp.inf, lax.max,
                                 (1, 2, 2, 1), (1, 2, 2, 1), 'VALID')

    for i in range(3):
        x = block(x, conv_params[i])
    x = pool(x)
    for i in range(3, 6):
        x = block(x, conv_params[i])
    x = pool(x)
    for i in range(6, 9):
        x = block(x, conv_params[i])
    x = jnp.mean(x, axis=(1, 2))
    return x @ w_fc + b_fc


if __name__ == "__main__":
    key = jax.random.PRNGKey(0)
    kx, kp = jax.random.split(key)
    # Small shapes: batch=2, in_channels=3, spatial=16x16, k=8, num_targets=10
    x = jax.random.normal(kx, (2, 3, 16, 16), jnp.float32)   # NCHW, like PyTorch
    conv_params, w_fc, b_fc = init_params(kp, num_targets=10, in_channels=3, k=8)

    fwd = jax.jit(layer13s_forward)
    out = jax.block_until_ready(fwd(x, conv_params, w_fc, b_fc))
    assert out.shape == (2, 10)

    # Tight check vs. a reference using the kernel's precision recipe
    # (bf16 MXU operands, f32 accumulation / epilogue).
    ref_bf16 = jax.block_until_ready(
        ref_forward(x, conv_params, w_fc, b_fc, matmul_dtype=jnp.bfloat16))
    np.testing.assert_allclose(np.asarray(out), np.asarray(ref_bf16),
                               rtol=1e-2, atol=1e-2)

    # Sanity check vs. the full-f32 model (difference = bf16 operand rounding).
    ref_f32 = jax.block_until_ready(
        ref_forward(x, conv_params, w_fc, b_fc, matmul_dtype=jnp.float32))
    np.testing.assert_allclose(np.asarray(out), np.asarray(ref_f32),
                               rtol=5e-2, atol=5e-2)

    print("KERNEL_OK")
</pallas_src>

<mosaic_0001>
module attributes {stable_mosaic.version = 11 : i64} {
  func.func @kernel(%arg0: i32, %arg1: memref<1x16x256xf32, #tpu.memory_space<vmem>>, %arg2: memref<9x16x144xbf16, #tpu.memory_space<vmem>>, %arg3: memref<9x16x1xf32, #tpu.memory_space<vmem>>, %arg4: memref<16x10xf32, #tpu.memory_space<vmem>>, %arg5: memref<1x10xf32, #tpu.memory_space<vmem>>, %arg6: memref<1x1x10xf32, #tpu.memory_space<vmem>>) attributes {dimension_semantics = [#tpu.dimension_semantics<parallel>], iteration_bounds = array<i64: 2>, scalar_prefetch = 0 : i64, scratch_operands = 0 : i64, tpu.core_type = #tpu.core_type<tc>, window_params = [{transform_indices = @transform_0, window_bounds = array<i64: 1, 16, 256>}, {pipeline_mode = #tpu.pipeline_mode<synchronous>, transform_indices = @transform_1, window_bounds = array<i64: 9, 16, 144>}, {pipeline_mode = #tpu.pipeline_mode<synchronous>, transform_indices = @transform_2, window_bounds = array<i64: 9, 16, 1>}, {pipeline_mode = #tpu.pipeline_mode<synchronous>, transform_indices = @transform_3, window_bounds = array<i64: 16, 10>}, {pipeline_mode = #tpu.pipeline_mode<synchronous>, transform_indices = @transform_4, window_bounds = array<i64: 1, 10>}, {transform_indices = @transform_5, window_bounds = array<i64: 1, 1, 10>}]} {
    %c0 = arith.constant 0 : index
    %c0_0 = arith.constant 0 : index
    %c0_1 = arith.constant 0 : index
    %0 = vector.load %arg1[%c0, %c0_0, %c0_1] : memref<1x16x256xf32, #tpu.memory_space<vmem>>, vector<1x16x256xf32>
    %1 = vector.shape_cast %0 : vector<1x16x256xf32> to vector<16x256xf32>
    %2 = tpu.iota {dimensions = array<i32: 1>} : vector<16x256xi32>
    %c15_i32 = arith.constant 15 : i32
    %3 = vector.broadcast %c15_i32 : i32 to vector<16x256xi32>
    %4 = arith.andi %2, %3 : vector<16x256xi32>
    %c4_i32 = arith.constant 4 : i32
    %5 = vector.broadcast %c4_i32 : i32 to vector<16x256xi32>
    %6 = arith.shrsi %2, %5 : vector<16x256xi32>
    %c1_i32 = arith.constant 1 : i32
    %7 = vector.broadcast %c1_i32 : i32 to vector<16x256xi32>
    %8 = arith.cmpi sge, %4, %7 : vector<16x256xi32>
    %c14_i32 = arith.constant 14 : i32
    %9 = vector.broadcast %c14_i32 : i32 to vector<16x256xi32>
    %10 = arith.cmpi sle, %4, %9 : vector<16x256xi32>
    %c1_i32_2 = arith.constant 1 : i32
    %11 = vector.broadcast %c1_i32_2 : i32 to vector<16x256xi32>
    %12 = arith.cmpi sge, %6, %11 : vector<16x256xi32>
    %c14_i32_3 = arith.constant 14 : i32
    %13 = vector.broadcast %c14_i32_3 : i32 to vector<16x256xi32>
    %14 = arith.cmpi sle, %6, %13 : vector<16x256xi32>
    %c17_i32 = arith.constant 17 : i32
    %15 = tpu.dynamic_rotate %1 by %c17_i32 dim 1 : vector<16x256xf32>, i32 -> vector<16x256xf32>
    %16 = arith.andi %12, %8 : vector<16x256xi1>
    %cst = arith.constant 0.000000e+00 : f32
    %17 = vector.broadcast %cst : f32 to vector<16x256xf32>
    %18 = arith.select %16, %15, %17 : vector<16x256xi1>, vector<16x256xf32>
    %c16_i32 = arith.constant 16 : i32
    %19 = tpu.dynamic_rotate %1 by %c16_i32 dim 1 : vector<16x256xf32>, i32 -> vector<16x256xf32>
    %cst_4 = arith.constant 0.000000e+00 : f32
    %20 = vector.broadcast %cst_4 : f32 to vector<16x256xf32>
    %21 = arith.select %12, %19, %20 : vector<16x256xi1>, vector<16x256xf32>
    %c15_i32_5 = arith.constant 15 : i32
    %22 = tpu.dynamic_rotate %1 by %c15_i32_5 dim 1 : vector<16x256xf32>, i32 -> vector<16x256xf32>
    %23 = arith.andi %12, %10 : vector<16x256xi1>
    %cst_6 = arith.constant 0.000000e+00 : f32
    %24 = vector.broadcast %cst_6 : f32 to vector<16x256xf32>
    %25 = arith.select %23, %22, %24 : vector<16x256xi1>, vector<16x256xf32>
    %c1_i32_7 = arith.constant 1 : i32
    %26 = tpu.dynamic_rotate %1 by %c1_i32_7 dim 1 : vector<16x256xf32>, i32 -> vector<16x256xf32>
    %cst_8 = arith.constant 0.000000e+00 : f32
    %27 = vector.broadcast %cst_8 : f32 to vector<16x256xf32>
    %28 = arith.select %8, %26, %27 : vector<16x256xi1>, vector<16x256xf32>
    %c255_i32 = arith.constant 255 : i32
    %29 = tpu.dynamic_rotate %1 by %c255_i32 dim 1 : vector<16x256xf32>, i32 -> vector<16x256xf32>
    %cst_9 = arith.constant 0.000000e+00 : f32
    %30 = vector.broadcast %cst_9 : f32 to vector<16x256xf32>
    %31 = arith.select %10, %29, %30 : vector<16x256xi1>, vector<16x256xf32>
    %c241_i32 = arith.constant 241 : i32
    %32 = tpu.dynamic_rotate %1 by %c241_i32 dim 1 : vector<16x256xf32>, i32 -> vector<16x256xf32>
    %33 = arith.andi %14, %8 : vector<16x256xi1>
    %cst_10 = arith.constant 0.000000e+00 : f32
    %34 = vector.broadcast %cst_10 : f32 to vector<16x256xf32>
    %35 = arith.select %33, %32, %34 : vector<16x256xi1>, vector<16x256xf32>
    %c240_i32 = arith.constant 240 : i32
    %36 = tpu.dynamic_rotate %1 by %c240_i32 dim 1 : vector<16x256xf32>, i32 -> vector<16x256xf32>
    %cst_11 = arith.constant 0.000000e+00 : f32
    %37 = vector.broadcast %cst_11 : f32 to vector<16x256xf32>
    %38 = arith.select %14, %36, %37 : vector<16x256xi1>, vector<16x256xf32>
    %c239_i32 = arith.constant 239 : i32
    %39 = tpu.dynamic_rotate %1 by %c239_i32 dim 1 : vector<16x256xf32>, i32 -> vector<16x256xf32>
    %40 = arith.andi %14, %10 : vector<16x256xi1>
    %cst_12 = arith.constant 0.000000e+00 : f32
    %41 = vector.broadcast %cst_12 : f32 to vector<16x256xf32>
    %42 = arith.select %40, %39, %41 : vector<16x256xi1>, vector<16x256xf32>
    %43 = tpu.concatenate %18, %21, %25, %28, %1, %31, %35, %38, %42 in 0 : vector<16x256xf32>, vector<16x256xf32>, vector<16x256xf32>, vector<16x256xf32>, vector<16x256xf32>, vector<16x256xf32>, vector<16x256xf32>, vector<16x256xf32>, vector<16x256xf32> -> vector<144x256xf32>
    %44 = arith.truncf %43 : vector<144x256xf32> to vector<144x256xbf16>
    %c0_13 = arith.constant 0 : index
    %c0_14 = arith.constant 0 : index
    %c0_15 = arith.constant 0 : index
    %45 = vector.load %arg2[%c0_13, %c0_14, %c0_15] : memref<9x16x144xbf16, #tpu.memory_space<vmem>>, vector<1x16x144xbf16>
    %46 = vector.shape_cast %45 : vector<1x16x144xbf16> to vector<16x144xbf16>
    %cst_16 = arith.constant dense<0.000000e+00> : vector<16x256xf32>
    %47 = tpu.matmul %46, %44, %cst_16 {dimension_numbers = #tpu.dot_dimension_numbers<[1], [0], [0], [1], [0, 0, 1, 1], [], []>} : vector<16x144xbf16>, vector<144x256xbf16>, vector<16x256xf32> -> vector<16x256xf32>
    %c0_17 = arith.constant 0 : index
    %c0_18 = arith.constant 0 : index
    %c0_19 = arith.constant 0 : index
    %48 = vector.load %arg3[%c0_17, %c0_18, %c0_19] : memref<9x16x1xf32, #tpu.memory_space<vmem>>, vector<1x16x1xf32>
    %49 = vector.shape_cast %48 : vector<1x16x1xf32> to vector<16x1xf32>
    %50 = vector.broadcast %49 : vector<16x1xf32> to vector<16x256xf32>
    %51 = arith.addf %47, %50 : vector<16x256xf32>
    %cst_20 = arith.constant 0.000000e+00 : f32
    %52 = vector.broadcast %cst_20 : f32 to vector<16x256xf32>
    %53 = arith.maximumf %51, %52 : vector<16x256xf32>
    %c17_i32_21 = arith.constant 17 : i32
    %54 = tpu.dynamic_rotate %53 by %c17_i32_21 dim 1 : vector<16x256xf32>, i32 -> vector<16x256xf32>
    %55 = arith.andi %12, %8 : vector<16x256xi1>
    %cst_22 = arith.constant 0.000000e+00 : f32
    %56 = vector.broadcast %cst_22 : f32 to vector<16x256xf32>
    %57 = arith.select %55, %54, %56 : vector<16x256xi1>, vector<16x256xf32>
    %c16_i32_23 = arith.constant 16 : i32
    %58 = tpu.dynamic_rotate %53 by %c16_i32_23 dim 1 : vector<16x256xf32>, i32 -> vector<16x256xf32>
    %cst_24 = arith.constant 0.000000e+00 : f32
    %59 = vector.broadcast %cst_24 : f32 to vector<16x256xf32>
    %60 = arith.select %12, %58, %59 : vector<16x256xi1>, vector<16x256xf32>
    %c15_i32_25 = arith.constant 15 : i32
    %61 = tpu.dynamic_rotate %53 by %c15_i32_25 dim 1 : vector<16x256xf32>, i32 -> vector<16x256xf32>
    %62 = arith.andi %12, %10 : vector<16x256xi1>
    %cst_26 = arith.constant 0.000000e+00 : f32
    %63 = vector.broadcast %cst_26 : f32 to vector<16x256xf32>
    %64 = arith.select %62, %61, %63 : vector<16x256xi1>, vector<16x256xf32>
    %c1_i32_27 = arith.constant 1 : i32
    %65 = tpu.dynamic_rotate %53 by %c1_i32_27 dim 1 : vector<16x256xf32>, i32 -> vector<16x256xf32>
    %cst_28 = arith.constant 0.000000e+00 : f32
    %66 = vector.broadcast %cst_28 : f32 to vector<16x256xf32>
    %67 = arith.select %8, %65, %66 : vector<16x256xi1>, vector<16x256xf32>
    %c255_i32_29 = arith.constant 255 : i32
    %68 = tpu.dynamic_rotate %53 by %c255_i32_29 dim 1 : vector<16x256xf32>, i32 -> vector<16x256xf32>
    %cst_30 = arith.constant 0.000000e+00 : f32
    %69 = vector.broadcast %cst_30 : f32 to vector<16x256xf32>
    %70 = arith.select %10, %68, %69 : vector<16x256xi1>, vector<16x256xf32>
    %c241_i32_31 = arith.constant 241 : i32
    %71 = tpu.dynamic_rotate %53 by %c241_i32_31 dim 1 : vector<16x256xf32>, i32 -> vector<16x256xf32>
    %72 = arith.andi %14, %8 : vector<16x256xi1>
    %cst_32 = arith.constant 0.000000e+00 : f32
    %73 = vector.broadcast %cst_32 : f32 to vector<16x256xf32>
    %74 = arith.select %72, %71, %73 : vector<16x256xi1>, vector<16x256xf32>
    %c240_i32_33 = arith.constant 240 : i32
    %75 = tpu.dynamic_rotate %53 by %c240_i32_33 dim 1 : vector<16x256xf32>, i32 -> vector<16x256xf32>
    %cst_34 = arith.constant 0.000000e+00 : f32
    %76 = vector.broadcast %cst_34 : f32 to vector<16x256xf32>
    %77 = arith.select %14, %75, %76 : vector<16x256xi1>, vector<16x256xf32>
    %c239_i32_35 = arith.constant 239 : i32
    %78 = tpu.dynamic_rotate %53 by %c239_i32_35 dim 1 : vector<16x256xf32>, i32 -> vector<16x256xf32>
    %79 = arith.andi %14, %10 : vector<16x256xi1>
    %cst_36 = arith.constant 0.000000e+00 : f32
    %80 = vector.broadcast %cst_36 : f32 to vector<16x256xf32>
    %81 = arith.select %79, %78, %80 : vector<16x256xi1>, vector<16x256xf32>
    %82 = tpu.concatenate %57, %60, %64, %67, %53, %70, %74, %77, %81 in 0 : vector<16x256xf32>, vector<16x256xf32>, vector<16x256xf32>, vector<16x256xf32>, vector<16x256xf32>, vector<16x256xf32>, vector<16x256xf32>, vector<16x256xf32>, vector<16x256xf32> -> vector<144x256xf32>
    %83 = arith.truncf %82 : vector<144x256xf32> to vector<144x256xbf16>
    %c1 = arith.constant 1 : index
    %c0_37 = arith.constant 0 : index
    %c0_38 = arith.constant 0 : index
    %84 = vector.load %arg2[%c1, %c0_37, %c0_38] : memref<9x16x144xbf16, #tpu.memory_space<vmem>>, vector<1x16x144xbf16>
    %85 = vector.shape_cast %84 : vector<1x16x144xbf16> to vector<16x144xbf16>
    %cst_39 = arith.constant dense<0.000000e+00> : vector<16x256xf32>
    %86 = tpu.matmul %85, %83, %cst_39 {dimension_numbers = #tpu.dot_dimension_numbers<[1], [0], [0], [1], [0, 0, 1, 1], [], []>} : vector<16x144xbf16>, vector<144x256xbf16>, vector<16x256xf32> -> vector<16x256xf32>
    %c1_40 = arith.constant 1 : index
    %c0_41 = arith.constant 0 : index
    %c0_42 = arith.constant 0 : index
    %87 = vector.load %arg3[%c1_40, %c0_41, %c0_42] : memref<9x16x1xf32, #tpu.memory_space<vmem>>, vector<1x16x1xf32>
    %88 = vector.shape_cast %87 : vector<1x16x1xf32> to vector<16x1xf32>
    %89 = vector.broadcast %88 : vector<16x1xf32> to vector<16x256xf32>
    %90 = arith.addf %86, %89 : vector<16x256xf32>
    %cst_43 = arith.constant 0.000000e+00 : f32
    %91 = vector.broadcast %cst_43 : f32 to vector<16x256xf32>
    %92 = arith.maximumf %90, %91 : vector<16x256xf32>
    %c17_i32_44 = arith.constant 17 : i32
    %93 = tpu.dynamic_rotate %92 by %c17_i32_44 dim 1 : vector<16x256xf32>, i32 -> vector<16x256xf32>
    %94 = arith.andi %12, %8 : vector<16x256xi1>
    %cst_45 = arith.constant 0.000000e+00 : f32
    %95 = vector.broadcast %cst_45 : f32 to vector<16x256xf32>
    %96 = arith.select %94, %93, %95 : vector<16x256xi1>, vector<16x256xf32>
    %c16_i32_46 = arith.constant 16 : i32
    %97 = tpu.dynamic_rotate %92 by %c16_i32_46 dim 1 : vector<16x256xf32>, i32 -> vector<16x256xf32>
    %cst_47 = arith.constant 0.000000e+00 : f32
    %98 = vector.broadcast %cst_47 : f32 to vector<16x256xf32>
    %99 = arith.select %12, %97, %98 : vector<16x256xi1>, vector<16x256xf32>
    %c15_i32_48 = arith.constant 15 : i32
    %100 = tpu.dynamic_rotate %92 by %c15_i32_48 dim 1 : vector<16x256xf32>, i32 -> vector<16x256xf32>
    %101 = arith.andi %12, %10 : vector<16x256xi1>
    %cst_49 = arith.constant 0.000000e+00 : f32
    %102 = vector.broadcast %cst_49 : f32 to vector<16x256xf32>
    %103 = arith.select %101, %100, %102 : vector<16x256xi1>, vector<16x256xf32>
    %c1_i32_50 = arith.constant 1 : i32
    %104 = tpu.dynamic_rotate %92 by %c1_i32_50 dim 1 : vector<16x256xf32>, i32 -> vector<16x256xf32>
    %cst_51 = arith.constant 0.000000e+00 : f32
    %105 = vector.broadcast %cst_51 : f32 to vector<16x256xf32>
    %106 = arith.select %8, %104, %105 : vector<16x256xi1>, vector<16x256xf32>
    %c255_i32_52 = arith.constant 255 : i32
    %107 = tpu.dynamic_rotate %92 by %c255_i32_52 dim 1 : vector<16x256xf32>, i32 -> vector<16x256xf32>
    %cst_53 = arith.constant 0.000000e+00 : f32
    %108 = vector.broadcast %cst_53 : f32 to vector<16x256xf32>
    %109 = arith.select %10, %107, %108 : vector<16x256xi1>, vector<16x256xf32>
    %c241_i32_54 = arith.constant 241 : i32
    %110 = tpu.dynamic_rotate %92 by %c241_i32_54 dim 1 : vector<16x256xf32>, i32 -> vector<16x256xf32>
    %111 = arith.andi %14, %8 : vector<16x256xi1>
    %cst_55 = arith.constant 0.000000e+00 : f32
    %112 = vector.broadcast %cst_55 : f32 to vector<16x256xf32>
    %113 = arith.select %111, %110, %112 : vector<16x256xi1>, vector<16x256xf32>
    %c240_i32_56 = arith.constant 240 : i32
    %114 = tpu.dynamic_rotate %92 by %c240_i32_56 dim 1 : vector<16x256xf32>, i32 -> vector<16x256xf32>
    %cst_57 = arith.constant 0.000000e+00 : f32
    %115 = vector.broadcast %cst_57 : f32 to vector<16x256xf32>
    %116 = arith.select %14, %114, %115 : vector<16x256xi1>, vector<16x256xf32>
    %c239_i32_58 = arith.constant 239 : i32
    %117 = tpu.dynamic_rotate %92 by %c239_i32_58 dim 1 : vector<16x256xf32>, i32 -> vector<16x256xf32>
    %118 = arith.andi %14, %10 : vector<16x256xi1>
    %cst_59 = arith.constant 0.000000e+00 : f32
    %119 = vector.broadcast %cst_59 : f32 to vector<16x256xf32>
    %120 = arith.select %118, %117, %119 : vector<16x256xi1>, vector<16x256xf32>
    %121 = tpu.concatenate %96, %99, %103, %106, %92, %109, %113, %116, %120 in 0 : vector<16x256xf32>, vector<16x256xf32>, vector<16x256xf32>, vector<16x256xf32>, vector<16x256xf32>, vector<16x256xf32>, vector<16x256xf32>, vector<16x256xf32>, vector<16x256xf32> -> vector<144x256xf32>
    %122 = arith.truncf %121 : vector<144x256xf32> to vector<144x256xbf16>
    %c2 = arith.constant 2 : index
    %c0_60 = arith.constant 0 : index
    %c0_61 = arith.constant 0 : index
    %123 = vector.load %arg2[%c2, %c0_60, %c0_61] : memref<9x16x144xbf16, #tpu.memory_space<vmem>>, vector<1x16x144xbf16>
    %124 = vector.shape_cast %123 : vector<1x16x144xbf16> to vector<16x144xbf16>
    %cst_62 = arith.constant dense<0.000000e+00> : vector<16x256xf32>
    %125 = tpu.matmul %124, %122, %cst_62 {dimension_numbers = #tpu.dot_dimension_numbers<[1], [0], [0], [1], [0, 0, 1, 1], [], []>} : vector<16x144xbf16>, vector<144x256xbf16>, vector<16x256xf32> -> vector<16x256xf32>
    %c2_63 = arith.constant 2 : index
    %c0_64 = arith.constant 0 : index
    %c0_65 = arith.constant 0 : index
    %126 = vector.load %arg3[%c2_63, %c0_64, %c0_65] : memref<9x16x1xf32, #tpu.memory_space<vmem>>, vector<1x16x1xf32>
    %127 = vector.shape_cast %126 : vector<1x16x1xf32> to vector<16x1xf32>
    %128 = vector.broadcast %127 : vector<16x1xf32> to vector<16x256xf32>
    %129 = arith.addf %125, %128 : vector<16x256xf32>
    %cst_66 = arith.constant 0.000000e+00 : f32
    %130 = vector.broadcast %cst_66 : f32 to vector<16x256xf32>
    %131 = arith.maximumf %129, %130 : vector<16x256xf32>
    %c255_i32_67 = arith.constant 255 : i32
    %132 = tpu.dynamic_rotate %131 by %c255_i32_67 dim 1 : vector<16x256xf32>, i32 -> vector<16x256xf32>
    %c240_i32_68 = arith.constant 240 : i32
    %133 = tpu.dynamic_rotate %131 by %c240_i32_68 dim 1 : vector<16x256xf32>, i32 -> vector<16x256xf32>
    %c239_i32_69 = arith.constant 239 : i32
    %134 = tpu.dynamic_rotate %131 by %c239_i32_69 dim 1 : vector<16x256xf32>, i32 -> vector<16x256xf32>
    %135 = arith.maximumf %131, %132 : vector<16x256xf32>
    %136 = arith.maximumf %133, %134 : vector<16x256xf32>
    %137 = arith.maximumf %135, %136 : vector<16x256xf32>
    %138 = tpu.iota {dimensions = array<i32: 0>} : vector<256x128xi32>
    %139 = tpu.iota {dimensions = array<i32: 1>} : vector<256x128xi32>
    %c3_i32 = arith.constant 3 : i32
    %140 = vector.broadcast %c3_i32 : i32 to vector<256x128xi32>
    %141 = arith.shrsi %139, %140 : vector<256x128xi32>
    %c7_i32 = arith.constant 7 : i32
    %142 = vector.broadcast %c7_i32 : i32 to vector<256x128xi32>
    %143 = arith.andi %139, %142 : vector<256x128xi32>
    %c32_i32 = arith.constant 32 : i32
    %144 = vector.broadcast %c32_i32 : i32 to vector<256x128xi32>
    %145 = arith.muli %141, %144 : vector<256x128xi32>
    %c2_i32 = arith.constant 2 : i32
    %146 = vector.broadcast %c2_i32 : i32 to vector<256x128xi32>
    %147 = arith.muli %143, %146 : vector<256x128xi32>
    %148 = arith.addi %145, %147 : vector<256x128xi32>
    %c64_i32 = arith.constant 64 : i32
    %149 = vector.broadcast %c64_i32 : i32 to vector<256x128xi32>
    %150 = arith.cmpi slt, %139, %149 : vector<256x128xi32>
    %c-1_i32 = arith.constant -1 : i32
    %151 = vector.broadcast %c-1_i32 : i32 to vector<256x128xi32>
    %152 = arith.select %150, %148, %151 : vector<256x128xi1>, vector<256x128xi32>
    %153 = arith.cmpi eq, %138, %152 : vector<256x128xi32>
    %cst_70 = arith.constant 1.000000e+00 : f32
    %cst_71 = arith.constant 0.000000e+00 : f32
    %154 = vector.broadcast %cst_70 : f32 to vector<256x128xf32>
    %155 = vector.broadcast %cst_71 : f32 to vector<256x128xf32>
    %156 = arith.select %153, %154, %155 : vector<256x128xi1>, vector<256x128xf32>
    %cst_72 = arith.constant dense<0.000000e+00> : vector<16x128xf32>
    %157 = tpu.matmul %137, %156, %cst_72 {dimension_numbers = #tpu.dot_dimension_numbers<[1], [0], [0], [1], [0, 0, 1, 1], [], []>} : vector<16x256xf32>, vector<256x128xf32>, vector<16x128xf32> -> vector<16x128xf32>
    %158 = tpu.iota {dimensions = array<i32: 1>} : vector<16x128xi32>
    %c7_i32_73 = arith.constant 7 : i32
    %159 = vector.broadcast %c7_i32_73 : i32 to vector<16x128xi32>
    %160 = arith.andi %158, %159 : vector<16x128xi32>
    %c3_i32_74 = arith.constant 3 : i32
    %161 = vector.broadcast %c3_i32_74 : i32 to vector<16x128xi32>
    %162 = arith.shrsi %158, %161 : vector<16x128xi32>
    %c1_i32_75 = arith.constant 1 : i32
    %163 = vector.broadcast %c1_i32_75 : i32 to vector<16x128xi32>
    %164 = arith.cmpi sge, %160, %163 : vector<16x128xi32>
    %c6_i32 = arith.constant 6 : i32
    %165 = vector.broadcast %c6_i32 : i32 to vector<16x128xi32>
    %166 = arith.cmpi sle, %160, %165 : vector<16x128xi32>
    %c1_i32_76 = arith.constant 1 : i32
    %167 = vector.broadcast %c1_i32_76 : i32 to vector<16x128xi32>
    %168 = arith.cmpi sge, %162, %167 : vector<16x128xi32>
    %c6_i32_77 = arith.constant 6 : i32
    %169 = vector.broadcast %c6_i32_77 : i32 to vector<16x128xi32>
    %170 = arith.cmpi sle, %162, %169 : vector<16x128xi32>
    %c9_i32 = arith.constant 9 : i32
    %171 = tpu.dynamic_rotate %157 by %c9_i32 dim 1 : vector<16x128xf32>, i32 -> vector<16x128xf32>
    %172 = arith.andi %168, %164 : vector<16x128xi1>
    %cst_78 = arith.constant 0.000000e+00 : f32
    %173 = vector.broadcast %cst_78 : f32 to vector<16x128xf32>
    %174 = arith.select %172, %171, %173 : vector<16x128xi1>, vector<16x128xf32>
    %c8_i32 = arith.constant 8 : i32
    %175 = tpu.dynamic_rotate %157 by %c8_i32 dim 1 : vector<16x128xf32>, i32 -> vector<16x128xf32>
    %cst_79 = arith.constant 0.000000e+00 : f32
    %176 = vector.broadcast %cst_79 : f32 to vector<16x128xf32>
    %177 = arith.select %168, %175, %176 : vector<16x128xi1>, vector<16x128xf32>
    %c7_i32_80 = arith.constant 7 : i32
    %178 = tpu.dynamic_rotate %157 by %c7_i32_80 dim 1 : vector<16x128xf32>, i32 -> vector<16x128xf32>
    %179 = arith.andi %168, %166 : vector<16x128xi1>
    %cst_81 = arith.constant 0.000000e+00 : f32
    %180 = vector.broadcast %cst_81 : f32 to vector<16x128xf32>
    %181 = arith.select %179, %178, %180 : vector<16x128xi1>, vector<16x128xf32>
    %c1_i32_82 = arith.constant 1 : i32
    %182 = tpu.dynamic_rotate %157 by %c1_i32_82 dim 1 : vector<16x128xf32>, i32 -> vector<16x128xf32>
    %cst_83 = arith.constant 0.000000e+00 : f32
    %183 = vector.broadcast %cst_83 : f32 to vector<16x128xf32>
    %184 = arith.select %164, %182, %183 : vector<16x128xi1>, vector<16x128xf32>
    %c127_i32 = arith.constant 127 : i32
    %185 = tpu.dynamic_rotate %157 by %c127_i32 dim 1 : vector<16x128xf32>, i32 -> vector<16x128xf32>
    %cst_84 = arith.constant 0.000000e+00 : f32
    %186 = vector.broadcast %cst_84 : f32 to vector<16x128xf32>
    %187 = arith.select %166, %185, %186 : vector<16x128xi1>, vector<16x128xf32>
    %c121_i32 = arith.constant 121 : i32
    %188 = tpu.dynamic_rotate %157 by %c121_i32 dim 1 : vector<16x128xf32>, i32 -> vector<16x128xf32>
    %189 = arith.andi %170, %164 : vector<16x128xi1>
    %cst_85 = arith.constant 0.000000e+00 : f32
    %190 = vector.broadcast %cst_85 : f32 to vector<16x128xf32>
    %191 = arith.select %189, %188, %190 : vector<16x128xi1>, vector<16x128xf32>
    %c120_i32 = arith.constant 120 : i32
    %192 = tpu.dynamic_rotate %157 by %c120_i32 dim 1 : vector<16x128xf32>, i32 -> vector<16x128xf32>
    %cst_86 = arith.constant 0.000000e+00 : f32
    %193 = vector.broadcast %cst_86 : f32 to vector<16x128xf32>
    %194 = arith.select %170, %192, %193 : vector<16x128xi1>, vector<16x128xf32>
    %c119_i32 = arith.constant 119 : i32
    %195 = tpu.dynamic_rotate %157 by %c119_i32 dim 1 : vector<16x128xf32>, i32 -> vector<16x128xf32>
    %196 = arith.andi %170, %166 : vector<16x128xi1>
    %cst_87 = arith.constant 0.000000e+00 : f32
    %197 = vector.broadcast %cst_87 : f32 to vector<16x128xf32>
    %198 = arith.select %196, %195, %197 : vector<16x128xi1>, vector<16x128xf32>
    %199 = tpu.concatenate %174, %177, %181, %184, %157, %187, %191, %194, %198 in 0 : vector<16x128xf32>, vector<16x128xf32>, vector<16x128xf32>, vector<16x128xf32>, vector<16x128xf32>, vector<16x128xf32>, vector<16x128xf32>, vector<16x128xf32>, vector<16x128xf32> -> vector<144x128xf32>
    %200 = arith.truncf %199 : vector<144x128xf32> to vector<144x128xbf16>
    %c3 = arith.constant 3 : index
    %c0_88 = arith.constant 0 : index
    %c0_89 = arith.constant 0 : index
    %201 = vector.load %arg2[%c3, %c0_88, %c0_89] : memref<9x16x144xbf16, #tpu.memory_space<vmem>>, vector<1x16x144xbf16>
    %202 = vector.shape_cast %201 : vector<1x16x144xbf16> to vector<16x144xbf16>
    %cst_90 = arith.constant dense<0.000000e+00> : vector<16x128xf32>
    %203 = tpu.matmul %202, %200, %cst_90 {dimension_numbers = #tpu.dot_dimension_numbers<[1], [0], [0], [1], [0, 0, 1, 1], [], []>} : vector<16x144xbf16>, vector<144x128xbf16>, vector<16x128xf32> -> vector<16x128xf32>
    %c3_91 = arith.constant 3 : index
    %c0_92 = arith.constant 0 : index
    %c0_93 = arith.constant 0 : index
    %204 = vector.load %arg3[%c3_91, %c0_92, %c0_93] : memref<9x16x1xf32, #tpu.memory_space<vmem>>, vector<1x16x1xf32>
    %205 = vector.shape_cast %204 : vector<1x16x1xf32> to vector<16x1xf32>
    %206 = vector.broadcast %205 : vector<16x1xf32> to vector<16x128xf32>
    %207 = arith.addf %203, %206 : vector<16x128xf32>
    %cst_94 = arith.constant 0.000000e+00 : f32
    %208 = vector.broadcast %cst_94 : f32 to vector<16x128xf32>
    %209 = arith.maximumf %207, %208 : vector<16x128xf32>
    %c9_i32_95 = arith.constant 9 : i32
    %210 = tpu.dynamic_rotate %209 by %c9_i32_95 dim 1 : vector<16x128xf32>, i32 -> vector<16x128xf32>
    %211 = arith.andi %168, %164 : vector<16x128xi1>
    %cst_96 = arith.constant 0.000000e+00 : f32
    %212 = vector.broadcast %cst_96 : f32 to vector<16x128xf32>
    %213 = arith.select %211, %210, %212 : vector<16x128xi1>, vector<16x128xf32>
    %c8_i32_97 = arith.constant 8 : i32
    %214 = tpu.dynamic_rotate %209 by %c8_i32_97 dim 1 : vector<16x128xf32>, i32 -> vector<16x128xf32>
    %cst_98 = arith.constant 0.000000e+00 : f32
    %215 = vector.broadcast %cst_98 : f32 to vector<16x128xf32>
    %216 = arith.select %168, %214, %215 : vector<16x128xi1>, vector<16x128xf32>
    %c7_i32_99 = arith.constant 7 : i32
    %217 = tpu.dynamic_rotate %209 by %c7_i32_99 dim 1 : vector<16x128xf32>, i32 -> vector<16x128xf32>
    %218 = arith.andi %168, %166 : vector<16x128xi1>
    %cst_100 = arith.constant 0.000000e+00 : f32
    %219 = vector.broadcast %cst_100 : f32 to vector<16x128xf32>
    %220 = arith.select %218, %217, %219 : vector<16x128xi1>, vector<16x128xf32>
    %c1_i32_101 = arith.constant 1 : i32
    %221 = tpu.dynamic_rotate %209 by %c1_i32_101 dim 1 : vector<16x128xf32>, i32 -> vector<16x128xf32>
    %cst_102 = arith.constant 0.000000e+00 : f32
    %222 = vector.broadcast %cst_102 : f32 to vector<16x128xf32>
    %223 = arith.select %164, %221, %222 : vector<16x128xi1>, vector<16x128xf32>
    %c127_i32_103 = arith.constant 127 : i32
    %224 = tpu.dynamic_rotate %209 by %c127_i32_103 dim 1 : vector<16x128xf32>, i32 -> vector<16x128xf32>
    %cst_104 = arith.constant 0.000000e+00 : f32
    %225 = vector.broadcast %cst_104 : f32 to vector<16x128xf32>
    %226 = arith.select %166, %224, %225 : vector<16x128xi1>, vector<16x128xf32>
    %c121_i32_105 = arith.constant 121 : i32
    %227 = tpu.dynamic_rotate %209 by %c121_i32_105 dim 1 : vector<16x128xf32>, i32 -> vector<16x128xf32>
    %228 = arith.andi %170, %164 : vector<16x128xi1>
    %cst_106 = arith.constant 0.000000e+00 : f32
    %229 = vector.broadcast %cst_106 : f32 to vector<16x128xf32>
    %230 = arith.select %228, %227, %229 : vector<16x128xi1>, vector<16x128xf32>
    %c120_i32_107 = arith.constant 120 : i32
    %231 = tpu.dynamic_rotate %209 by %c120_i32_107 dim 1 : vector<16x128xf32>, i32 -> vector<16x128xf32>
    %cst_108 = arith.constant 0.000000e+00 : f32
    %232 = vector.broadcast %cst_108 : f32 to vector<16x128xf32>
    %233 = arith.select %170, %231, %232 : vector<16x128xi1>, vector<16x128xf32>
    %c119_i32_109 = arith.constant 119 : i32
    %234 = tpu.dynamic_rotate %209 by %c119_i32_109 dim 1 : vector<16x128xf32>, i32 -> vector<16x128xf32>
    %235 = arith.andi %170, %166 : vector<16x128xi1>
    %cst_110 = arith.constant 0.000000e+00 : f32
    %236 = vector.broadcast %cst_110 : f32 to vector<16x128xf32>
    %237 = arith.select %235, %234, %236 : vector<16x128xi1>, vector<16x128xf32>
    %238 = tpu.concatenate %213, %216, %220, %223, %209, %226, %230, %233, %237 in 0 : vector<16x128xf32>, vector<16x128xf32>, vector<16x128xf32>, vector<16x128xf32>, vector<16x128xf32>, vector<16x128xf32>, vector<16x128xf32>, vector<16x128xf32>, vector<16x128xf32> -> vector<144x128xf32>
    %239 = arith.truncf %238 : vector<144x128xf32> to vector<144x128xbf16>
    %c4 = arith.constant 4 : index
    %c0_111 = arith.constant 0 : index
    %c0_112 = arith.constant 0 : index
    %240 = vector.load %arg2[%c4, %c0_111, %c0_112] : memref<9x16x144xbf16, #tpu.memory_space<vmem>>, vector<1x16x144xbf16>
    %241 = vector.shape_cast %240 : vector<1x16x144xbf16> to vector<16x144xbf16>
    %cst_113 = arith.constant dense<0.000000e+00> : vector<16x128xf32>
    %242 = tpu.matmul %241, %239, %cst_113 {dimension_numbers = #tpu.dot_dimension_numbers<[1], [0], [0], [1], [0, 0, 1, 1], [], []>} : vector<16x144xbf16>, vector<144x128xbf16>, vector<16x128xf32> -> vector<16x128xf32>
    %c4_114 = arith.constant 4 : index
    %c0_115 = arith.constant 0 : index
    %c0_116 = arith.constant 0 : index
    %243 = vector.load %arg3[%c4_114, %c0_115, %c0_116] : memref<9x16x1xf32, #tpu.memory_space<vmem>>, vector<1x16x1xf32>
    %244 = vector.shape_cast %243 : vector<1x16x1xf32> to vector<16x1xf32>
    %245 = vector.broadcast %244 : vector<16x1xf32> to vector<16x128xf32>
    %246 = arith.addf %242, %245 : vector<16x128xf32>
    %cst_117 = arith.constant 0.000000e+00 : f32
    %247 = vector.broadcast %cst_117 : f32 to vector<16x128xf32>
    %248 = arith.maximumf %246, %247 : vector<16x128xf32>
    %c9_i32_118 = arith.constant 9 : i32
    %249 = tpu.dynamic_rotate %248 by %c9_i32_118 dim 1 : vector<16x128xf32>, i32 -> vector<16x128xf32>
    %250 = arith.andi %168, %164 : vector<16x128xi1>
    %cst_119 = arith.constant 0.000000e+00 : f32
    %251 = vector.broadcast %cst_119 : f32 to vector<16x128xf32>
    %252 = arith.select %250, %249, %251 : vector<16x128xi1>, vector<16x128xf32>
    %c8_i32_120 = arith.constant 8 : i32
    %253 = tpu.dynamic_rotate %248 by %c8_i32_120 dim 1 : vector<16x128xf32>, i32 -> vector<16x128xf32>
    %cst_121 = arith.constant 0.000000e+00 : f32
    %254 = vector.broadcast %cst_121 : f32 to vector<16x128xf32>
    %255 = arith.select %168, %253, %254 : vector<16x128xi1>, vector<16x128xf32>
    %c7_i32_122 = arith.constant 7 : i32
    %256 = tpu.dynamic_rotate %248 by %c7_i32_122 dim 1 : vector<16x128xf32>, i32 -> vector<16x128xf32>
    %257 = arith.andi %168, %166 : vector<16x128xi1>
    %cst_123 = arith.constant 0.000000e+00 : f32
    %258 = vector.broadcast %cst_123 : f32 to vector<16x128xf32>
    %259 = arith.select %257, %256, %258 : vector<16x128xi1>, vector<16x128xf32>
    %c1_i32_124 = arith.constant 1 : i32
    %260 = tpu.dynamic_rotate %248 by %c1_i32_124 dim 1 : vector<16x128xf32>, i32 -> vector<16x128xf32>
    %cst_125 = arith.constant 0.000000e+00 : f32
    %261 = vector.broadcast %cst_125 : f32 to vector<16x128xf32>
    %262 = arith.select %164, %260, %261 : vector<16x128xi1>, vector<16x128xf32>
    %c127_i32_126 = arith.constant 127 : i32
    %263 = tpu.dynamic_rotate %248 by %c127_i32_126 dim 1 : vector<16x128xf32>, i32 -> vector<16x128xf32>
    %cst_127 = arith.constant 0.000000e+00 : f32
    %264 = vector.broadcast %cst_127 : f32 to vector<16x128xf32>
    %265 = arith.select %166, %263, %264 : vector<16x128xi1>, vector<16x128xf32>
    %c121_i32_128 = arith.constant 121 : i32
    %266 = tpu.dynamic_rotate %248 by %c121_i32_128 dim 1 : vector<16x128xf32>, i32 -> vector<16x128xf32>
    %267 = arith.andi %170, %164 : vector<16x128xi1>
    %cst_129 = arith.constant 0.000000e+00 : f32
    %268 = vector.broadcast %cst_129 : f32 to vector<16x128xf32>
    %269 = arith.select %267, %266, %268 : vector<16x128xi1>, vector<16x128xf32>
    %c120_i32_130 = arith.constant 120 : i32
    %270 = tpu.dynamic_rotate %248 by %c120_i32_130 dim 1 : vector<16x128xf32>, i32 -> vector<16x128xf32>
    %cst_131 = arith.constant 0.000000e+00 : f32
    %271 = vector.broadcast %cst_131 : f32 to vector<16x128xf32>
    %272 = arith.select %170, %270, %271 : vector<16x128xi1>, vector<16x128xf32>
    %c119_i32_132 = arith.constant 119 : i32
    %273 = tpu.dynamic_rotate %248 by %c119_i32_132 dim 1 : vector<16x128xf32>, i32 -> vector<16x128xf32>
    %274 = arith.andi %170, %166 : vector<16x128xi1>
    %cst_133 = arith.constant 0.000000e+00 : f32
    %275 = vector.broadcast %cst_133 : f32 to vector<16x128xf32>
    %276 = arith.select %274, %273, %275 : vector<16x128xi1>, vector<16x128xf32>
    %277 = tpu.concatenate %252, %255, %259, %262, %248, %265, %269, %272, %276 in 0 : vector<16x128xf32>, vector<16x128xf32>, vector<16x128xf32>, vector<16x128xf32>, vector<16x128xf32>, vector<16x128xf32>, vector<16x128xf32>, vector<16x128xf32>, vector<16x128xf32> -> vector<144x128xf32>
    %278 = arith.truncf %277 : vector<144x128xf32> to vector<144x128xbf16>
    %c5 = arith.constant 5 : index
    %c0_134 = arith.constant 0 : index
    %c0_135 = arith.constant 0 : index
    %279 = vector.load %arg2[%c5, %c0_134, %c0_135] : memref<9x16x144xbf16, #tpu.memory_space<vmem>>, vector<1x16x144xbf16>
    %280 = vector.shape_cast %279 : vector<1x16x144xbf16> to vector<16x144xbf16>
    %cst_136 = arith.constant dense<0.000000e+00> : vector<16x128xf32>
    %281 = tpu.matmul %280, %278, %cst_136 {dimension_numbers = #tpu.dot_dimension_numbers<[1], [0], [0], [1], [0, 0, 1, 1], [], []>} : vector<16x144xbf16>, vector<144x128xbf16>, vector<16x128xf32> -> vector<16x128xf32>
    %c5_137 = arith.constant 5 : index
    %c0_138 = arith.constant 0 : index
    %c0_139 = arith.constant 0 : index
    %282 = vector.load %arg3[%c5_137, %c0_138, %c0_139] : memref<9x16x1xf32, #tpu.memory_space<vmem>>, vector<1x16x1xf32>
    %283 = vector.shape_cast %282 : vector<1x16x1xf32> to vector<16x1xf32>
    %284 = vector.broadcast %283 : vector<16x1xf32> to vector<16x128xf32>
    %285 = arith.addf %281, %284 : vector<16x128xf32>
    %cst_140 = arith.constant 0.000000e+00 : f32
    %286 = vector.broadcast %cst_140 : f32 to vector<16x128xf32>
    %287 = arith.maximumf %285, %286 : vector<16x128xf32>
    %c127_i32_141 = arith.constant 127 : i32
    %288 = tpu.dynamic_rotate %287 by %c127_i32_141 dim 1 : vector<16x128xf32>, i32 -> vector<16x128xf32>
    %c120_i32_142 = arith.constant 120 : i32
    %289 = tpu.dynamic_rotate %287 by %c120_i32_142 dim 1 : vector<16x128xf32>, i32 -> vector<16x128xf32>
    %c119_i32_143 = arith.constant 119 : i32
    %290 = tpu.dynamic_rotate %287 by %c119_i32_143 dim 1 : vector<16x128xf32>, i32 -> vector<16x128xf32>
    %291 = arith.maximumf %287, %288 : vector<16x128xf32>
    %292 = arith.maximumf %289, %290 : vector<16x128xf32>
    %293 = arith.maximumf %291, %292 : vector<16x128xf32>
    %294 = tpu.iota {dimensions = array<i32: 0>} : vector<128x128xi32>
    %295 = tpu.iota {dimensions = array<i32: 1>} : vector<128x128xi32>
    %c2_i32_144 = arith.constant 2 : i32
    %296 = vector.broadcast %c2_i32_144 : i32 to vector<128x128xi32>
    %297 = arith.shrsi %295, %296 : vector<128x128xi32>
    %c3_i32_145 = arith.constant 3 : i32
    %298 = vector.broadcast %c3_i32_145 : i32 to vector<128x128xi32>
    %299 = arith.andi %295, %298 : vector<128x128xi32>
    %c16_i32_146 = arith.constant 16 : i32
    %300 = vector.broadcast %c16_i32_146 : i32 to vector<128x128xi32>
    %301 = arith.muli %297, %300 : vector<128x128xi32>
    %c2_i32_147 = arith.constant 2 : i32
    %302 = vector.broadcast %c2_i32_147 : i32 to vector<128x128xi32>
    %303 = arith.muli %299, %302 : vector<128x128xi32>
    %304 = arith.addi %301, %303 : vector<128x128xi32>
    %c16_i32_148 = arith.constant 16 : i32
    %305 = vector.broadcast %c16_i32_148 : i32 to vector<128x128xi32>
    %306 = arith.cmpi slt, %295, %305 : vector<128x128xi32>
    %c-1_i32_149 = arith.constant -1 : i32
    %307 = vector.broadcast %c-1_i32_149 : i32 to vector<128x128xi32>
    %308 = arith.select %306, %304, %307 : vector<128x128xi1>, vector<128x128xi32>
    %309 = arith.cmpi eq, %294, %308 : vector<128x128xi32>
    %cst_150 = arith.constant 1.000000e+00 : f32
    %cst_151 = arith.constant 0.000000e+00 : f32
    %310 = vector.broadcast %cst_150 : f32 to vector<128x128xf32>
    %311 = vector.broadcast %cst_151 : f32 to vector<128x128xf32>
    %312 = arith.select %309, %310, %311 : vector<128x128xi1>, vector<128x128xf32>
    %cst_152 = arith.constant dense<0.000000e+00> : vector<16x128xf32>
    %313 = tpu.matmul %293, %312, %cst_152 {dimension_numbers = #tpu.dot_dimension_numbers<[1], [0], [0], [1], [0, 0, 1, 1], [], []>} : vector<16x128xf32>, vector<128x128xf32>, vector<16x128xf32> -> vector<16x128xf32>
    %314 = tpu.iota {dimensions = array<i32: 1>} : vector<16x128xi32>
    %c3_i32_153 = arith.constant 3 : i32
    %315 = vector.broadcast %c3_i32_153 : i32 to vector<16x128xi32>
    %316 = arith.andi %314, %315 : vector<16x128xi32>
    %c2_i32_154 = arith.constant 2 : i32
    %317 = vector.broadcast %c2_i32_154 : i32 to vector<16x128xi32>
    %318 = arith.shrsi %314, %317 : vector<16x128xi32>
    %c1_i32_155 = arith.constant 1 : i32
    %319 = vector.broadcast %c1_i32_155 : i32 to vector<16x128xi32>
    %320 = arith.cmpi sge, %316, %319 : vector<16x128xi32>
    %c2_i32_156 = arith.constant 2 : i32
    %321 = vector.broadcast %c2_i32_156 : i32 to vector<16x128xi32>
    %322 = arith.cmpi sle, %316, %321 : vector<16x128xi32>
    %c1_i32_157 = arith.constant 1 : i32
    %323 = vector.broadcast %c1_i32_157 : i32 to vector<16x128xi32>
    %324 = arith.cmpi sge, %318, %323 : vector<16x128xi32>
    %c2_i32_158 = arith.constant 2 : i32
    %325 = vector.broadcast %c2_i32_158 : i32 to vector<16x128xi32>
    %326 = arith.cmpi sle, %318, %325 : vector<16x128xi32>
    %c5_i32 = arith.constant 5 : i32
    %327 = tpu.dynamic_rotate %313 by %c5_i32 dim 1 : vector<16x128xf32>, i32 -> vector<16x128xf32>
    %328 = arith.andi %324, %320 : vector<16x128xi1>
    %cst_159 = arith.constant 0.000000e+00 : f32
    %329 = vector.broadcast %cst_159 : f32 to vector<16x128xf32>
    %330 = arith.select %328, %327, %329 : vector<16x128xi1>, vector<16x128xf32>
    %c4_i32_160 = arith.constant 4 : i32
    %331 = tpu.dynamic_rotate %313 by %c4_i32_160 dim 1 : vector<16x128xf32>, i32 -> vector<16x128xf32>
    %cst_161 = arith.constant 0.000000e+00 : f32
    %332 = vector.broadcast %cst_161 : f32 to vector<16x128xf32>
    %333 = arith.select %324, %331, %332 : vector<16x128xi1>, vector<16x128xf32>
    %c3_i32_162 = arith.constant 3 : i32
    %334 = tpu.dynamic_rotate %313 by %c3_i32_162 dim 1 : vector<16x128xf32>, i32 -> vector<16x128xf32>
    %335 = arith.andi %324, %322 : vector<16x128xi1>
    %cst_163 = arith.constant 0.000000e+00 : f32
    %336 = vector.broadcast %cst_163 : f32 to vector<16x128xf32>
    %337 = arith.select %335, %334, %336 : vector<16x128xi1>, vector<16x128xf32>
    %c1_i32_164 = arith.constant 1 : i32
    %338 = tpu.dynamic_rotate %313 by %c1_i32_164 dim 1 : vector<16x128xf32>, i32 -> vector<16x128xf32>
    %cst_165 = arith.constant 0.000000e+00 : f32
    %339 = vector.broadcast %cst_165 : f32 to vector<16x128xf32>
    %340 = arith.select %320, %338, %339 : vector<16x128xi1>, vector<16x128xf32>
    %c127_i32_166 = arith.constant 127 : i32
    %341 = tpu.dynamic_rotate %313 by %c127_i32_166 dim 1 : vector<16x128xf32>, i32 -> vector<16x128xf32>
    %cst_167 = arith.constant 0.000000e+00 : f32
    %342 = vector.broadcast %cst_167 : f32 to vector<16x128xf32>
    %343 = arith.select %322, %341, %342 : vector<16x128xi1>, vector<16x128xf32>
    %c125_i32 = arith.constant 125 : i32
    %344 = tpu.dynamic_rotate %313 by %c125_i32 dim 1 : vector<16x128xf32>, i32 -> vector<16x128xf32>
    %345 = arith.andi %326, %320 : vector<16x128xi1>
    %cst_168 = arith.constant 0.000000e+00 : f32
    %346 = vector.broadcast %cst_168 : f32 to vector<16x128xf32>
    %347 = arith.select %345, %344, %346 : vector<16x128xi1>, vector<16x128xf32>
    %c124_i32 = arith.constant 124 : i32
    %348 = tpu.dynamic_rotate %313 by %c124_i32 dim 1 : vector<16x128xf32>, i32 -> vector<16x128xf32>
    %cst_169 = arith.constant 0.000000e+00 : f32
    %349 = vector.broadcast %cst_169 : f32 to vector<16x128xf32>
    %350 = arith.select %326, %348, %349 : vector<16x128xi1>, vector<16x128xf32>
    %c123_i32 = arith.constant 123 : i32
    %351 = tpu.dynamic_rotate %313 by %c123_i32 dim 1 : vector<16x128xf32>, i32 -> vector<16x128xf32>
    %352 = arith.andi %326, %322 : vector<16x128xi1>
    %cst_170 = arith.constant 0.000000e+00 : f32
    %353 = vector.broadcast %cst_170 : f32 to vector<16x128xf32>
    %354 = arith.select %352, %351, %353 : vector<16x128xi1>, vector<16x128xf32>
    %355 = tpu.concatenate %330, %333, %337, %340, %313, %343, %347, %350, %354 in 0 : vector<16x128xf32>, vector<16x128xf32>, vector<16x128xf32>, vector<16x128xf32>, vector<16x128xf32>, vector<16x128xf32>, vector<16x128xf32>, vector<16x128xf32>, vector<16x128xf32> -> vector<144x128xf32>
    %356 = arith.truncf %355 : vector<144x128xf32> to vector<144x128xbf16>
    %c6 = arith.constant 6 : index
    %c0_171 = arith.constant 0 : index
    %c0_172 = arith.constant 0 : index
    %357 = vector.load %arg2[%c6, %c0_171, %c0_172] : memref<9x16x144xbf16, #tpu.memory_space<vmem>>, vector<1x16x144xbf16>
    %358 = vector.shape_cast %357 : vector<1x16x144xbf16> to vector<16x144xbf16>
    %cst_173 = arith.constant dense<0.000000e+00> : vector<16x128xf32>
    %359 = tpu.matmul %358, %356, %cst_173 {dimension_numbers = #tpu.dot_dimension_numbers<[1], [0], [0], [1], [0, 0, 1, 1], [], []>} : vector<16x144xbf16>, vector<144x128xbf16>, vector<16x128xf32> -> vector<16x128xf32>
    %c6_174 = arith.constant 6 : index
    %c0_175 = arith.constant 0 : index
    %c0_176 = arith.constant 0 : index
    %360 = vector.load %arg3[%c6_174, %c0_175, %c0_176] : memref<9x16x1xf32, #tpu.memory_space<vmem>>, vector<1x16x1xf32>
    %361 = vector.shape_cast %360 : vector<1x16x1xf32> to vector<16x1xf32>
    %362 = vector.broadcast %361 : vector<16x1xf32> to vector<16x128xf32>
    %363 = arith.addf %359, %362 : vector<16x128xf32>
    %cst_177 = arith.constant 0.000000e+00 : f32
    %364 = vector.broadcast %cst_177 : f32 to vector<16x128xf32>
    %365 = arith.maximumf %363, %364 : vector<16x128xf32>
    %c5_i32_178 = arith.constant 5 : i32
    %366 = tpu.dynamic_rotate %365 by %c5_i32_178 dim 1 : vector<16x128xf32>, i32 -> vector<16x128xf32>
    %367 = arith.andi %324, %320 : vector<16x128xi1>
    %cst_179 = arith.constant 0.000000e+00 : f32
    %368 = vector.broadcast %cst_179 : f32 to vector<16x128xf32>
    %369 = arith.select %367, %366, %368 : vector<16x128xi1>, vector<16x128xf32>
    %c4_i32_180 = arith.constant 4 : i32
    %370 = tpu.dynamic_rotate %365 by %c4_i32_180 dim 1 : vector<16x128xf32>, i32 -> vector<16x128xf32>
    %cst_181 = arith.constant 0.000000e+00 : f32
    %371 = vector.broadcast %cst_181 : f32 to vector<16x128xf32>
    %372 = arith.select %324, %370, %371 : vector<16x128xi1>, vector<16x128xf32>
    %c3_i32_182 = arith.constant 3 : i32
    %373 = tpu.dynamic_rotate %365 by %c3_i32_182 dim 1 : vector<16x128xf32>, i32 -> vector<16x128xf32>
    %374 = arith.andi %324, %322 : vector<16x128xi1>
    %cst_183 = arith.constant 0.000000e+00 : f32
    %375 = vector.broadcast %cst_183 : f32 to vector<16x128xf32>
    %376 = arith.select %374, %373, %375 : vector<16x128xi1>, vector<16x128xf32>
    %c1_i32_184 = arith.constant 1 : i32
    %377 = tpu.dynamic_rotate %365 by %c1_i32_184 dim 1 : vector<16x128xf32>, i32 -> vector<16x128xf32>
    %cst_185 = arith.constant 0.000000e+00 : f32
    %378 = vector.broadcast %cst_185 : f32 to vector<16x128xf32>
    %379 = arith.select %320, %377, %378 : vector<16x128xi1>, vector<16x128xf32>
    %c127_i32_186 = arith.constant 127 : i32
    %380 = tpu.dynamic_rotate %365 by %c127_i32_186 dim 1 : vector<16x128xf32>, i32 -> vector<16x128xf32>
    %cst_187 = arith.constant 0.000000e+00 : f32
    %381 = vector.broadcast %cst_187 : f32 to vector<16x128xf32>
    %382 = arith.select %322, %380, %381 : vector<16x128xi1>, vector<16x128xf32>
    %c125_i32_188 = arith.constant 125 : i32
    %383 = tpu.dynamic_rotate %365 by %c125_i32_188 dim 1 : vector<16x128xf32>, i32 -> vector<16x128xf32>
    %384 = arith.andi %326, %320 : vector<16x128xi1>
    %cst_189 = arith.constant 0.000000e+00 : f32
    %385 = vector.broadcast %cst_189 : f32 to vector<16x128xf32>
    %386 = arith.select %384, %383, %385 : vector<16x128xi1>, vector<16x128xf32>
    %c124_i32_190 = arith.constant 124 : i32
    %387 = tpu.dynamic_rotate %365 by %c124_i32_190 dim 1 : vector<16x128xf32>, i32 -> vector<16x128xf32>
    %cst_191 = arith.constant 0.000000e+00 : f32
    %388 = vector.broadcast %cst_191 : f32 to vector<16x128xf32>
    %389 = arith.select %326, %387, %388 : vector<16x128xi1>, vector<16x128xf32>
    %c123_i32_192 = arith.constant 123 : i32
    %390 = tpu.dynamic_rotate %365 by %c123_i32_192 dim 1 : vector<16x128xf32>, i32 -> vector<16x128xf32>
    %391 = arith.andi %326, %322 : vector<16x128xi1>
    %cst_193 = arith.constant 0.000000e+00 : f32
    %392 = vector.broadcast %cst_193 : f32 to vector<16x128xf32>
    %393 = arith.select %391, %390, %392 : vector<16x128xi1>, vector<16x128xf32>
    %394 = tpu.concatenate %369, %372, %376, %379, %365, %382, %386, %389, %393 in 0 : vector<16x128xf32>, vector<16x128xf32>, vector<16x128xf32>, vector<16x128xf32>, vector<16x128xf32>, vector<16x128xf32>, vector<16x128xf32>, vector<16x128xf32>, vector<16x128xf32> -> vector<144x128xf32>
    %395 = arith.truncf %394 : vector<144x128xf32> to vector<144x128xbf16>
    %c7 = arith.constant 7 : index
    %c0_194 = arith.constant 0 : index
    %c0_195 = arith.constant 0 : index
    %396 = vector.load %arg2[%c7, %c0_194, %c0_195] : memref<9x16x144xbf16, #tpu.memory_space<vmem>>, vector<1x16x144xbf16>
    %397 = vector.shape_cast %396 : vector<1x16x144xbf16> to vector<16x144xbf16>
    %cst_196 = arith.constant dense<0.000000e+00> : vector<16x128xf32>
    %398 = tpu.matmul %397, %395, %cst_196 {dimension_numbers = #tpu.dot_dimension_numbers<[1], [0], [0], [1], [0, 0, 1, 1], [], []>} : vector<16x144xbf16>, vector<144x128xbf16>, vector<16x128xf32> -> vector<16x128xf32>
    %c7_197 = arith.constant 7 : index
    %c0_198 = arith.constant 0 : index
    %c0_199 = arith.constant 0 : index
    %399 = vector.load %arg3[%c7_197, %c0_198, %c0_199] : memref<9x16x1xf32, #tpu.memory_space<vmem>>, vector<1x16x1xf32>
    %400 = vector.shape_cast %399 : vector<1x16x1xf32> to vector<16x1xf32>
    %401 = vector.broadcast %400 : vector<16x1xf32> to vector<16x128xf32>
    %402 = arith.addf %398, %401 : vector<16x128xf32>
    %cst_200 = arith.constant 0.000000e+00 : f32
    %403 = vector.broadcast %cst_200 : f32 to vector<16x128xf32>
    %404 = arith.maximumf %402, %403 : vector<16x128xf32>
    %c5_i32_201 = arith.constant 5 : i32
    %405 = tpu.dynamic_rotate %404 by %c5_i32_201 dim 1 : vector<16x128xf32>, i32 -> vector<16x128xf32>
    %406 = arith.andi %324, %320 : vector<16x128xi1>
    %cst_202 = arith.constant 0.000000e+00 : f32
    %407 = vector.broadcast %cst_202 : f32 to vector<16x128xf32>
    %408 = arith.select %406, %405, %407 : vector<16x128xi1>, vector<16x128xf32>
    %c4_i32_203 = arith.constant 4 : i32
    %409 = tpu.dynamic_rotate %404 by %c4_i32_203 dim 1 : vector<16x128xf32>, i32 -> vector<16x128xf32>
    %cst_204 = arith.constant 0.000000e+00 : f32
    %410 = vector.broadcast %cst_204 : f32 to vector<16x128xf32>
    %411 = arith.select %324, %409, %410 : vector<16x128xi1>, vector<16x128xf32>
    %c3_i32_205 = arith.constant 3 : i32
    %412 = tpu.dynamic_rotate %404 by %c3_i32_205 dim 1 : vector<16x128xf32>, i32 -> vector<16x128xf32>
    %413 = arith.andi %324, %322 : vector<16x128xi1>
    %cst_206 = arith.constant 0.000000e+00 : f32
    %414 = vector.broadcast %cst_206 : f32 to vector<16x128xf32>
    %415 = arith.select %413, %412, %414 : vector<16x128xi1>, vector<16x128xf32>
    %c1_i32_207 = arith.constant 1 : i32
    %416 = tpu.dynamic_rotate %404 by %c1_i32_207 dim 1 : vector<16x128xf32>, i32 -> vector<16x128xf32>
    %cst_208 = arith.constant 0.000000e+00 : f32
    %417 = vector.broadcast %cst_208 : f32 to vector<16x128xf32>
    %418 = arith.select %320, %416, %417 : vector<16x128xi1>, vector<16x128xf32>
    %c127_i32_209 = arith.constant 127 : i32
    %419 = tpu.dynamic_rotate %404 by %c127_i32_209 dim 1 : vector<16x128xf32>, i32 -> vector<16x128xf32>
    %cst_210 = arith.constant 0.000000e+00 : f32
    %420 = vector.broadcast %cst_210 : f32 to vector<16x128xf32>
    %421 = arith.select %322, %419, %420 : vector<16x128xi1>, vector<16x128xf32>
    %c125_i32_211 = arith.constant 125 : i32
    %422 = tpu.dynamic_rotate %404 by %c125_i32_211 dim 1 : vector<16x128xf32>, i32 -> vector<16x128xf32>
    %423 = arith.andi %326, %320 : vector<16x128xi1>
    %cst_212 = arith.constant 0.000000e+00 : f32
    %424 = vector.broadcast %cst_212 : f32 to vector<16x128xf32>
    %425 = arith.select %423, %422, %424 : vector<16x128xi1>, vector<16x128xf32>
    %c124_i32_213 = arith.constant 124 : i32
    %426 = tpu.dynamic_rotate %404 by %c124_i32_213 dim 1 : vector<16x128xf32>, i32 -> vector<16x128xf32>
    %cst_214 = arith.constant 0.000000e+00 : f32
    %427 = vector.broadcast %cst_214 : f32 to vector<16x128xf32>
    %428 = arith.select %326, %426, %427 : vector<16x128xi1>, vector<16x128xf32>
    %c123_i32_215 = arith.constant 123 : i32
    %429 = tpu.dynamic_rotate %404 by %c123_i32_215 dim 1 : vector<16x128xf32>, i32 -> vector<16x128xf32>
    %430 = arith.andi %326, %322 : vector<16x128xi1>
    %cst_216 = arith.constant 0.000000e+00 : f32
    %431 = vector.broadcast %cst_216 : f32 to vector<16x128xf32>
    %432 = arith.select %430, %429, %431 : vector<16x128xi1>, vector<16x128xf32>
    %433 = tpu.concatenate %408, %411, %415, %418, %404, %421, %425, %428, %432 in 0 : vector<16x128xf32>, vector<16x128xf32>, vector<16x128xf32>, vector<16x128xf32>, vector<16x128xf32>, vector<16x128xf32>, vector<16x128xf32>, vector<16x128xf32>, vector<16x128xf32> -> vector<144x128xf32>
    %434 = arith.truncf %433 : vector<144x128xf32> to vector<144x128xbf16>
    %c8 = arith.constant 8 : index
    %c0_217 = arith.constant 0 : index
    %c0_218 = arith.constant 0 : index
    %435 = vector.load %arg2[%c8, %c0_217, %c0_218] : memref<9x16x144xbf16, #tpu.memory_space<vmem>>, vector<1x16x144xbf16>
    %436 = vector.shape_cast %435 : vector<1x16x144xbf16> to vector<16x144xbf16>
    %cst_219 = arith.constant dense<0.000000e+00> : vector<16x128xf32>
    %437 = tpu.matmul %436, %434, %cst_219 {dimension_numbers = #tpu.dot_dimension_numbers<[1], [0], [0], [1], [0, 0, 1, 1], [], []>} : vector<16x144xbf16>, vector<144x128xbf16>, vector<16x128xf32> -> vector<16x128xf32>
    %c8_220 = arith.constant 8 : index
    %c0_221 = arith.constant 0 : index
    %c0_222 = arith.constant 0 : index
    %438 = vector.load %arg3[%c8_220, %c0_221, %c0_222] : memref<9x16x1xf32, #tpu.memory_space<vmem>>, vector<1x16x1xf32>
    %439 = vector.shape_cast %438 : vector<1x16x1xf32> to vector<16x1xf32>
    %440 = vector.broadcast %439 : vector<16x1xf32> to vector<16x128xf32>
    %441 = arith.addf %437, %440 : vector<16x128xf32>
    %cst_223 = arith.constant 0.000000e+00 : f32
    %442 = vector.broadcast %cst_223 : f32 to vector<16x128xf32>
    %443 = arith.maximumf %441, %442 : vector<16x128xf32>
    %444 = tpu.iota {dimensions = array<i32: 1>} : vector<16x128xi32>
    %c16_i32_224 = arith.constant 16 : i32
    %445 = vector.broadcast %c16_i32_224 : i32 to vector<16x128xi32>
    %446 = arith.cmpi slt, %444, %445 : vector<16x128xi32>
    %cst_225 = arith.constant 0.000000e+00 : f32
    %447 = vector.broadcast %cst_225 : f32 to vector<16x128xf32>
    %448 = arith.select %446, %443, %447 : vector<16x128xi1>, vector<16x128xf32>
    %cst_226 = arith.constant dense<0.000000e+00> : vector<16xf32>
    %449 = vector.multi_reduction <add>, %448, %cst_226 [1] : vector<16x128xf32> to vector<16xf32>
    %450 = vector.shape_cast %449 : vector<16xf32> to vector<16x1xf32>
    %cst_227 = arith.constant 6.250000e-02 : f32
    %451 = vector.broadcast %cst_227 : f32 to vector<16x1xf32>
    %452 = arith.mulf %450, %451 : vector<16x1xf32>
    %c0_228 = arith.constant 0 : index
    %c0_229 = arith.constant 0 : index
    %453 = vector.load %arg4[%c0_228, %c0_229] : memref<16x10xf32, #tpu.memory_space<vmem>>, vector<16x10xf32>
    %454 = vector.broadcast %452 : vector<16x1xf32> to vector<16x10xf32>
    %455 = arith.mulf %453, %454 : vector<16x10xf32>
    %cst_230 = arith.constant dense<0.000000e+00> : vector<10xf32>
    %456 = vector.multi_reduction <add>, %455, %cst_230 [0] : vector<16x10xf32> to vector<10xf32>
    %457 = vector.shape_cast %456 : vector<10xf32> to vector<1x10xf32>
    %c0_231 = arith.constant 0 : index
    %c0_232 = arith.constant 0 : index
    %458 = vector.load %arg5[%c0_231, %c0_232] : memref<1x10xf32, #tpu.memory_space<vmem>>, vector<1x10xf32>
    %459 = arith.addf %457, %458 : vector<1x10xf32>
    %c0_233 = arith.constant 0 : index
    %c0_234 = arith.constant 0 : index
    %c0_235 = arith.constant 0 : index
    %460 = vector.load %arg6[%c0_233, %c0_234, %c0_235] : memref<1x1x10xf32, #tpu.memory_space<vmem>>, vector<1x1x10xf32>
    %461 = vector.shape_cast %460 : vector<1x1x10xf32> to vector<1x10xf32>
    %462 = vector.shape_cast %459 : vector<1x10xf32> to vector<1x1x10xf32>
    tpu.vector_store %arg6[%c0_233, %c0_234, %c0_235], %462 {strides = array<i32>} : memref<1x1x10xf32, #tpu.memory_space<vmem>>, vector<1x1x10xf32>,
    return
  }
  func.func @transform_0(%arg0: i32) -> (i32, i32, i32) {
    %c0_i32 = arith.constant 0 : i32
    %c0_i32_0 = arith.constant 0 : i32
    %c0_i32_1 = arith.constant 0 : i32
    return %arg0, %c0_i32, %c0_i32_0 : i32, i32, i32
  }
  func.func @transform_1(%arg0: i32) -> (i32, i32, i32) {
    %c0_i32 = arith.constant 0 : i32
    %c0_i32_0 = arith.constant 0 : i32
    %c0_i32_1 = arith.constant 0 : i32
    %c0_i32_2 = arith.constant 0 : i32
    return %c0_i32, %c0_i32_0, %c0_i32_1 : i32, i32, i32
  }
  func.func @transform_2(%arg0: i32) -> (i32, i32, i32) {
    %c0_i32 = arith.constant 0 : i32
    %c0_i32_0 = arith.constant 0 : i32
    %c0_i32_1 = arith.constant 0 : i32
    %c0_i32_2 = arith.constant 0 : i32
    return %c0_i32, %c0_i32_0, %c0_i32_1 : i32, i32, i32
  }
  func.func @transform_3(%arg0: i32) -> (i32, i32) {
    %c0_i32 = arith.constant 0 : i32
    %c0_i32_0 = arith.constant 0 : i32
    %c0_i32_1 = arith.constant 0 : i32
    return %c0_i32, %c0_i32_0 : i32, i32
  }
  func.func @transform_4(%arg0: i32) -> (i32, i32) {
    %c0_i32 = arith.constant 0 : i32
    %c0_i32_0 = arith.constant 0 : i32
    %c0_i32_1 = arith.constant 0 : i32
    return %c0_i32, %c0_i32_0 : i32, i32
  }
  func.func @transform_5(%arg0: i32) -> (i32, i32, i32) {
    %c0_i32 = arith.constant 0 : i32
    %c0_i32_0 = arith.constant 0 : i32
    %c0_i32_1 = arith.constant 0 : i32
    return %arg0, %c0_i32, %c0_i32_0 : i32, i32, i32
  }
}

</mosaic_0001>

<llo_original>
// kernel: layer13s_forward.1
$region0: #{layer13s_forward.1}
  #allocation0 [shape = 'u32[]', space=smem, size = 0x4, offset = 0x4, fixed_abs, tag = 'smem constant byte address 0x4 - core index']
  #allocation1 [shape = 'u32[144,128]{1,0:T(1,128)}', space=vmem, size = 0x12000, scoped, tag = 'internal scratch']
  %s0 = inlined_call_operand.vmem [shape: f32[2,16,256], index: 0, kind: input, shape index: {}]
  %s1 = inlined_call_operand.vmem [shape: bf16[9,16,144], index: 1, kind: input, shape index: {}]
  %s2 = inlined_call_operand.vmem [shape: f32[9,16,1], index: 2, kind: input, shape index: {}]
  %s3 = inlined_call_operand.vmem [shape: f32[16,10], index: 3, kind: input, shape index: {}]
  %s4 = inlined_call_operand.vmem [shape: f32[1,10], index: 4, kind: input, shape index: {}]
  %s5 = inlined_call_operand.hbm [shape: f32[2,1,10], index: 5, kind: output, shape index: {}]
  %s6 = sld [smem:[#allocation0]]
  $region53: #{layer13s_forward.1} parent=0
    _
  %s8 = ssub.s32 1, %s6
  %s9 = scalar_select 0, %s8, %s6
  $region1: #{layer13s_forward.1} parent=0
    #allocation2 [shape = 'u8[1024]{0}', space=vmem, size = 0x400, scoped, tag = 'output window, operand 0']
    #allocation3 [shape = 's32[2]{0}', space=sflag, size = 0x8, scoped, tag = 'scoped memory for layer13s_forward.1']
    %10 = vsyncpa [#allocation3], 0
    %s11 = scalar_lea.sflag [#allocation3], 1
    %12 = vsyncpa %s11, 0
    loop: start=0, step=1, limit=4
    $region2: #{layer13s_forward.1} parent=1 // loop_pre_header
      _
    $region3: #{layer13s_forward.1} parent=1 // loop_header
      %s14 = sphi 0, %s18
      %p15 = scmp.ge.s32.totalorder %s14, 4
      %s24 = sphi 0, %s26
      %s27 = sphi 0, %s24
      %s28 = sphi 0, %s27
      %s44 = sphi 0, %s28
      %s48 = sphi 0, %s48
      %s50 = sphi 0, %s48
      %s51 = sphi 0, %s50
      %s65 = sphi 0, %s51
      %s69 = sphi 0, %s69
      %s71 = sphi 0, %s69
      %s72 = sphi 0, %s71
      %s86 = sphi 0, %s72
      %s90 = sphi 0, %s90
      %s92 = sphi 0, %s90
      %s93 = sphi 0, %s92
      %s107 = sphi 0, %s93
      %s111 = sphi 0, %s111
      %s113 = sphi 0, %s111
      %s114 = sphi 0, %s113
      %s128 = sphi 0, %s114
      %s134 = sphi 0, %s136
      %s137 = sphi 0, %s134
      %s138 = sphi 0, %s137
      %s154 = sphi 0, %s138
    $region4: #{layer13s_forward.1} parent=1 // loop_header_branch
      %17 = sbr.rel (%p15) target = $region8
    $region5: #{layer13s_forward.1} parent=1 // loop_body
      %s19 = ssub.s32 %s14, 1
      %s20 = ssub.s32 %s14, 2
      %s21 = sadd.s32 %s14, 1
      %s22 = ssub.s32 %s14, %s21
      %p23 = scmp.eq.s32.totalorder %s22, 0
      %s25 = sadd.s32 %s24, 1
      %s26 = scalar_select %p23, %s24, %s25
      %p29 = pneg %p23
      %p30 = scmp.eq.s32.totalorder %s14, 1
      %p31 = por %p29, %p30
      %p32 = scmp.ne.s32.totalorder %s24, %s27
      %p33 = scmp.eq.s32.totalorder %s14, 0
      %p34 = por %p32, %p33
      %p35 = scmp.ne.s32.totalorder %s24, %s27
      %p36 = scmp.eq.s32.totalorder %s19, 1
      %p37 = por %p35, %p36
      %p38 = scmp.ne.s32.totalorder %s27, %s28
      %p39 = scmp.eq.s32.totalorder %s19, 0
      %p40 = por %p38, %p39
      %p41 = scmp.ne.s32.totalorder %s27, %s28
      %p42 = scmp.eq.s32.totalorder %s20, 1
      %p43 = por %p41, %p42
      %p45 = scmp.ne.s32.totalorder %s28, %s44
      %p46 = scmp.eq.s32.totalorder %s20, 0
      %p47 = por %p45, %p46
      %s49 = sadd.s32 %s48, 1
      %p52 = scmp.eq.s32.totalorder %s14, 1
      %p53 = scmp.ne.s32.totalorder %s48, %s50
      %p54 = scmp.eq.s32.totalorder %s14, 0
      %p55 = por %p53, %p54
      %p56 = scmp.ne.s32.totalorder %s48, %s50
      %p57 = scmp.eq.s32.totalorder %s19, 1
      %p58 = por %p56, %p57
      %p59 = scmp.ne.s32.totalorder %s50, %s51
      %p60 = scmp.eq.s32.totalorder %s19, 0
      %p61 = por %p59, %p60
      %p62 = scmp.ne.s32.totalorder %s50, %s51
      %p63 = scmp.eq.s32.totalorder %s20, 1
      %p64 = por %p62, %p63
      %p66 = scmp.ne.s32.totalorder %s51, %s65
      %p67 = scmp.eq.s32.totalorder %s20, 0
      %p68 = por %p66, %p67
      %s70 = sadd.s32 %s69, 1
      %p73 = scmp.eq.s32.totalorder %s14, 1
      %p74 = scmp.ne.s32.totalorder %s69, %s71
      %p75 = scmp.eq.s32.totalorder %s14, 0
      %p76 = por %p74, %p75
      %p77 = scmp.ne.s32.totalorder %s69, %s71
      %p78 = scmp.eq.s32.totalorder %s19, 1
      %p79 = por %p77, %p78
      %p80 = scmp.ne.s32.totalorder %s71, %s72
      %p81 = scmp.eq.s32.totalorder %s19, 0
      %p82 = por %p80, %p81
      %p83 = scmp.ne.s32.totalorder %s71, %s72
      %p84 = scmp.eq.s32.totalorder %s20, 1
      %p85 = por %p83, %p84
      %p87 = scmp.ne.s32.totalorder %s72, %s86
      %p88 = scmp.eq.s32.totalorder %s20, 0
      %p89 = por %p87, %p88
      %s91 = sadd.s32 %s90, 1
      %p94 = scmp.eq.s32.totalorder %s14, 1
      %p95 = scmp.ne.s32.totalorder %s90, %s92
      %p96 = scmp.eq.s32.totalorder %s14, 0
      %p97 = por %p95, %p96
      %p98 = scmp.ne.s32.totalorder %s90, %s92
      %p99 = scmp.eq.s32.totalorder %s19, 1
      %p100 = por %p98, %p99
      %p101 = scmp.ne.s32.totalorder %s92, %s93
      %p102 = scmp.eq.s32.totalorder %s19, 0
      %p103 = por %p101, %p102
      %p104 = scmp.ne.s32.totalorder %s92, %s93
      %p105 = scmp.eq.s32.totalorder %s20, 1
      %p106 = por %p104, %p105
      %p108 = scmp.ne.s32.totalorder %s93, %s107
      %p109 = scmp.eq.s32.totalorder %s20, 0
      %p110 = por %p108, %p109
      %s112 = sadd.s32 %s111, 1
      %p115 = scmp.eq.s32.totalorder %s14, 1
      %p116 = scmp.ne.s32.totalorder %s111, %s113
      %p117 = scmp.eq.s32.totalorder %s14, 0
      %p118 = por %p116, %p117
      %p119 = scmp.ne.s32.totalorder %s111, %s113
      %p120 = scmp.eq.s32.totalorder %s19, 1
      %p121 = por %p119, %p120
      %p122 = scmp.ne.s32.totalorder %s113, %s114
      %p123 = scmp.eq.s32.totalorder %s19, 0
      %p124 = por %p122, %p123
      %p125 = scmp.ne.s32.totalorder %s113, %s114
      %p126 = scmp.eq.s32.totalorder %s20, 1
      %p127 = por %p125, %p126
      %p129 = scmp.ne.s32.totalorder %s114, %s128
      %p130 = scmp.eq.s32.totalorder %s20, 0
      %p131 = por %p129, %p130
      %s132 = ssub.s32 %s14, %s21
      %p133 = scmp.eq.s32.totalorder %s132, 0
      %s135 = sadd.s32 %s134, 1
      %s136 = scalar_select %p133, %s134, %s135
      %p139 = pneg %p133
      %p140 = scmp.eq.s32.totalorder %s14, 1
      %p141 = por %p139, %p140
      %p142 = scmp.ne.s32.totalorder %s134, %s137
      %p143 = scmp.eq.s32.totalorder %s14, 0
      %p144 = por %p142, %p143
      %p145 = scmp.ne.s32.totalorder %s134, %s137
      %p146 = scmp.eq.s32.totalorder %s19, 1
      %p147 = por %p145, %p146
      %p148 = scmp.ne.s32.totalorder %s137, %s138
      %p149 = scmp.eq.s32.totalorder %s19, 0
      %p150 = por %p148, %p149
      %p151 = scmp.ne.s32.totalorder %s137, %s138
      %p152 = scmp.eq.s32.totalorder %s20, 1
      %p153 = por %p151, %p152
      %p155 = scmp.ne.s32.totalorder %s138, %s154
      %p156 = scmp.eq.s32.totalorder %s20, 0
      %p157 = por %p155, %p156
      %p158 = scmp.le.s32.totalorder 1, %s14
      %p159 = scmp.lt.s32.totalorder %s14, 3
      %p160 = pnand %p158, %p159
      %p161 = pneg %p160
      // Predicated region
      $region9: #{layer13s_forward.1} parent=5 // pred_check
        _
      $region10: #{layer13s_forward.1} parent=5 // pred_check_branch
        %163 = sbr.rel (%p160) target = $region12
      $region11: #{layer13s_forward.1} parent=5 // pred_region
        %s164 = ssub.s32 %s14, 1
        // Predicated region
        $region13: #{layer13s_forward.1} parent=11 // pred_check
          %p165 = pneg %p61
        $region14: #{layer13s_forward.1} parent=11 // pred_check_branch
          %167 = sbr.rel (%p165) target = $region16
        $region15: #{layer13s_forward.1} parent=11 // pred_region
          _
        $region16: #{layer13s_forward.1} parent=11 // pred_fallthru
          _
        // Predicated region
        $region17: #{layer13s_forward.1} parent=11 // pred_check
          %p168 = pneg %p82
        $region18: #{layer13s_forward.1} parent=11 // pred_check_branch
          %170 = sbr.rel (%p168) target = $region20
        $region19: #{layer13s_forward.1} parent=11 // pred_region
          _
        $region20: #{layer13s_forward.1} parent=11 // pred_fallthru
          _
        // Predicated region
        $region21: #{layer13s_forward.1} parent=11 // pred_check
          %p171 = pneg %p103
        $region22: #{layer13s_forward.1} parent=11 // pred_check_branch
          %173 = sbr.rel (%p171) target = $region24
        $region23: #{layer13s_forward.1} parent=11 // pred_region
          _
        $region24: #{layer13s_forward.1} parent=11 // pred_fallthru
          _
        // Predicated region
        $region25: #{layer13s_forward.1} parent=11 // pred_check
          %p174 = pneg %p124
        $region26: #{layer13s_forward.1} parent=11 // pred_check_branch
          %176 = sbr.rel (%p174) target = $region28
        $region27: #{layer13s_forward.1} parent=11 // pred_region
          _
        $region28: #{layer13s_forward.1} parent=11 // pred_fallthru
          _
      $region12: #{layer13s_forward.1} parent=5 // pred_fallthru
        _
      %p177 = scmp.lt.s32.totalorder %s14, 2
      // Predicated region
      $region29: #{layer13s_forward.1} parent=5 // pred_check
        %p178 = pneg %p177
      $region30: #{layer13s_forward.1} parent=5 // pred_check_branch
        %180 = sbr.rel (%p178) target = $region32
      $region31: #{layer13s_forward.1} parent=5 // pred_region
        // Predicated region
        $region33: #{layer13s_forward.1} parent=31 // pred_check
          %p181 = pneg %p34
        $region34: #{layer13s_forward.1} parent=31 // pred_check_branch
          %183 = sbr.rel (%p181) target = $region36
        $region35: #{layer13s_forward.1} parent=31 // pred_region
          %p184 = scmp.lt.s32.totalorder %s14, 1
          %s185 = scalar_select %p184, %s14, 1
          %s186 = smul.addr %s185, 4
          %s187 = smul.addr %s186, 8
          %s188 = scalar_lea.vmem %s0, %s187
        $region36: #{layer13s_forward.1} parent=31 // pred_fallthru
          _
      $region32: #{layer13s_forward.1} parent=5 // pred_fallthru
        _
      %p189 = scmp.le.s32.totalorder 1, %s14
      %p190 = scmp.lt.s32.totalorder %s14, 3
      %p191 = pnand %p189, %p190
      %p192 = pneg %p191
      // Predicated region
      $region37: #{layer13s_forward.1} parent=5 // pred_check
        _
      $region38: #{layer13s_forward.1} parent=5 // pred_check_branch
        %194 = sbr.rel (%p191) target = $region40
      $region39: #{layer13s_forward.1} parent=5 // pred_region
        %s195 = ssub.s32 %s14, 1
        %p196 = scmp.lt.s32.totalorder %s19, 1
        %s197 = scalar_select %p196, %s19, 1
        %s198 = smul.addr %s197, 4
        %s199 = smul.addr %s198, 8
        %s200 = scalar_lea.vmem %s0, %s199
        %p201 = pneg %p40
        %p202 = pneg %p37
        %p203 = pneg %p61
        %p204 = pneg %p58
        %p205 = pneg %p82
        %p206 = pneg %p79
        %p207 = pneg %p103
        %p208 = pneg %p100
        %p209 = pneg %p124
        %p210 = pneg %p121
        %p211 = pneg %p150
        %p212 = pneg %p147
        %s213 = sand.u32 %s137, 1
        %s214 = scalar_lea.sflag [#allocation3], %s213
        %s215 = sand.u32 %s137, 1
        %s216 = scalar_lea.vmem [#allocation2], %s215
        %p217 = scmp.lt.s32.totalorder %s19, 1
        %s218 = scalar_select %p217, %s19, 1
        %s219 = smul.addr %s218, 4
        %s220 = smul.addr %s219, 8
        %s221 = scalar_lea.vmem %s0, %s220
        %v223 = vld [vmem:[%s221] sm:$0xff]
        %v224 = vld [vmem:[%s221 + $0x8] sm:$0xff]
        %v225 = vld [vmem:[%s221 + $0x10] sm:$0xff]
        %v226 = vld [vmem:[%s221 + $0x18] sm:$0xff]
        %v227 = vlaneseq
        %v228 = vand.u32 %v227, 127
        %v229 = vadd.s32 %v228, 128
        %v230 = vand.u32 %v228, 15
        %v231 = vand.u32 %v229, 15
        %v232 = vshra.s32 %v228, 4
        %v233 = vshra.s32 %v229, 4
        %vm234 = vcmp.ge.s32.totalorder %v230, 1
        %vm235 = vcmp.ge.s32.totalorder %v231, 1
        %vm236 = vcmp.le.s32.totalorder %v230, 14
        %vm237 = vcmp.le.s32.totalorder %v231, 14
        %vm238 = vcmp.ge.s32.totalorder %v232, 1
        %vm239 = vcmp.ge.s32.totalorder %v233, 1
        %vm240 = vcmp.le.s32.totalorder %v232, 14
        %vm241 = vcmp.le.s32.totalorder %v233, 14
        %242 = vrot.lane.b32.xlu0 %v223, 17
        %v243 = vpop.permute.xlu0 %242
        %244 = vrot.lane.b32.xlu0 %v225, 17
        %v245 = vpop.permute.xlu0 %244
        %246 = vrot.lane.b32.xlu0 %v224, 17
        %v247 = vpop.permute.xlu0 %246
        %248 = vrot.lane.b32.xlu0 %v226, 17
        %v249 = vpop.permute.xlu0 %248
        %vm250 = vcmp.lt.s32.totalorder %v228, 17
        %v251 = vsel %vm250, %v243, %v247
        %v252 = vsel %vm250, %v245, %v249
        %v253 = vsel %vm250, %v247, %v243
        %v254 = vsel %vm250, %v249, %v245
        %vm255 = vmand %vm238, %vm234
        %vm256 = vmand %vm239, %vm235
        %v257 = vsel %vm255, %v253, 0.0
        %v258 = vsel %vm256, %v251, 0.0
        %v259 = vsel %vm255, %v254, 0.0
        %v260 = vsel %vm256, %v252, 0.0
        %261 = vrot.lane.b32.xlu0 %v223, 16
        %v262 = vpop.permute.xlu0 %261
        %263 = vrot.lane.b32.xlu0 %v225, 16
        %v264 = vpop.permute.xlu0 %263
        %265 = vrot.lane.b32.xlu0 %v224, 16
        %v266 = vpop.permute.xlu0 %265
        %267 = vrot.lane.b32.xlu0 %v226, 16
        %v268 = vpop.permute.xlu0 %267
        %vm269 = vcmp.lt.s32.totalorder %v228, 16
        %v270 = vsel %vm269, %v262, %v266
        %v271 = vsel %vm269, %v264, %v268
        %v272 = vsel %vm269, %v266, %v262
        %v273 = vsel %vm269, %v268, %v264
        %v274 = vsel %vm238, %v272, 0.0
        %v275 = vsel %vm239, %v270, 0.0
        %v276 = vsel %vm238, %v273, 0.0
        %v277 = vsel %vm239, %v271, 0.0
        %278 = vrot.lane.b32.xlu0 %v223, 15
        %v279 = vpop.permute.xlu0 %278
        %280 = vrot.lane.b32.xlu0 %v225, 15
        %v281 = vpop.permute.xlu0 %280
        %282 = vrot.lane.b32.xlu0 %v224, 15
        %v283 = vpop.permute.xlu0 %282
        %284 = vrot.lane.b32.xlu0 %v226, 15
        %v285 = vpop.permute.xlu0 %284
        %vm286 = vcmp.lt.s32.totalorder %v228, 15
        %v287 = vsel %vm286, %v279, %v283
        %v288 = vsel %vm286, %v281, %v285
        %v289 = vsel %vm286, %v283, %v279
        %v290 = vsel %vm286, %v285, %v281
        %vm291 = vmand %vm238, %vm236
        %vm292 = vmand %vm239, %vm237
        %v293 = vsel %vm291, %v289, 0.0
        %v294 = vsel %vm292, %v287, 0.0
        %v295 = vsel %vm291, %v290, 0.0
        %v296 = vsel %vm292, %v288, 0.0
        %297 = vrot.lane.b32.xlu0 %v223, 1
        %v298 = vpop.permute.xlu0 %297
        %299 = vrot.lane.b32.xlu0 %v225, 1
        %v300 = vpop.permute.xlu0 %299
        %301 = vrot.lane.b32.xlu0 %v224, 1
        %v302 = vpop.permute.xlu0 %301
        %303 = vrot.lane.b32.xlu0 %v226, 1
        %v304 = vpop.permute.xlu0 %303
        %vm305 = vcmp.lt.s32.totalorder %v228, 1
        %v306 = vsel %vm305, %v298, %v302
        %v307 = vsel %vm305, %v300, %v304
        %v308 = vsel %vm305, %v302, %v298
        %v309 = vsel %vm305, %v304, %v300
        %v310 = vsel %vm234, %v308, 0.0
        %v311 = vsel %vm235, %v306, 0.0
        %v312 = vsel %vm234, %v309, 0.0
        %v313 = vsel %vm235, %v307, 0.0
        %314 = vrot.lane.b32.xlu0 %v223, 127
        %v315 = vpop.permute.xlu0 %314
        %316 = vrot.lane.b32.xlu0 %v225, 127
        %v317 = vpop.permute.xlu0 %316
        %318 = vrot.lane.b32.xlu0 %v224, 127
        %v319 = vpop.permute.xlu0 %318
        %320 = vrot.lane.b32.xlu0 %v226, 127
        %v321 = vpop.permute.xlu0 %320
        %vm322 = vcmp.lt.s32.totalorder %v228, 127
        %v323 = vsel %vm322, %v315, %v319
        %v324 = vsel %vm322, %v317, %v321
        %v325 = vsel %vm322, %v319, %v315
        %v326 = vsel %vm322, %v321, %v317
        %v327 = vsel %vm236, %v323, 0.0
        %v328 = vsel %vm237, %v325, 0.0
        %v329 = vsel %vm236, %v324, 0.0
        %v330 = vsel %vm237, %v326, 0.0
        %331 = vrot.lane.b32.xlu0 %v223, 113
        %v332 = vpop.permute.xlu0 %331
        %333 = vrot.lane.b32.xlu0 %v225, 113
        %v334 = vpop.permute.xlu0 %333
        %335 = vrot.lane.b32.xlu0 %v224, 113
        %v336 = vpop.permute.xlu0 %335
        %337 = vrot.lane.b32.xlu0 %v226, 113
        %v338 = vpop.permute.xlu0 %337
        %vm339 = vcmp.lt.s32.totalorder %v228, 113
        %v340 = vsel %vm339, %v332, %v336
        %v341 = vsel %vm339, %v334, %v338
        %v342 = vsel %vm339, %v336, %v332
        %v343 = vsel %vm339, %v338, %v334
        %vm344 = vmand %vm240, %vm234
        %vm345 = vmand %vm241, %vm235
        %v346 = vsel %vm344, %v340, 0.0
        %v347 = vsel %vm345, %v342, 0.0
        %v348 = vsel %vm344, %v341, 0.0
        %v349 = vsel %vm345, %v343, 0.0
        %350 = vrot.lane.b32.xlu0 %v223, 112
        %v351 = vpop.permute.xlu0 %350
        %352 = vrot.lane.b32.xlu0 %v225, 112
        %v353 = vpop.permute.xlu0 %352
        %354 = vrot.lane.b32.xlu0 %v224, 112
        %v355 = vpop.permute.xlu0 %354
        %356 = vrot.lane.b32.xlu0 %v226, 112
        %v357 = vpop.permute.xlu0 %356
        %vm358 = vcmp.lt.s32.totalorder %v228, 112
        %v359 = vsel %vm358, %v351, %v355
        %v360 = vsel %vm358, %v353, %v357
        %v361 = vsel %vm358, %v355, %v351
        %v362 = vsel %vm358, %v357, %v353
        %v363 = vsel %vm240, %v359, 0.0
        %v364 = vsel %vm241, %v361, 0.0
        %v365 = vsel %vm240, %v360, 0.0
        %v366 = vsel %vm241, %v362, 0.0
        %367 = vrot.lane.b32.xlu0 %v223, 111
        %v368 = vpop.permute.xlu0 %367
        %369 = vrot.lane.b32.xlu0 %v225, 111
        %v370 = vpop.permute.xlu0 %369
        %371 = vrot.lane.b32.xlu0 %v224, 111
        %v372 = vpop.permute.xlu0 %371
        %373 = vrot.lane.b32.xlu0 %v226, 111
        %v374 = vpop.permute.xlu0 %373
        %vm375 = vcmp.lt.s32.totalorder %v228, 111
        %v376 = vsel %vm375, %v368, %v372
        %v377 = vsel %vm375, %v370, %v374
        %v378 = vsel %vm375, %v372, %v368
        %v379 = vsel %vm375, %v374, %v370
        %vm380 = vmand %vm240, %vm236
        %vm381 = vmand %vm241, %vm237
        %v382 = vsel %vm380, %v376, 0.0
        %v383 = vsel %vm381, %v378, 0.0
        %v384 = vsel %vm380, %v377, 0.0
        %v385 = vsel %vm381, %v379, 0.0
        %v386 = vpack.c.bf16 %v259, %v257
        %v387 = vpack.c.bf16 %v260, %v258
        %v388 = vpack.c.bf16 %v276, %v274
        %v389 = vpack.c.bf16 %v277, %v275
        %v390 = vpack.c.bf16 %v295, %v293
        %v391 = vpack.c.bf16 %v296, %v294
        %v392 = vpack.c.bf16 %v312, %v310
        %v393 = vpack.c.bf16 %v313, %v311
        %v394 = vpack.c.bf16 %v225, %v223
        %v395 = vpack.c.bf16 %v226, %v224
        %v396 = vpack.c.bf16 %v329, %v327
        %v397 = vpack.c.bf16 %v330, %v328
        %v398 = vpack.c.bf16 %v348, %v346
        %v399 = vpack.c.bf16 %v349, %v347
        %v400 = vpack.c.bf16 %v365, %v363
        %v401 = vpack.c.bf16 %v366, %v364
        %v402 = vpack.c.bf16 %v384, %v382
        %v403 = vpack.c.bf16 %v385, %v383
        %v404 = vld [vmem:[%s1] sm:$0xff]
        %v405 = vld [vmem:[%s1 + $0x8] sm:$0xff]
        %v406 = vld [vmem:[%s2] sm:$0xff]
        %v407 = vld [vmem:[%s2 + $0x8] sm:$0xff]
        %409 = vset.pattern.permute.xlu0 0
        %410 = vperm.xlu0 %409, %v406
        %v411 = vpop.permute.xlu0 %410
        %414 = vset.pattern.permute.xlu0 0
        %415 = vperm.xlu0 %414, %v407
        %v416 = vpop.permute.xlu0 %415
        %v420 = vunpack.c.l.b16 %v404
        %v421 = vunpack.c.h.b16 %v404
        %v422 = vunpack.c.l.b16 %v405
        %v423 = vunpack.c.h.b16 %v405
        %v424 = vpack.c.b16 %v422, %v420
        %v425 = vpack.c.b16 %v423, %v421
        %vm427 = vcmask 130048
        %v429 = vsel %vm427, %v425, 0
        %431 = vmatprep.subr.bf16.mxu0 %v401
        %432 = vmatpush1.bf16.msra.mxu0 %v400
        %433 = vmatprep.subr.bf16.mxu0 %v399
        %434 = vmatpush1.bf16.msra.mxu0 %v398
        %435 = vmatprep.subr.bf16.mxu0 %v397
        %436 = vmatpush1.bf16.msra.mxu0 %v396
        %437 = vmatprep.subr.bf16.mxu0 %v395
        %438 = vmatpush1.bf16.msra.mxu0 %v394
        %439 = vmatprep.subr.bf16.mxu0 %v393
        %440 = vmatpush1.bf16.msra.mxu0 %v392
        %441 = vmatprep.subr.bf16.mxu0 %v391
        %442 = vmatpush1.bf16.msra.mxu0 %v390
        %443 = vmatprep.subr.bf16.mxu0 %v389
        %444 = vmatpush1.bf16.msra.mxu0 %v388
        %445 = vmatprep.subr.bf16.mxu0 %v387
        %446 = vmatpush1.bf16.msra.mxu0 %v386
        %447 = vmatprep.subr.bf16.mxu0 0
        %448 = vmatpush2.bf16.msra.mxu0 0
        %449 = vmatprep.subr.bf16.mxu0 0
        %450 = vmatpush2.bf16.msra.mxu0 0
        %451 = vmatprep.subr.bf16.mxu0 0
        %452 = vmatpush2.bf16.msra.mxu0 0
        %453 = vmatprep.subr.bf16.mxu0 0
        %454 = vmatpush2.bf16.msra.mxu0 0
        %455 = vmatprep.subr.bf16.mxu0 0
        %456 = vmatpush2.bf16.msra.mxu0 0
        %457 = vmatprep.subr.bf16.mxu0 0
        %458 = vmatpush2.bf16.msra.mxu0 0
        %459 = vmatprep.subr.bf16.mxu0 0
        %460 = vmatpush2.bf16.msra.mxu0 0
        %461 = vmatprep.subr.bf16.mxu0 %v403
        %462 = vmatpush2.bf16.msra.mxu0 %v402
        %463 = vmatprep.mubr.bf16.mxu0 %v429
        %464 = vmatmul.mubr.bf16.gmra.mxu0 %v424
        %v465 = vpop.f32.mrf.mxu0
        %v466 = vadd.f32 %v411, %v465
        %v467 = vpop.f32.mrf.mxu0
        %v468 = vadd.f32 %v411, %v467
        %v469 = vpop.f32.mrf.mxu0
        %v470 = vadd.f32 %v416, %v469
        %v471 = vpop.f32.mrf.mxu0
        %v472 = vadd.f32 %v416, %v471
        %473 = vdwg.mxu0
        %v474 = vmax.f32 %v466, 0.0
        %v475 = vmax.f32 %v468, 0.0
        %v476 = vmax.f32 %v470, 0.0
        %v477 = vmax.f32 %v472, 0.0
        %478 = vrot.lane.b32.xlu0 %v474, 17
        %v479 = vpop.permute.xlu0 %478
        %480 = vrot.lane.b32.xlu0 %v476, 17
        %v481 = vpop.permute.xlu0 %480
        %482 = vrot.lane.b32.xlu0 %v475, 17
        %v483 = vpop.permute.xlu0 %482
        %484 = vrot.lane.b32.xlu0 %v477, 17
        %v485 = vpop.permute.xlu0 %484
        %v486 = vsel %vm250, %v479, %v483
        %v487 = vsel %vm250, %v481, %v485
        %v488 = vsel %vm250, %v483, %v479
        %v489 = vsel %vm250, %v485, %v481
        %v490 = vsel %vm255, %v488, 0.0
        %v491 = vsel %vm256, %v486, 0.0
        %v492 = vsel %vm255, %v489, 0.0
        %v493 = vsel %vm256, %v487, 0.0
        %494 = vrot.lane.b32.xlu0 %v474, 16
        %v495 = vpop.permute.xlu0 %494
        %496 = vrot.lane.b32.xlu0 %v476, 16
        %v497 = vpop.permute.xlu0 %496
        %498 = vrot.lane.b32.xlu0 %v475, 16
        %v499 = vpop.permute.xlu0 %498
        %500 = vrot.lane.b32.xlu0 %v477, 16
        %v501 = vpop.permute.xlu0 %500
        %v502 = vsel %vm269, %v495, %v499
        %v503 = vsel %vm269, %v497, %v501
        %v504 = vsel %vm269, %v499, %v495
        %v505 = vsel %vm269, %v501, %v497
        %v506 = vsel %vm238, %v504, 0.0
        %v507 = vsel %vm239, %v502, 0.0
        %v508 = vsel %vm238, %v505, 0.0
        %v509 = vsel %vm239, %v503, 0.0
        %510 = vrot.lane.b32.xlu0 %v474, 15
        %v511 = vpop.permute.xlu0 %510
        %512 = vrot.lane.b32.xlu0 %v476, 15
        %v513 = vpop.permute.xlu0 %512
        %514 = vrot.lane.b32.xlu0 %v475, 15
        %v515 = vpop.permute.xlu0 %514
        %516 = vrot.lane.b32.xlu0 %v477, 15
        %v517 = vpop.permute.xlu0 %516
        %v518 = vsel %vm286, %v511, %v515
        %v519 = vsel %vm286, %v513, %v517
        %v520 = vsel %vm286, %v515, %v511
        %v521 = vsel %vm286, %v517, %v513
        %v522 = vsel %vm291, %v520, 0.0
        %v523 = vsel %vm292, %v518, 0.0
        %v524 = vsel %vm291, %v521, 0.0
        %v525 = vsel %vm292, %v519, 0.0
        %526 = vrot.lane.b32.xlu0 %v474, 1
        %v527 = vpop.permute.xlu0 %526
        %528 = vrot.lane.b32.xlu0 %v476, 1
        %v529 = vpop.permute.xlu0 %528
        %530 = vrot.lane.b32.xlu0 %v475, 1
        %v531 = vpop.permute.xlu0 %530
        %532 = vrot.lane.b32.xlu0 %v477, 1
        %v533 = vpop.permute.xlu0 %532
        %v534 = vsel %vm305, %v527, %v531
        %v535 = vsel %vm305, %v529, %v533
        %v536 = vsel %vm305, %v531, %v527
        %v537 = vsel %vm305, %v533, %v529
        %v538 = vsel %vm234, %v536, 0.0
        %v539 = vsel %vm235, %v534, 0.0
        %v540 = vsel %vm234, %v537, 0.0
        %v541 = vsel %vm235, %v535, 0.0
        %542 = vrot.lane.b32.xlu0 %v474, 127
        %v543 = vpop.permute.xlu0 %542
        %544 = vrot.lane.b32.xlu0 %v476, 127
        %v545 = vpop.permute.xlu0 %544
        %546 = vrot.lane.b32.xlu0 %v475, 127
        %v547 = vpop.permute.xlu0 %546
        %548 = vrot.lane.b32.xlu0 %v477, 127
        %v549 = vpop.permute.xlu0 %548
        %v550 = vsel %vm322, %v543, %v547
        %v551 = vsel %vm322, %v545, %v549
        %v552 = vsel %vm322, %v547, %v543
        %v553 = vsel %vm322, %v549, %v545
        %v554 = vsel %vm236, %v550, 0.0
        %v555 = vsel %vm237, %v552, 0.0
        %v556 = vsel %vm236, %v551, 0.0
        %v557 = vsel %vm237, %v553, 0.0
        %558 = vrot.lane.b32.xlu0 %v474, 113
        %v559 = vpop.permute.xlu0 %558
        %560 = vrot.lane.b32.xlu0 %v476, 113
        %v561 = vpop.permute.xlu0 %560
        %562 = vrot.lane.b32.xlu0 %v475, 113
        %v563 = vpop.permute.xlu0 %562
        %564 = vrot.lane.b32.xlu0 %v477, 113
        %v565 = vpop.permute.xlu0 %564
        %v566 = vsel %vm339, %v559, %v563
        %v567 = vsel %vm339, %v561, %v565
        %v568 = vsel %vm339, %v563, %v559
        %v569 = vsel %vm339, %v565, %v561
        %v570 = vsel %vm344, %v566, 0.0
        %v571 = vsel %vm345, %v568, 0.0
        %v572 = vsel %vm344, %v567, 0.0
        %v573 = vsel %vm345, %v569, 0.0
        %574 = vrot.lane.b32.xlu0 %v474, 112
        %v575 = vpop.permute.xlu0 %574
        %576 = vrot.lane.b32.xlu0 %v476, 112
        %v577 = vpop.permute.xlu0 %576
        %578 = vrot.lane.b32.xlu0 %v475, 112
        %v579 = vpop.permute.xlu0 %578
        %580 = vrot.lane.b32.xlu0 %v477, 112
        %v581 = vpop.permute.xlu0 %580
        %v582 = vsel %vm358, %v575, %v579
        %v583 = vsel %vm358, %v577, %v581
        %v584 = vsel %vm358, %v579, %v575
        %v585 = vsel %vm358, %v581, %v577
        %v586 = vsel %vm240, %v582, 0.0
        %v587 = vsel %vm241, %v584, 0.0
        %v588 = vsel %vm240, %v583, 0.0
        %v589 = vsel %vm241, %v585, 0.0
        %590 = vrot.lane.b32.xlu0 %v474, 111
        %v591 = vpop.permute.xlu0 %590
        %592 = vrot.lane.b32.xlu0 %v476, 111
        %v593 = vpop.permute.xlu0 %592
        %594 = vrot.lane.b32.xlu0 %v475, 111
        %v595 = vpop.permute.xlu0 %594
        %596 = vrot.lane.b32.xlu0 %v477, 111
        %v597 = vpop.permute.xlu0 %596
        %v598 = vsel %vm375, %v591, %v595
        %v599 = vsel %vm375, %v593, %v597
        %v600 = vsel %vm375, %v595, %v591
        %v601 = vsel %vm375, %v597, %v593
        %v602 = vsel %vm380, %v598, 0.0
        %v603 = vsel %vm381, %v600, 0.0
        %v604 = vsel %vm380, %v599, 0.0
        %v605 = vsel %vm381, %v601, 0.0
        %v606 = vpack.c.bf16 %v492, %v490
        %v607 = vpack.c.bf16 %v493, %v491
        %v608 = vpack.c.bf16 %v508, %v506
        %v609 = vpack.c.bf16 %v509, %v507
        %v610 = vpack.c.bf16 %v524, %v522
        %v611 = vpack.c.bf16 %v525, %v523
        %v612 = vpack.c.bf16 %v540, %v538
        %v613 = vpack.c.bf16 %v541, %v539
        %v614 = vpack.c.bf16 %v476, %v474
        %v615 = vpack.c.bf16 %v477, %v475
        %v616 = vpack.c.bf16 %v556, %v554
        %v617 = vpack.c.bf16 %v557, %v555
        %v618 = vpack.c.bf16 %v572, %v570
        %v619 = vpack.c.bf16 %v573, %v571
        %v620 = vpack.c.bf16 %v588, %v586
        %v621 = vpack.c.bf16 %v589, %v587
        %v622 = vpack.c.bf16 %v604, %v602
        %v623 = vpack.c.bf16 %v605, %v603
        %s624 = scalar_lea.vmem %s1, 16
        %v625 = vld [vmem:[%s624] sm:$0xff]
        %v626 = vld [vmem:[%s624 + $0x8] sm:$0xff]
        %s627 = scalar_lea.vmem %s2, 16
        %v628 = vld [vmem:[%s627] sm:$0xff]
        %v629 = vld [vmem:[%s627 + $0x8] sm:$0xff]
        %631 = vset.pattern.permute.xlu0 0
        %632 = vperm.xlu0 %631, %v628
        %v633 = vpop.permute.xlu0 %632
        %636 = vset.pattern.permute.xlu0 0
        %637 = vperm.xlu0 %636, %v629
        %v638 = vpop.permute.xlu0 %637
        %v642 = vunpack.c.l.b16 %v625
        %v643 = vunpack.c.h.b16 %v625
        %v644 = vunpack.c.l.b16 %v626
        %v645 = vunpack.c.h.b16 %v626
        %v646 = vpack.c.b16 %v644, %v642
        %v647 = vpack.c.b16 %v645, %v643
        %v650 = vsel %vm427, %v647, 0
        %652 = vmatprep.subr.bf16.mxu0 %v621
        %653 = vmatpush1.bf16.msra.mxu0 %v620
        %654 = vmatprep.subr.bf16.mxu0 %v619
        %655 = vmatpush1.bf16.msra.mxu0 %v618
        %656 = vmatprep.subr.bf16.mxu0 %v617
        %657 = vmatpush1.bf16.msra.mxu0 %v616
        %658 = vmatprep.subr.bf16.mxu0 %v615
        %659 = vmatpush1.bf16.msra.mxu0 %v614
        %660 = vmatprep.subr.bf16.mxu0 %v613
        %661 = vmatpush1.bf16.msra.mxu0 %v612
        %662 = vmatprep.subr.bf16.mxu0 %v611
        %663 = vmatpush1.bf16.msra.mxu0 %v610
        %664 = vmatprep.subr.bf16.mxu0 %v609
        %665 = vmatpush1.bf16.msra.mxu0 %v608
        %666 = vmatprep.subr.bf16.mxu0 %v607
        %667 = vmatpush1.bf16.msra.mxu0 %v606
        %668 = vmatprep.subr.bf16.mxu0 0
        %669 = vmatpush2.bf16.msra.mxu0 0
        %670 = vmatprep.subr.bf16.mxu0 0
        %671 = vmatpush2.bf16.msra.mxu0 0
        %672 = vmatprep.subr.bf16.mxu0 0
        %673 = vmatpush2.bf16.msra.mxu0 0
        %674 = vmatprep.subr.bf16.mxu0 0
        %675 = vmatpush2.bf16.msra.mxu0 0
        %676 = vmatprep.subr.bf16.mxu0 0
        %677 = vmatpush2.bf16.msra.mxu0 0
        %678 = vmatprep.subr.bf16.mxu0 0
        %679 = vmatpush2.bf16.msra.mxu0 0
        %680 = vmatprep.subr.bf16.mxu0 0
        %681 = vmatpush2.bf16.msra.mxu0 0
        %682 = vmatprep.subr.bf16.mxu0 %v623
        %683 = vmatpush2.bf16.msra.mxu0 %v622
        %684 = vmatprep.mubr.bf16.mxu0 %v650
        %685 = vmatmul.mubr.bf16.gmra.mxu0 %v646
        %v686 = vpop.f32.mrf.mxu0
        %v687 = vadd.f32 %v633, %v686
        %v688 = vpop.f32.mrf.mxu0
        %v689 = vadd.f32 %v633, %v688
        %v690 = vpop.f32.mrf.mxu0
        %v691 = vadd.f32 %v638, %v690
        %v692 = vpop.f32.mrf.mxu0
        %v693 = vadd.f32 %v638, %v692
        %694 = vdwg.mxu0
        %v695 = vmax.f32 %v687, 0.0
        %v696 = vmax.f32 %v689, 0.0
        %v697 = vmax.f32 %v691, 0.0
        %v698 = vmax.f32 %v693, 0.0
        %699 = vrot.lane.b32.xlu0 %v695, 17
        %v700 = vpop.permute.xlu0 %699
        %701 = vrot.lane.b32.xlu0 %v697, 17
        %v702 = vpop.permute.xlu0 %701
        %703 = vrot.lane.b32.xlu0 %v696, 17
        %v704 = vpop.permute.xlu0 %703
        %705 = vrot.lane.b32.xlu0 %v698, 17
        %v706 = vpop.permute.xlu0 %705
        %v707 = vsel %vm250, %v700, %v704
        %v708 = vsel %vm250, %v702, %v706
        %v709 = vsel %vm250, %v704, %v700
        %v710 = vsel %vm250, %v706, %v702
        %v711 = vsel %vm255, %v709, 0.0
        %v712 = vsel %vm256, %v707, 0.0
        %v713 = vsel %vm255, %v710, 0.0
        %v714 = vsel %vm256, %v708, 0.0
        %715 = vrot.lane.b32.xlu0 %v695, 16
        %v716 = vpop.permute.xlu0 %715
        %717 = vrot.lane.b32.xlu0 %v697, 16
        %v718 = vpop.permute.xlu0 %717
        %719 = vrot.lane.b32.xlu0 %v696, 16
        %v720 = vpop.permute.xlu0 %719
        %721 = vrot.lane.b32.xlu0 %v698, 16
        %v722 = vpop.permute.xlu0 %721
        %v723 = vsel %vm269, %v716, %v720
        %v724 = vsel %vm269, %v718, %v722
        %v725 = vsel %vm269, %v720, %v716
        %v726 = vsel %vm269, %v722, %v718
        %v727 = vsel %vm238, %v725, 0.0
        %v728 = vsel %vm239, %v723, 0.0
        %v729 = vsel %vm238, %v726, 0.0
        %v730 = vsel %vm239, %v724, 0.0
        %731 = vrot.lane.b32.xlu0 %v695, 15
        %v732 = vpop.permute.xlu0 %731
        %733 = vrot.lane.b32.xlu0 %v697, 15
        %v734 = vpop.permute.xlu0 %733
        %735 = vrot.lane.b32.xlu0 %v696, 15
        %v736 = vpop.permute.xlu0 %735
        %737 = vrot.lane.b32.xlu0 %v698, 15
        %v738 = vpop.permute.xlu0 %737
        %v739 = vsel %vm286, %v732, %v736
        %v740 = vsel %vm286, %v734, %v738
        %v741 = vsel %vm286, %v736, %v732
        %v742 = vsel %vm286, %v738, %v734
        %v743 = vsel %vm291, %v741, 0.0
        %v744 = vsel %vm292, %v739, 0.0
        %v745 = vsel %vm291, %v742, 0.0
        %v746 = vsel %vm292, %v740, 0.0
        %747 = vrot.lane.b32.xlu0 %v695, 1
        %v748 = vpop.permute.xlu0 %747
        %749 = vrot.lane.b32.xlu0 %v697, 1
        %v750 = vpop.permute.xlu0 %749
        %751 = vrot.lane.b32.xlu0 %v696, 1
        %v752 = vpop.permute.xlu0 %751
        %753 = vrot.lane.b32.xlu0 %v698, 1
        %v754 = vpop.permute.xlu0 %753
        %v755 = vsel %vm305, %v748, %v752
        %v756 = vsel %vm305, %v750, %v754
        %v757 = vsel %vm305, %v752, %v748
        %v758 = vsel %vm305, %v754, %v750
        %v759 = vsel %vm234, %v757, 0.0
        %v760 = vsel %vm235, %v755, 0.0
        %v761 = vsel %vm234, %v758, 0.0
        %v762 = vsel %vm235, %v756, 0.0
        %763 = vrot.lane.b32.xlu0 %v695, 127
        %v764 = vpop.permute.xlu0 %763
        %765 = vrot.lane.b32.xlu0 %v697, 127
        %v766 = vpop.permute.xlu0 %765
        %767 = vrot.lane.b32.xlu0 %v696, 127
        %v768 = vpop.permute.xlu0 %767
        %769 = vrot.lane.b32.xlu0 %v698, 127
        %v770 = vpop.permute.xlu0 %769
        %v771 = vsel %vm322, %v764, %v768
        %v772 = vsel %vm322, %v766, %v770
        %v773 = vsel %vm322, %v768, %v764
        %v774 = vsel %vm322, %v770, %v766
        %v775 = vsel %vm236, %v771, 0.0
        %v776 = vsel %vm237, %v773, 0.0
        %v777 = vsel %vm236, %v772, 0.0
        %v778 = vsel %vm237, %v774, 0.0
        %779 = vrot.lane.b32.xlu0 %v695, 113
        %v780 = vpop.permute.xlu0 %779
        %781 = vrot.lane.b32.xlu0 %v697, 113
        %v782 = vpop.permute.xlu0 %781
        %783 = vrot.lane.b32.xlu0 %v696, 113
        %v784 = vpop.permute.xlu0 %783
        %785 = vrot.lane.b32.xlu0 %v698, 113
        %v786 = vpop.permute.xlu0 %785
        %v787 = vsel %vm339, %v780, %v784
        %v788 = vsel %vm339, %v782, %v786
        %v789 = vsel %vm339, %v784, %v780
        %v790 = vsel %vm339, %v786, %v782
        %v791 = vsel %vm344, %v787, 0.0
        %v792 = vsel %vm345, %v789, 0.0
        %v793 = vsel %vm344, %v788, 0.0
        %v794 = vsel %vm345, %v790, 0.0
        %795 = vrot.lane.b32.xlu0 %v695, 112
        %v796 = vpop.permute.xlu0 %795
        %797 = vrot.lane.b32.xlu0 %v697, 112
        %v798 = vpop.permute.xlu0 %797
        %799 = vrot.lane.b32.xlu0 %v696, 112
        %v800 = vpop.permute.xlu0 %799
        %801 = vrot.lane.b32.xlu0 %v698, 112
        %v802 = vpop.permute.xlu0 %801
        %v803 = vsel %vm358, %v796, %v800
        %v804 = vsel %vm358, %v798, %v802
        %v805 = vsel %vm358, %v800, %v796
        %v806 = vsel %vm358, %v802, %v798
        %v807 = vsel %vm240, %v803, 0.0
        %v808 = vsel %vm241, %v805, 0.0
        %v809 = vsel %vm240, %v804, 0.0
        %v810 = vsel %vm241, %v806, 0.0
        %811 = vrot.lane.b32.xlu0 %v695, 111
        %v812 = vpop.permute.xlu0 %811
        %813 = vrot.lane.b32.xlu0 %v697, 111
        %v814 = vpop.permute.xlu0 %813
        %815 = vrot.lane.b32.xlu0 %v696, 111
        %v816 = vpop.permute.xlu0 %815
        %817 = vrot.lane.b32.xlu0 %v698, 111
        %v818 = vpop.permute.xlu0 %817
        %v819 = vsel %vm375, %v812, %v816
        %v820 = vsel %vm375, %v814, %v818
        %v821 = vsel %vm375, %v816, %v812
        %v822 = vsel %vm375, %v818, %v814
        %v823 = vsel %vm380, %v819, 0.0
        %v824 = vsel %vm381, %v821, 0.0
        %v825 = vsel %vm380, %v820, 0.0
        %v826 = vsel %vm381, %v822, 0.0
        %v827 = vpack.c.bf16 %v713, %v711
        %v828 = vpack.c.bf16 %v714, %v712
        %v829 = vpack.c.bf16 %v729, %v727
        %v830 = vpack.c.bf16 %v730, %v728
        %v831 = vpack.c.bf16 %v745, %v743
        %v832 = vpack.c.bf16 %v746, %v744
        %v833 = vpack.c.bf16 %v761, %v759
        %v834 = vpack.c.bf16 %v762, %v760
        %v835 = vpack.c.bf16 %v697, %v695
        %v836 = vpack.c.bf16 %v698, %v696
        %v837 = vpack.c.bf16 %v777, %v775
        %v838 = vpack.c.bf16 %v778, %v776
        %v839 = vpack.c.bf16 %v793, %v791
        %v840 = vpack.c.bf16 %v794, %v792
        %v841 = vpack.c.bf16 %v809, %v807
        %v842 = vpack.c.bf16 %v810, %v808
        %v843 = vpack.c.bf16 %v825, %v823
        %v844 = vpack.c.bf16 %v826, %v824
        %s845 = scalar_lea.vmem %s1, 32
        %v846 = vld [vmem:[%s845] sm:$0xff]
        %v847 = vld [vmem:[%s845 + $0x8] sm:$0xff]
        %s848 = scalar_lea.vmem %s2, 32
        %v849 = vld [vmem:[%s848] sm:$0xff]
        %v850 = vld [vmem:[%s848 + $0x8] sm:$0xff]
        %852 = vset.pattern.permute.xlu0 0
        %853 = vperm.xlu0 %852, %v849
        %v854 = vpop.permute.xlu0 %853
        %857 = vset.pattern.permute.xlu0 0
        %858 = vperm.xlu0 %857, %v850
        %v859 = vpop.permute.xlu0 %858
        %v863 = vunpack.c.l.b16 %v846
        %v864 = vunpack.c.h.b16 %v846
        %v865 = vunpack.c.l.b16 %v847
        %v866 = vunpack.c.h.b16 %v847
        %v867 = vpack.c.b16 %v865, %v863
        %v868 = vpack.c.b16 %v866, %v864
        %v871 = vsel %vm427, %v868, 0
        %873 = vmatprep.subr.bf16.mxu0 %v842
        %874 = vmatpush1.bf16.msra.mxu0 %v841
        %875 = vmatprep.subr.bf16.mxu0 %v840
        %876 = vmatpush1.bf16.msra.mxu0 %v839
        %877 = vmatprep.subr.bf16.mxu0 %v838
        %878 = vmatpush1.bf16.msra.mxu0 %v837
        %879 = vmatprep.subr.bf16.mxu0 %v836
        %880 = vmatpush1.bf16.msra.mxu0 %v835
        %881 = vmatprep.subr.bf16.mxu0 %v834
        %882 = vmatpush1.bf16.msra.mxu0 %v833
        %883 = vmatprep.subr.bf16.mxu0 %v832
        %884 = vmatpush1.bf16.msra.mxu0 %v831
        %885 = vmatprep.subr.bf16.mxu0 %v830
        %886 = vmatpush1.bf16.msra.mxu0 %v829
        %887 = vmatprep.subr.bf16.mxu0 %v828
        %888 = vmatpush1.bf16.msra.mxu0 %v827
        %889 = vmatprep.subr.bf16.mxu0 0
        %890 = vmatpush2.bf16.msra.mxu0 0
        %891 = vmatprep.subr.bf16.mxu0 0
        %892 = vmatpush2.bf16.msra.mxu0 0
        %893 = vmatprep.subr.bf16.mxu0 0
        %894 = vmatpush2.bf16.msra.mxu0 0
        %895 = vmatprep.subr.bf16.mxu0 0
        %896 = vmatpush2.bf16.msra.mxu0 0
        %897 = vmatprep.subr.bf16.mxu0 0
        %898 = vmatpush2.bf16.msra.mxu0 0
        %899 = vmatprep.subr.bf16.mxu0 0
        %900 = vmatpush2.bf16.msra.mxu0 0
        %901 = vmatprep.subr.bf16.mxu0 0
        %902 = vmatpush2.bf16.msra.mxu0 0
        %903 = vmatprep.subr.bf16.mxu0 %v844
        %904 = vmatpush2.bf16.msra.mxu0 %v843
        %905 = vmatprep.mubr.bf16.mxu0 %v871
        %906 = vmatmul.mubr.bf16.gmra.mxu0 %v867
        %v907 = vpop.f32.mrf.mxu0
        %v908 = vadd.f32 %v854, %v907
        %v909 = vpop.f32.mrf.mxu0
        %v910 = vadd.f32 %v854, %v909
        %v911 = vpop.f32.mrf.mxu0
        %v912 = vadd.f32 %v859, %v911
        %v913 = vpop.f32.mrf.mxu0
        %v914 = vadd.f32 %v859, %v913
        %915 = vdwg.mxu0
        %v916 = vmax.f32 %v908, 0.0
        %v917 = vmax.f32 %v910, 0.0
        %v918 = vmax.f32 %v912, 0.0
        %v919 = vmax.f32 %v914, 0.0
        %920 = vrot.lane.b32.xlu0 %v916, 127
        %v921 = vpop.permute.xlu0 %920
        %922 = vrot.lane.b32.xlu0 %v918, 127
        %v923 = vpop.permute.xlu0 %922
        %924 = vrot.lane.b32.xlu0 %v917, 127
        %v925 = vpop.permute.xlu0 %924
        %926 = vrot.lane.b32.xlu0 %v919, 127
        %v927 = vpop.permute.xlu0 %926
        %v928 = vsel %vm322, %v921, %v925
        %v929 = vsel %vm322, %v923, %v927
        %v930 = vsel %vm322, %v925, %v921
        %v931 = vsel %vm322, %v927, %v923
        %932 = vrot.lane.b32.xlu0 %v916, 112
        %v933 = vpop.permute.xlu0 %932
        %934 = vrot.lane.b32.xlu0 %v918, 112
        %v935 = vpop.permute.xlu0 %934
        %936 = vrot.lane.b32.xlu0 %v917, 112
        %v937 = vpop.permute.xlu0 %936
        %938 = vrot.lane.b32.xlu0 %v919, 112
        %v939 = vpop.permute.xlu0 %938
        %v940 = vsel %vm358, %v933, %v937
        %v941 = vsel %vm358, %v935, %v939
        %v942 = vsel %vm358, %v937, %v933
        %v943 = vsel %vm358, %v939, %v935
        %944 = vrot.lane.b32.xlu0 %v916, 111
        %v945 = vpop.permute.xlu0 %944
        %946 = vrot.lane.b32.xlu0 %v918, 111
        %v947 = vpop.permute.xlu0 %946
        %948 = vrot.lane.b32.xlu0 %v917, 111
        %v949 = vpop.permute.xlu0 %948
        %950 = vrot.lane.b32.xlu0 %v919, 111
        %v951 = vpop.permute.xlu0 %950
        %v952 = vsel %vm375, %v945, %v949
        %v953 = vsel %vm375, %v947, %v951
        %v954 = vsel %vm375, %v949, %v945
        %v955 = vsel %vm375, %v951, %v947
        %v956 = vmax.f32 %v916, %v928
        %v957 = vmax.f32 %v917, %v930
        %v958 = vmax.f32 %v918, %v929
        %v959 = vmax.f32 %v919, %v931
        %v960 = vmax.f32 %v940, %v952
        %v961 = vmax.f32 %v942, %v954
        %v962 = vmax.f32 %v941, %v953
        %v963 = vmax.f32 %v943, %v955
        %v964 = vmax.f32 %v956, %v960
        %v965 = vmax.f32 %v957, %v961
        %v966 = vmax.f32 %v958, %v962
        %v967 = vmax.f32 %v959, %v963
        %v968 = vlaneseq
        %v969 = vshrl.u32 %v968, 7
        %v970 = vadd.s32 %v969, 8
        %v971 = vadd.s32 %v969, 16
        %v972 = vadd.s32 %v969, 24
        %v973 = vadd.s32 %v969, 32
        %v974 = vadd.s32 %v969, 40
        %v975 = vadd.s32 %v969, 48
        %v976 = vadd.s32 %v969, 56
        %v977 = vadd.s32 %v969, 64
        %v978 = vadd.s32 %v969, 72
        %v979 = vadd.s32 %v969, 80
        %v980 = vadd.s32 %v969, 88
        %v981 = vadd.s32 %v969, 96
        %v982 = vadd.s32 %v969, 104
        %v983 = vadd.s32 %v969, 112
        %v984 = vadd.s32 %v969, 120
        %v985 = vadd.s32 %v969, 128
        %v986 = vadd.s32 %v969, 136
        %v987 = vadd.s32 %v969, 144
        %v988 = vadd.s32 %v969, 152
        %v989 = vadd.s32 %v969, 160
        %v990 = vadd.s32 %v969, 168
        %v991 = vadd.s32 %v969, 176
        %v992 = vadd.s32 %v969, 184
        %v993 = vadd.s32 %v969, 192
        %v994 = vadd.s32 %v969, 200
        %v995 = vadd.s32 %v969, 208
        %v996 = vadd.s32 %v969, 216
        %v997 = vadd.s32 %v969, 224
        %v998 = vadd.s32 %v969, 232
        %v999 = vadd.s32 %v969, 240
        %v1000 = vadd.s32 %v969, 248
        %v1001 = vshra.s32 %v228, 3
        %v1002 = vand.u32 %v228, 7
        %v1003 = vmul.u32 %v1001, 32
        %v1004 = vmul.u32 %v1002, 2
        %v1005 = vadd.s32 %v1003, %v1004
        %vm1006 = vcmp.lt.s32.totalorder %v228, 64
        %v1007 = vsel %vm1006, %v1005, 4294967295
        %vm1008 = vcmp.eq.s32.totalorder %v969, %v1007
        %vm1009 = vcmp.eq.s32.totalorder %v970, %v1007
        %vm1010 = vcmp.eq.s32.totalorder %v971, %v1007
        %vm1011 = vcmp.eq.s32.totalorder %v972, %v1007
        %vm1012 = vcmp.eq.s32.totalorder %v973, %v1007
        %vm1013 = vcmp.eq.s32.totalorder %v974, %v1007
        %vm1014 = vcmp.eq.s32.totalorder %v975, %v1007
        %vm1015 = vcmp.eq.s32.totalorder %v976, %v1007
        %vm1016 = vcmp.eq.s32.totalorder %v977, %v1007
        %vm1017 = vcmp.eq.s32.totalorder %v978, %v1007
        %vm1018 = vcmp.eq.s32.totalorder %v979, %v1007
        %vm1019 = vcmp.eq.s32.totalorder %v980, %v1007
        %vm1020 = vcmp.eq.s32.totalorder %v981, %v1007
        %vm1021 = vcmp.eq.s32.totalorder %v982, %v1007
        %vm1022 = vcmp.eq.s32.totalorder %v983, %v1007
        %vm1023 = vcmp.eq.s32.totalorder %v984, %v1007
        %vm1024 = vcmp.eq.s32.totalorder %v985, %v1007
        %vm1025 = vcmp.eq.s32.totalorder %v986, %v1007
        %vm1026 = vcmp.eq.s32.totalorder %v987, %v1007
        %vm1027 = vcmp.eq.s32.totalorder %v988, %v1007
        %vm1028 = vcmp.eq.s32.totalorder %v989, %v1007
        %vm1029 = vcmp.eq.s32.totalorder %v990, %v1007
        %vm1030 = vcmp.eq.s32.totalorder %v991, %v1007
        %vm1031 = vcmp.eq.s32.totalorder %v992, %v1007
        %vm1032 = vcmp.eq.s32.totalorder %v993, %v1007
        %vm1033 = vcmp.eq.s32.totalorder %v994, %v1007
        %vm1034 = vcmp.eq.s32.totalorder %v995, %v1007
        %vm1035 = vcmp.eq.s32.totalorder %v996, %v1007
        %vm1036 = vcmp.eq.s32.totalorder %v997, %v1007
        %vm1037 = vcmp.eq.s32.totalorder %v998, %v1007
        %vm1038 = vcmp.eq.s32.totalorder %v999, %v1007
        %vm1039 = vcmp.eq.s32.totalorder %v1000, %v1007
        %v1040 = vsel %vm1008, 1.0, 0.0
        %v1041 = vsel %vm1009, 1.0, 0.0
        %v1042 = vsel %vm1010, 1.0, 0.0
        %v1043 = vsel %vm1011, 1.0, 0.0
        %v1044 = vsel %vm1012, 1.0, 0.0
        %v1045 = vsel %vm1013, 1.0, 0.0
        %v1046 = vsel %vm1014, 1.0, 0.0
        %v1047 = vsel %vm1015, 1.0, 0.0
        %v1048 = vsel %vm1016, 1.0, 0.0
        %v1049 = vsel %vm1017, 1.0, 0.0
        %v1050 = vsel %vm1018, 1.0, 0.0
        %v1051 = vsel %vm1019, 1.0, 0.0
        %v1052 = vsel %vm1020, 1.0, 0.0
        %v1053 = vsel %vm1021, 1.0, 0.0
        %v1054 = vsel %vm1022, 1.0, 0.0
        %v1055 = vsel %vm1023, 1.0, 0.0
        %v1056 = vsel %vm1024, 1.0, 0.0
        %v1057 = vsel %vm1025, 1.0, 0.0
        %v1058 = vsel %vm1026, 1.0, 0.0
        %v1059 = vsel %vm1027, 1.0, 0.0
        %v1060 = vsel %vm1028, 1.0, 0.0
        %v1061 = vsel %vm1029, 1.0, 0.0
        %v1062 = vsel %vm1030, 1.0, 0.0
        %v1063 = vsel %vm1031, 1.0, 0.0
        %v1064 = vsel %vm1032, 1.0, 0.0
        %v1065 = vsel %vm1033, 1.0, 0.0
        %v1066 = vsel %vm1034, 1.0, 0.0
        %v1067 = vsel %vm1035, 1.0, 0.0
        %v1068 = vsel %vm1036, 1.0, 0.0
        %v1069 = vsel %vm1037, 1.0, 0.0
        %v1070 = vsel %vm1038, 1.0, 0.0
        %v1071 = vsel %vm1039, 1.0, 0.0
        %1072 = vmatprep.subr.mxu0 0.0
        %1073 = vmatpush1.msra.mxu0 %v1055
        %1074 = vmatprep.subr.mxu0 0.0
        %1075 = vmatpush1.msra.mxu0 %v1054
        %1076 = vmatprep.subr.mxu0 0.0
        %1077 = vmatpush1.msra.mxu0 %v1053
        %1078 = vmatprep.subr.mxu0 0.0
        %1079 = vmatpush1.msra.mxu0 %v1052
        %1080 = vmatprep.subr.mxu0 0.0
        %1081 = vmatpush1.msra.mxu0 %v1051
        %1082 = vmatprep.subr.mxu0 0.0
        %1083 = vmatpush1.msra.mxu0 %v1050
        %1084 = vmatprep.subr.mxu0 0.0
        %1085 = vmatpush1.msra.mxu0 %v1049
        %1086 = vmatprep.subr.mxu0 0.0
        %1087 = vmatpush1.msra.mxu0 %v1048
        %1088 = vmatprep.subr.mxu0 0.0
        %1089 = vmatpush1.msra.mxu0 %v1047
        %1090 = vmatprep.subr.mxu0 0.0
        %1091 = vmatpush1.msra.mxu0 %v1046
        %1092 = vmatprep.subr.mxu0 0.0
        %1093 = vmatpush1.msra.mxu0 %v1045
        %1094 = vmatprep.subr.mxu0 0.0
        %1095 = vmatpush1.msra.mxu0 %v1044
        %1096 = vmatprep.subr.mxu0 0.0
        %1097 = vmatpush1.msra.mxu0 %v1043
        %1098 = vmatprep.subr.mxu0 0.0
        %1099 = vmatpush1.msra.mxu0 %v1042
        %1100 = vmatprep.subr.mxu0 0.0
        %1101 = vmatpush1.msra.mxu0 %v1041
        %1102 = vmatprep.subr.mxu0 0.0
        %1103 = vmatpush1.msra.mxu0 %v1040
        %1104 = vmatprep.subr.mxu0 0.0
        %1105 = vmatpush2.msra.mxu0 %v1071
        %1106 = vmatprep.subr.mxu0 0.0
        %1107 = vmatpush2.msra.mxu0 %v1070
        %1108 = vmatprep.subr.mxu0 0.0
        %1109 = vmatpush2.msra.mxu0 %v1069
        %1110 = vmatprep.subr.mxu0 0.0
        %1111 = vmatpush2.msra.mxu0 %v1068
        %1112 = vmatprep.subr.mxu0 0.0
        %1113 = vmatpush2.msra.mxu0 %v1067
        %1114 = vmatprep.subr.mxu0 0.0
        %1115 = vmatpush2.msra.mxu0 %v1066
        %1116 = vmatprep.subr.mxu0 0.0
        %1117 = vmatpush2.msra.mxu0 %v1065
        %1118 = vmatprep.subr.mxu0 0.0
        %1119 = vmatpush2.msra.mxu0 %v1064
        %1120 = vmatprep.subr.mxu0 0.0
        %1121 = vmatpush2.msra.mxu0 %v1063
        %1122 = vmatprep.subr.mxu0 0.0
        %1123 = vmatpush2.msra.mxu0 %v1062
        %1124 = vmatprep.subr.mxu0 0.0
        %1125 = vmatpush2.msra.mxu0 %v1061
        %1126 = vmatprep.subr.mxu0 0.0
        %1127 = vmatpush2.msra.mxu0 %v1060
        %1128 = vmatprep.subr.mxu0 0.0
        %1129 = vmatpush2.msra.mxu0 %v1059
        %1130 = vmatprep.subr.mxu0 0.0
        %1131 = vmatpush2.msra.mxu0 %v1058
        %1132 = vmatprep.subr.mxu0 0.0
        %1133 = vmatpush2.msra.mxu0 %v1057
        %1134 = vmatprep.subr.mxu0 0.0
        %1135 = vmatpush2.msra.mxu0 %v1056
        %1136 = vmatprep.mubr.f32.mxu0 %v965
        %1137 = vmatmul.mubr.f32.gmra.mxu0 %v964
        %v1138 = vpop.f32.mrf.mxu0
        %v1139 = vadd.f32 0.0, %v1138
        %v1140 = vpop.f32.mrf.mxu0
        %1141 = vmatprep.mubr.f32.mxu0 %v967
        %1142 = vmatmul.mubr.f32.gmra.mxu0 %v966
        %v1143 = vpop.f32.mrf.mxu0
        %v1144 = vadd.f32 0.0, %v1143
        %v1145 = vpop.f32.mrf.mxu0
        %1146 = vdwg.mxu0
        %vm1147 = vcmp.ge.s32.totalorder %v1002, 1
        %vm1148 = vcmp.le.s32.totalorder %v1002, 6
        %vm1149 = vcmp.ge.s32.totalorder %v1001, 1
        %vm1150 = vcmp.le.s32.totalorder %v1001, 6
        %1151 = vrot.lane.b32.xlu0 %v1139, 9
        %v1152 = vpop.permute.xlu0 %1151
        %1153 = vrot.lane.b32.xlu0 %v1144, 9
        %v1154 = vpop.permute.xlu0 %1153
        %vm1155 = vmand %vm1149, %vm1147
        %v1156 = vsel %vm1155, %v1152, 0.0
        %v1157 = vsel %vm1155, %v1154, 0.0
        %1158 = vrot.lane.b32.xlu0 %v1139, 8
        %v1159 = vpop.permute.xlu0 %1158
        %1160 = vrot.lane.b32.xlu0 %v1144, 8
        %v1161 = vpop.permute.xlu0 %1160
        %v1162 = vsel %vm1149, %v1159, 0.0
        %v1163 = vsel %vm1149, %v1161, 0.0
        %1164 = vrot.lane.b32.xlu0 %v1139, 7
        %v1165 = vpop.permute.xlu0 %1164
        %1166 = vrot.lane.b32.xlu0 %v1144, 7
        %v1167 = vpop.permute.xlu0 %1166
        %vm1168 = vmand %vm1149, %vm1148
        %v1169 = vsel %vm1168, %v1165, 0.0
        %v1170 = vsel %vm1168, %v1167, 0.0
        %1171 = vrot.lane.b32.xlu0 %v1139, 1
        %v1172 = vpop.permute.xlu0 %1171
        %1173 = vrot.lane.b32.xlu0 %v1144, 1
        %v1174 = vpop.permute.xlu0 %1173
        %v1175 = vsel %vm1147, %v1172, 0.0
        %v1176 = vsel %vm1147, %v1174, 0.0
        %1177 = vrot.lane.b32.xlu0 %v1139, 127
        %v1178 = vpop.permute.xlu0 %1177
        %1179 = vrot.lane.b32.xlu0 %v1144, 127
        %v1180 = vpop.permute.xlu0 %1179
        %v1181 = vsel %vm1148, %v1178, 0.0
        %v1182 = vsel %vm1148, %v1180, 0.0
        %1183 = vrot.lane.b32.xlu0 %v1139, 121
        %v1184 = vpop.permute.xlu0 %1183
        %1185 = vrot.lane.b32.xlu0 %v1144, 121
        %v1186 = vpop.permute.xlu0 %1185
        %vm1187 = vmand %vm1150, %vm1147
        %v1188 = vsel %vm1187, %v1184, 0.0
        %v1189 = vsel %vm1187, %v1186, 0.0
        %1190 = vrot.lane.b32.xlu0 %v1139, 120
        %v1191 = vpop.permute.xlu0 %1190
        %1192 = vrot.lane.b32.xlu0 %v1144, 120
        %v1193 = vpop.permute.xlu0 %1192
        %v1194 = vsel %vm1150, %v1191, 0.0
        %v1195 = vsel %vm1150, %v1193, 0.0
        %1196 = vrot.lane.b32.xlu0 %v1139, 119
        %v1197 = vpop.permute.xlu0 %1196
        %1198 = vrot.lane.b32.xlu0 %v1144, 119
        %v1199 = vpop.permute.xlu0 %1198
        %vm1200 = vmand %vm1150, %vm1148
        %v1201 = vsel %vm1200, %v1197, 0.0
        %v1202 = vsel %vm1200, %v1199, 0.0
        %v1203 = vpack.c.bf16 %v1157, %v1156
        %v1204 = vpack.c.bf16 %v1163, %v1162
        %v1205 = vpack.c.bf16 %v1170, %v1169
        %v1206 = vpack.c.bf16 %v1176, %v1175
        %v1207 = vpack.c.bf16 %v1144, %v1139
        %v1208 = vpack.c.bf16 %v1182, %v1181
        %v1209 = vpack.c.bf16 %v1189, %v1188
        %v1210 = vpack.c.bf16 %v1195, %v1194
        %v1211 = vpack.c.bf16 %v1202, %v1201
        %s1212 = scalar_lea.vmem %s1, 48
        %v1213 = vld [vmem:[%s1212] sm:$0xff]
        %v1214 = vld [vmem:[%s1212 + $0x8] sm:$0xff]
        %s1215 = scalar_lea.vmem %s2, 48
        %v1216 = vld [vmem:[%s1215] sm:$0xff]
        %v1217 = vld [vmem:[%s1215 + $0x8] sm:$0xff]
        %1219 = vset.pattern.permute.xlu0 0
        %1220 = vperm.xlu0 %1219, %v1216
        %v1221 = vpop.permute.xlu0 %1220
        %1224 = vset.pattern.permute.xlu0 0
        %1225 = vperm.xlu0 %1224, %v1217
        %v1226 = vpop.permute.xlu0 %1225
        %v1230 = vunpack.c.l.b16 %v1213
        %v1231 = vunpack.c.h.b16 %v1213
        %v1232 = vunpack.c.l.b16 %v1214
        %v1233 = vunpack.c.h.b16 %v1214
        %v1234 = vpack.c.b16 %v1232, %v1230
        %v1235 = vpack.c.b16 %v1233, %v1231
        %v1238 = vsel %vm427, %v1235, 0
        %1240 = vmatprep.subr.bf16.mxu0 0
        %1241 = vmatpush1.bf16.msra.mxu0 %v1210
        %1242 = vmatprep.subr.bf16.mxu0 0
        %1243 = vmatpush1.bf16.msra.mxu0 %v1209
        %1244 = vmatprep.subr.bf16.mxu0 0
        %1245 = vmatpush1.bf16.msra.mxu0 %v1208
        %1246 = vmatprep.subr.bf16.mxu0 0
        %1247 = vmatpush1.bf16.msra.mxu0 %v1207
        %1248 = vmatprep.subr.bf16.mxu0 0
        %1249 = vmatpush1.bf16.msra.mxu0 %v1206
        %1250 = vmatprep.subr.bf16.mxu0 0
        %1251 = vmatpush1.bf16.msra.mxu0 %v1205
        %1252 = vmatprep.subr.bf16.mxu0 0
        %1253 = vmatpush1.bf16.msra.mxu0 %v1204
        %1254 = vmatprep.subr.bf16.mxu0 0
        %1255 = vmatpush1.bf16.msra.mxu0 %v1203
        %1256 = vmatprep.subr.bf16.mxu0 0
        %1257 = vmatpush2.bf16.msra.mxu0 0
        %1258 = vmatprep.subr.bf16.mxu0 0
        %1259 = vmatpush2.bf16.msra.mxu0 0
        %1260 = vmatprep.subr.bf16.mxu0 0
        %1261 = vmatpush2.bf16.msra.mxu0 0
        %1262 = vmatprep.subr.bf16.mxu0 0
        %1263 = vmatpush2.bf16.msra.mxu0 0
        %1264 = vmatprep.subr.bf16.mxu0 0
        %1265 = vmatpush2.bf16.msra.mxu0 0
        %1266 = vmatprep.subr.bf16.mxu0 0
        %1267 = vmatpush2.bf16.msra.mxu0 0
        %1268 = vmatprep.subr.bf16.mxu0 0
        %1269 = vmatpush2.bf16.msra.mxu0 0
        %1270 = vmatprep.subr.bf16.mxu0 0
        %1271 = vmatpush2.bf16.msra.mxu0 %v1211
        %1272 = vmatprep.mubr.bf16.mxu0 %v1238
        %1273 = vmatmul.mubr.bf16.gmra.mxu0 %v1234
        %v1274 = vpop.f32.mrf.mxu0
        %v1275 = vadd.f32 %v1221, %v1274
        %v1276 = vpop.f32.mrf.mxu0
        %v1277 = vpop.f32.mrf.mxu0
        %v1278 = vadd.f32 %v1226, %v1277
        %v1279 = vpop.f32.mrf.mxu0
        %1280 = vdwg.mxu0
        %v1281 = vmax.f32 %v1275, 0.0
        %v1282 = vmax.f32 %v1278, 0.0
        %1283 = vrot.lane.b32.xlu0 %v1281, 9
        %v1284 = vpop.permute.xlu0 %1283
        %1285 = vrot.lane.b32.xlu0 %v1282, 9
        %v1286 = vpop.permute.xlu0 %1285
        %v1287 = vsel %vm1155, %v1284, 0.0
        %v1288 = vsel %vm1155, %v1286, 0.0
        %1289 = vrot.lane.b32.xlu0 %v1281, 8
        %v1290 = vpop.permute.xlu0 %1289
        %1291 = vrot.lane.b32.xlu0 %v1282, 8
        %v1292 = vpop.permute.xlu0 %1291
        %v1293 = vsel %vm1149, %v1290, 0.0
        %v1294 = vsel %vm1149, %v1292, 0.0
        %1295 = vrot.lane.b32.xlu0 %v1281, 7
        %v1296 = vpop.permute.xlu0 %1295
        %1297 = vrot.lane.b32.xlu0 %v1282, 7
        %v1298 = vpop.permute.xlu0 %1297
        %v1299 = vsel %vm1168, %v1296, 0.0
        %v1300 = vsel %vm1168, %v1298, 0.0
        %1301 = vrot.lane.b32.xlu0 %v1281, 1
        %v1302 = vpop.permute.xlu0 %1301
        %1303 = vrot.lane.b32.xlu0 %v1282, 1
        %v1304 = vpop.permute.xlu0 %1303
        %v1305 = vsel %vm1147, %v1302, 0.0
        %v1306 = vsel %vm1147, %v1304, 0.0
        %1307 = vrot.lane.b32.xlu0 %v1281, 127
        %v1308 = vpop.permute.xlu0 %1307
        %1309 = vrot.lane.b32.xlu0 %v1282, 127
        %v1310 = vpop.permute.xlu0 %1309
        %v1311 = vsel %vm1148, %v1308, 0.0
        %v1312 = vsel %vm1148, %v1310, 0.0
        %1313 = vrot.lane.b32.xlu0 %v1281, 121
        %v1314 = vpop.permute.xlu0 %1313
        %1315 = vrot.lane.b32.xlu0 %v1282, 121
        %v1316 = vpop.permute.xlu0 %1315
        %v1317 = vsel %vm1187, %v1314, 0.0
        %v1318 = vsel %vm1187, %v1316, 0.0
        %1319 = vrot.lane.b32.xlu0 %v1281, 120
        %v1320 = vpop.permute.xlu0 %1319
        %1321 = vrot.lane.b32.xlu0 %v1282, 120
        %v1322 = vpop.permute.xlu0 %1321
        %v1323 = vsel %vm1150, %v1320, 0.0
        %v1324 = vsel %vm1150, %v1322, 0.0
        %1325 = vrot.lane.b32.xlu0 %v1281, 119
        %v1326 = vpop.permute.xlu0 %1325
        %1327 = vrot.lane.b32.xlu0 %v1282, 119
        %v1328 = vpop.permute.xlu0 %1327
        %v1329 = vsel %vm1200, %v1326, 0.0
        %v1330 = vsel %vm1200, %v1328, 0.0
        %v1331 = vpack.c.bf16 %v1288, %v1287
        %v1332 = vpack.c.bf16 %v1294, %v1293
        %v1333 = vpack.c.bf16 %v1300, %v1299
        %v1334 = vpack.c.bf16 %v1306, %v1305
        %v1335 = vpack.c.bf16 %v1282, %v1281
        %v1336 = vpack.c.bf16 %v1312, %v1311
        %v1337 = vpack.c.bf16 %v1318, %v1317
        %v1338 = vpack.c.bf16 %v1324, %v1323
        %v1339 = vpack.c.bf16 %v1330, %v1329
        %s1340 = scalar_lea.vmem %s1, 64
        %v1341 = vld [vmem:[%s1340] sm:$0xff]
        %v1342 = vld [vmem:[%s1340 + $0x8] sm:$0xff]
        %s1343 = scalar_lea.vmem %s2, 64
        %v1344 = vld [vmem:[%s1343] sm:$0xff]
        %v1345 = vld [vmem:[%s1343 + $0x8] sm:$0xff]
        %1347 = vset.pattern.permute.xlu0 0
        %1348 = vperm.xlu0 %1347, %v1344
        %v1349 = vpop.permute.xlu0 %1348
        %1352 = vset.pattern.permute.xlu0 0
        %1353 = vperm.xlu0 %1352, %v1345
        %v1354 = vpop.permute.xlu0 %1353
        %v1358 = vunpack.c.l.b16 %v1341
        %v1359 = vunpack.c.h.b16 %v1341
        %v1360 = vunpack.c.l.b16 %v1342
        %v1361 = vunpack.c.h.b16 %v1342
        %v1362 = vpack.c.b16 %v1360, %v1358
        %v1363 = vpack.c.b16 %v1361, %v1359
        %v1366 = vsel %vm427, %v1363, 0
        %1368 = vmatprep.subr.bf16.mxu0 0
        %1369 = vmatpush1.bf16.msra.mxu0 %v1338
        %1370 = vmatprep.subr.bf16.mxu0 0
        %1371 = vmatpush1.bf16.msra.mxu0 %v1337
        %1372 = vmatprep.subr.bf16.mxu0 0
        %1373 = vmatpush1.bf16.msra.mxu0 %v1336
        %1374 = vmatprep.subr.bf16.mxu0 0
        %1375 = vmatpush1.bf16.msra.mxu0 %v1335
        %1376 = vmatprep.subr.bf16.mxu0 0
        %1377 = vmatpush1.bf16.msra.mxu0 %v1334
        %1378 = vmatprep.subr.bf16.mxu0 0
        %1379 = vmatpush1.bf16.msra.mxu0 %v1333
        %1380 = vmatprep.subr.bf16.mxu0 0
        %1381 = vmatpush1.bf16.msra.mxu0 %v1332
        %1382 = vmatprep.subr.bf16.mxu0 0
        %1383 = vmatpush1.bf16.msra.mxu0 %v1331
        %1384 = vmatprep.subr.bf16.mxu0 0
        %1385 = vmatpush2.bf16.msra.mxu0 0
        %1386 = vmatprep.subr.bf16.mxu0 0
        %1387 = vmatpush2.bf16.msra.mxu0 0
        %1388 = vmatprep.subr.bf16.mxu0 0
        %1389 = vmatpush2.bf16.msra.mxu0 0
        %1390 = vmatprep.subr.bf16.mxu0 0
        %1391 = vmatpush2.bf16.msra.mxu0 0
        %1392 = vmatprep.subr.bf16.mxu0 0
        %1393 = vmatpush2.bf16.msra.mxu0 0
        %1394 = vmatprep.subr.bf16.mxu0 0
        %1395 = vmatpush2.bf16.msra.mxu0 0
        %1396 = vmatprep.subr.bf16.mxu0 0
        %1397 = vmatpush2.bf16.msra.mxu0 0
        %1398 = vmatprep.subr.bf16.mxu0 0
        %1399 = vmatpush2.bf16.msra.mxu0 %v1339
        %1400 = vmatprep.mubr.bf16.mxu0 %v1366
        %1401 = vmatmul.mubr.bf16.gmra.mxu0 %v1362
        %v1402 = vpop.f32.mrf.mxu0
        %v1403 = vadd.f32 %v1349, %v1402
        %v1404 = vpop.f32.mrf.mxu0
        %v1405 = vpop.f32.mrf.mxu0
        %v1406 = vadd.f32 %v1354, %v1405
        %v1407 = vpop.f32.mrf.mxu0
        %1408 = vdwg.mxu0
        %v1409 = vmax.f32 %v1403, 0.0
        %v1410 = vmax.f32 %v1406, 0.0
        %1411 = vrot.lane.b32.xlu0 %v1409, 9
        %v1412 = vpop.permute.xlu0 %1411
        %1413 = vrot.lane.b32.xlu0 %v1410, 9
        %v1414 = vpop.permute.xlu0 %1413
        %v1415 = vsel %vm1155, %v1412, 0.0
        %v1416 = vsel %vm1155, %v1414, 0.0
        %1417 = vrot.lane.b32.xlu0 %v1409, 8
        %v1418 = vpop.permute.xlu0 %1417
        %1419 = vrot.lane.b32.xlu0 %v1410, 8
        %v1420 = vpop.permute.xlu0 %1419
        %v1421 = vsel %vm1149, %v1418, 0.0
        %v1422 = vsel %vm1149, %v1420, 0.0
        %1423 = vrot.lane.b32.xlu0 %v1409, 7
        %v1424 = vpop.permute.xlu0 %1423
        %1425 = vrot.lane.b32.xlu0 %v1410, 7
        %v1426 = vpop.permute.xlu0 %1425
        %v1427 = vsel %vm1168, %v1424, 0.0
        %v1428 = vsel %vm1168, %v1426, 0.0
        %1429 = vrot.lane.b32.xlu0 %v1409, 1
        %v1430 = vpop.permute.xlu0 %1429
        %1431 = vrot.lane.b32.xlu0 %v1410, 1
        %v1432 = vpop.permute.xlu0 %1431
        %v1433 = vsel %vm1147, %v1430, 0.0
        %v1434 = vsel %vm1147, %v1432, 0.0
        %1435 = vrot.lane.b32.xlu0 %v1409, 127
        %v1436 = vpop.permute.xlu0 %1435
        %1437 = vrot.lane.b32.xlu0 %v1410, 127
        %v1438 = vpop.permute.xlu0 %1437
        %v1439 = vsel %vm1148, %v1436, 0.0
        %v1440 = vsel %vm1148, %v1438, 0.0
        %1441 = vrot.lane.b32.xlu0 %v1409, 121
        %v1442 = vpop.permute.xlu0 %1441
        %1443 = vrot.lane.b32.xlu0 %v1410, 121
        %v1444 = vpop.permute.xlu0 %1443
        %v1445 = vsel %vm1187, %v1442, 0.0
        %v1446 = vsel %vm1187, %v1444, 0.0
        %1447 = vrot.lane.b32.xlu0 %v1409, 120
        %v1448 = vpop.permute.xlu0 %1447
        %1449 = vrot.lane.b32.xlu0 %v1410, 120
        %v1450 = vpop.permute.xlu0 %1449
        %v1451 = vsel %vm1150, %v1448, 0.0
        %v1452 = vsel %vm1150, %v1450, 0.0
        %1453 = vrot.lane.b32.xlu0 %v1409, 119
        %v1454 = vpop.permute.xlu0 %1453
        %1455 = vrot.lane.b32.xlu0 %v1410, 119
        %v1456 = vpop.permute.xlu0 %1455
        %v1457 = vsel %vm1200, %v1454, 0.0
        %v1458 = vsel %vm1200, %v1456, 0.0
        %v1459 = vpack.c.bf16 %v1416, %v1415
        %v1460 = vpack.c.bf16 %v1422, %v1421
        %v1461 = vpack.c.bf16 %v1428, %v1427
        %v1462 = vpack.c.bf16 %v1434, %v1433
        %v1463 = vpack.c.bf16 %v1410, %v1409
        %v1464 = vpack.c.bf16 %v1440, %v1439
        %v1465 = vpack.c.bf16 %v1446, %v1445
        %v1466 = vpack.c.bf16 %v1452, %v1451
        %v1467 = vpack.c.bf16 %v1458, %v1457
        %s1468 = scalar_lea.vmem %s1, 80
        %v1469 = vld [vmem:[%s1468] sm:$0xff]
        %v1470 = vld [vmem:[%s1468 + $0x8] sm:$0xff]
        %s1471 = scalar_lea.vmem %s2, 80
        %v1472 = vld [vmem:[%s1471] sm:$0xff]
        %v1473 = vld [vmem:[%s1471 + $0x8] sm:$0xff]
        %1475 = vset.pattern.permute.xlu0 0
        %1476 = vperm.xlu0 %1475, %v1472
        %v1477 = vpop.permute.xlu0 %1476
        %1480 = vset.pattern.permute.xlu0 0
        %1481 = vperm.xlu0 %1480, %v1473
        %v1482 = vpop.permute.xlu0 %1481
        %v1486 = vunpack.c.l.b16 %v1469
        %v1487 = vunpack.c.h.b16 %v1469
        %v1488 = vunpack.c.l.b16 %v1470
        %v1489 = vunpack.c.h.b16 %v1470
        %v1490 = vpack.c.b16 %v1488, %v1486
        %v1491 = vpack.c.b16 %v1489, %v1487
        %v1494 = vsel %vm427, %v1491, 0
        %1496 = vmatprep.subr.bf16.mxu0 0
        %1497 = vmatpush1.bf16.msra.mxu0 %v1466
        %1498 = vmatprep.subr.bf16.mxu0 0
        %1499 = vmatpush1.bf16.msra.mxu0 %v1465
        %1500 = vmatprep.subr.bf16.mxu0 0
        %1501 = vmatpush1.bf16.msra.mxu0 %v1464
        %1502 = vmatprep.subr.bf16.mxu0 0
        %1503 = vmatpush1.bf16.msra.mxu0 %v1463
        %1504 = vmatprep.subr.bf16.mxu0 0
        %1505 = vmatpush1.bf16.msra.mxu0 %v1462
        %1506 = vmatprep.subr.bf16.mxu0 0
        %1507 = vmatpush1.bf16.msra.mxu0 %v1461
        %1508 = vmatprep.subr.bf16.mxu0 0
        %1509 = vmatpush1.bf16.msra.mxu0 %v1460
        %1510 = vmatprep.subr.bf16.mxu0 0
        %1511 = vmatpush1.bf16.msra.mxu0 %v1459
        %1512 = vmatprep.subr.bf16.mxu0 0
        %1513 = vmatpush2.bf16.msra.mxu0 0
        %1514 = vmatprep.subr.bf16.mxu0 0
        %1515 = vmatpush2.bf16.msra.mxu0 0
        %1516 = vmatprep.subr.bf16.mxu0 0
        %1517 = vmatpush2.bf16.msra.mxu0 0
        %1518 = vmatprep.subr.bf16.mxu0 0
        %1519 = vmatpush2.bf16.msra.mxu0 0
        %1520 = vmatprep.subr.bf16.mxu0 0
        %1521 = vmatpush2.bf16.msra.mxu0 0
        %1522 = vmatprep.subr.bf16.mxu0 0
        %1523 = vmatpush2.bf16.msra.mxu0 0
        %1524 = vmatprep.subr.bf16.mxu0 0
        %1525 = vmatpush2.bf16.msra.mxu0 0
        %1526 = vmatprep.subr.bf16.mxu0 0
        %1527 = vmatpush2.bf16.msra.mxu0 %v1467
        %1528 = vmatprep.mubr.bf16.mxu0 %v1494
        %1529 = vmatmul.mubr.bf16.gmra.mxu0 %v1490
        %v1530 = vpop.f32.mrf.mxu0
        %v1531 = vadd.f32 %v1477, %v1530
        %v1532 = vpop.f32.mrf.mxu0
        %v1533 = vpop.f32.mrf.mxu0
        %v1534 = vadd.f32 %v1482, %v1533
        %v1535 = vpop.f32.mrf.mxu0
        %1536 = vdwg.mxu0
        %v1537 = vmax.f32 %v1531, 0.0
        %v1538 = vmax.f32 %v1534, 0.0
        %1539 = vrot.lane.b32.xlu0 %v1537, 127
        %v1540 = vpop.permute.xlu0 %1539
        %1541 = vrot.lane.b32.xlu0 %v1538, 127
        %v1542 = vpop.permute.xlu0 %1541
        %1543 = vrot.lane.b32.xlu0 %v1537, 120
        %v1544 = vpop.permute.xlu0 %1543
        %1545 = vrot.lane.b32.xlu0 %v1538, 120
        %v1546 = vpop.permute.xlu0 %1545
        %1547 = vrot.lane.b32.xlu0 %v1537, 119
        %v1548 = vpop.permute.xlu0 %1547
        %1549 = vrot.lane.b32.xlu0 %v1538, 119
        %v1550 = vpop.permute.xlu0 %1549
        %v1551 = vmax.f32 %v1537, %v1540
        %v1552 = vmax.f32 %v1538, %v1542
        %v1553 = vmax.f32 %v1544, %v1548
        %v1554 = vmax.f32 %v1546, %v1550
        %v1555 = vmax.f32 %v1551, %v1553
        %v1556 = vmax.f32 %v1552, %v1554
        %v1557 = vshra.s32 %v228, 2
        %v1558 = vand.u32 %v228, 3
        %v1559 = vmul.u32 %v1557, 16
        %v1560 = vmul.u32 %v1558, 2
        %v1561 = vadd.s32 %v1559, %v1560
        %v1562 = vsel %vm269, %v1561, 4294967295
        %vm1563 = vcmp.eq.s32.totalorder %v969, %v1562
        %vm1564 = vcmp.eq.s32.totalorder %v970, %v1562
        %vm1565 = vcmp.eq.s32.totalorder %v971, %v1562
        %vm1566 = vcmp.eq.s32.totalorder %v972, %v1562
        %vm1567 = vcmp.eq.s32.totalorder %v973, %v1562
        %vm1568 = vcmp.eq.s32.totalorder %v974, %v1562
        %vm1569 = vcmp.eq.s32.totalorder %v975, %v1562
        %vm1570 = vcmp.eq.s32.totalorder %v976, %v1562
        %vm1571 = vcmp.eq.s32.totalorder %v977, %v1562
        %vm1572 = vcmp.eq.s32.totalorder %v978, %v1562
        %vm1573 = vcmp.eq.s32.totalorder %v979, %v1562
        %vm1574 = vcmp.eq.s32.totalorder %v980, %v1562
        %vm1575 = vcmp.eq.s32.totalorder %v981, %v1562
        %vm1576 = vcmp.eq.s32.totalorder %v982, %v1562
        %vm1577 = vcmp.eq.s32.totalorder %v983, %v1562
        %vm1578 = vcmp.eq.s32.totalorder %v984, %v1562
        %v1579 = vsel %vm1563, 1.0, 0.0
        %v1580 = vsel %vm1564, 1.0, 0.0
        %v1581 = vsel %vm1565, 1.0, 0.0
        %v1582 = vsel %vm1566, 1.0, 0.0
        %v1583 = vsel %vm1567, 1.0, 0.0
        %v1584 = vsel %vm1568, 1.0, 0.0
        %v1585 = vsel %vm1569, 1.0, 0.0
        %v1586 = vsel %vm1570, 1.0, 0.0
        %v1587 = vsel %vm1571, 1.0, 0.0
        %v1588 = vsel %vm1572, 1.0, 0.0
        %v1589 = vsel %vm1573, 1.0, 0.0
        %v1590 = vsel %vm1574, 1.0, 0.0
        %v1591 = vsel %vm1575, 1.0, 0.0
        %v1592 = vsel %vm1576, 1.0, 0.0
        %v1593 = vsel %vm1577, 1.0, 0.0
        %v1594 = vsel %vm1578, 1.0, 0.0
        %1595 = vmatprep.subr.mxu0 0.0
        %1596 = vmatpush1.msra.mxu0 %v1594
        %1597 = vmatprep.subr.mxu0 0.0
        %1598 = vmatpush1.msra.mxu0 %v1593
        %1599 = vmatprep.subr.mxu0 0.0
        %1600 = vmatpush1.msra.mxu0 %v1592
        %1601 = vmatprep.subr.mxu0 0.0
        %1602 = vmatpush1.msra.mxu0 %v1591
        %1603 = vmatprep.subr.mxu0 0.0
        %1604 = vmatpush1.msra.mxu0 %v1590
        %1605 = vmatprep.subr.mxu0 0.0
        %1606 = vmatpush1.msra.mxu0 %v1589
        %1607 = vmatprep.subr.mxu0 0.0
        %1608 = vmatpush1.msra.mxu0 %v1588
        %1609 = vmatprep.subr.mxu0 0.0
        %1610 = vmatpush1.msra.mxu0 %v1587
        %1611 = vmatprep.subr.mxu0 0.0
        %1612 = vmatpush1.msra.mxu0 %v1586
        %1613 = vmatprep.subr.mxu0 0.0
        %1614 = vmatpush1.msra.mxu0 %v1585
        %1615 = vmatprep.subr.mxu0 0.0
        %1616 = vmatpush1.msra.mxu0 %v1584
        %1617 = vmatprep.subr.mxu0 0.0
        %1618 = vmatpush1.msra.mxu0 %v1583
        %1619 = vmatprep.subr.mxu0 0.0
        %1620 = vmatpush1.msra.mxu0 %v1582
        %1621 = vmatprep.subr.mxu0 0.0
        %1622 = vmatpush1.msra.mxu0 %v1581
        %1623 = vmatprep.subr.mxu0 0.0
        %1624 = vmatpush1.msra.mxu0 %v1580
        %1625 = vmatprep.subr.mxu0 0.0
        %1626 = vmatpush1.msra.mxu0 %v1579
        %1627 = vmatprep.subr.mxu0 0.0
        %1628 = vmatpush2.msra.mxu0 0.0
        %1629 = vmatprep.subr.mxu0 0.0
        %1630 = vmatpush2.msra.mxu0 0.0
        %1631 = vmatprep.subr.mxu0 0.0
        %1632 = vmatpush2.msra.mxu0 0.0
        %1633 = vmatprep.subr.mxu0 0.0
        %1634 = vmatpush2.msra.mxu0 0.0
        %1635 = vmatprep.subr.mxu0 0.0
        %1636 = vmatpush2.msra.mxu0 0.0
        %1637 = vmatprep.subr.mxu0 0.0
        %1638 = vmatpush2.msra.mxu0 0.0
        %1639 = vmatprep.subr.mxu0 0.0
        %1640 = vmatpush2.msra.mxu0 0.0
        %1641 = vmatprep.subr.mxu0 0.0
        %1642 = vmatpush2.msra.mxu0 0.0
        %1643 = vmatprep.subr.mxu0 0.0
        %1644 = vmatpush2.msra.mxu0 0.0
        %1645 = vmatprep.subr.mxu0 0.0
        %1646 = vmatpush2.msra.mxu0 0.0
        %1647 = vmatprep.subr.mxu0 0.0
        %1648 = vmatpush2.msra.mxu0 0.0
        %1649 = vmatprep.subr.mxu0 0.0
        %1650 = vmatpush2.msra.mxu0 0.0
        %1651 = vmatprep.subr.mxu0 0.0
        %1652 = vmatpush2.msra.mxu0 0.0
        %1653 = vmatprep.subr.mxu0 0.0
        %1654 = vmatpush2.msra.mxu0 0.0
        %1655 = vmatprep.subr.mxu0 0.0
        %1656 = vmatpush2.msra.mxu0 0.0
        %1657 = vmatprep.subr.mxu0 0.0
        %1658 = vmatpush2.msra.mxu0 0.0
        %1659 = vmatprep.mubr.f32.mxu0 0.0
        %1660 = vmatmul.mubr.f32.gmra.mxu0 %v1555
        %v1661 = vpop.f32.mrf.mxu0
        %v1662 = vadd.f32 0.0, %v1661
        %v1663 = vpop.f32.mrf.mxu0
        %1664 = vmatprep.mubr.f32.mxu0 0.0
        %1665 = vmatmul.mubr.f32.gmra.mxu0 %v1556
        %v1666 = vpop.f32.mrf.mxu0
        %v1667 = vadd.f32 0.0, %v1666
        %v1668 = vpop.f32.mrf.mxu0
        %1669 = vdwg.mxu0
        %vm1670 = vcmp.ge.s32.totalorder %v1558, 1
        %vm1671 = vcmp.le.s32.totalorder %v1558, 2
        %vm1672 = vcmp.ge.s32.totalorder %v1557, 1
        %vm1673 = vcmp.le.s32.totalorder %v1557, 2
        %1674 = vrot.lane.b32.xlu0 %v1662, 5
        %v1675 = vpop.permute.xlu0 %1674
        %1676 = vrot.lane.b32.xlu0 %v1667, 5
        %v1677 = vpop.permute.xlu0 %1676
        %vm1678 = vmand %vm1672, %vm1670
        %v1679 = vsel %vm1678, %v1675, 0.0
        %v1680 = vsel %vm1678, %v1677, 0.0
        %1681 = vrot.lane.b32.xlu0 %v1662, 4
        %v1682 = vpop.permute.xlu0 %1681
        %1683 = vrot.lane.b32.xlu0 %v1667, 4
        %v1684 = vpop.permute.xlu0 %1683
        %v1685 = vsel %vm1672, %v1682, 0.0
        %v1686 = vsel %vm1672, %v1684, 0.0
        %1687 = vrot.lane.b32.xlu0 %v1662, 3
        %v1688 = vpop.permute.xlu0 %1687
        %1689 = vrot.lane.b32.xlu0 %v1667, 3
        %v1690 = vpop.permute.xlu0 %1689
        %vm1691 = vmand %vm1672, %vm1671
        %v1692 = vsel %vm1691, %v1688, 0.0
        %v1693 = vsel %vm1691, %v1690, 0.0
        %1694 = vrot.lane.b32.xlu0 %v1662, 1
        %v1695 = vpop.permute.xlu0 %1694
        %1696 = vrot.lane.b32.xlu0 %v1667, 1
        %v1697 = vpop.permute.xlu0 %1696
        %v1698 = vsel %vm1670, %v1695, 0.0
        %v1699 = vsel %vm1670, %v1697, 0.0
        %1700 = vrot.lane.b32.xlu0 %v1662, 127
        %v1701 = vpop.permute.xlu0 %1700
        %1702 = vrot.lane.b32.xlu0 %v1667, 127
        %v1703 = vpop.permute.xlu0 %1702
        %v1704 = vsel %vm1671, %v1701, 0.0
        %v1705 = vsel %vm1671, %v1703, 0.0
        %1706 = vrot.lane.b32.xlu0 %v1662, 125
        %v1707 = vpop.permute.xlu0 %1706
        %1708 = vrot.lane.b32.xlu0 %v1667, 125
        %v1709 = vpop.permute.xlu0 %1708
        %vm1710 = vmand %vm1673, %vm1670
        %v1711 = vsel %vm1710, %v1707, 0.0
        %v1712 = vsel %vm1710, %v1709, 0.0
        %1713 = vrot.lane.b32.xlu0 %v1662, 124
        %v1714 = vpop.permute.xlu0 %1713
        %1715 = vrot.lane.b32.xlu0 %v1667, 124
        %v1716 = vpop.permute.xlu0 %1715
        %v1717 = vsel %vm1673, %v1714, 0.0
        %v1718 = vsel %vm1673, %v1716, 0.0
        %1719 = vrot.lane.b32.xlu0 %v1662, 123
        %v1720 = vpop.permute.xlu0 %1719
        %1721 = vrot.lane.b32.xlu0 %v1667, 123
        %v1722 = vpop.permute.xlu0 %1721
        %vm1723 = vmand %vm1673, %vm1671
        %v1724 = vsel %vm1723, %v1720, 0.0
        %v1725 = vsel %vm1723, %v1722, 0.0
        %v1726 = vpack.c.bf16 %v1680, %v1679
        %v1727 = vpack.c.bf16 %v1686, %v1685
        %v1728 = vpack.c.bf16 %v1693, %v1692
        %v1729 = vpack.c.bf16 %v1699, %v1698
        %v1730 = vpack.c.bf16 %v1667, %v1662
        %v1731 = vpack.c.bf16 %v1705, %v1704
        %v1732 = vpack.c.bf16 %v1712, %v1711
        %v1733 = vpack.c.bf16 %v1718, %v1717
        %v1734 = vpack.c.bf16 %v1725, %v1724
        %s1735 = scalar_lea.vmem %s1, 96
        %v1736 = vld [vmem:[%s1735] sm:$0xff]
        %v1737 = vld [vmem:[%s1735 + $0x8] sm:$0xff]
        %s1738 = scalar_lea.vmem %s2, 96
        %v1739 = vld [vmem:[%s1738] sm:$0xff]
        %v1740 = vld [vmem:[%s1738 + $0x8] sm:$0xff]
        %1742 = vset.pattern.permute.xlu0 0
        %1743 = vperm.xlu0 %1742, %v1739
        %v1744 = vpop.permute.xlu0 %1743
        %1747 = vset.pattern.permute.xlu0 0
        %1748 = vperm.xlu0 %1747, %v1740
        %v1749 = vpop.permute.xlu0 %1748
        %v1753 = vunpack.c.l.b16 %v1736
        %v1754 = vunpack.c.h.b16 %v1736
        %v1755 = vunpack.c.l.b16 %v1737
        %v1756 = vunpack.c.h.b16 %v1737
        %v1757 = vpack.c.b16 %v1755, %v1753
        %v1758 = vpack.c.b16 %v1756, %v1754
        %v1761 = vsel %vm427, %v1758, 0
        %1763 = vmatprep.subr.bf16.mxu0 0
        %1764 = vmatpush1.bf16.msra.mxu0 %v1733
        %1765 = vmatprep.subr.bf16.mxu0 0
        %1766 = vmatpush1.bf16.msra.mxu0 %v1732
        %1767 = vmatprep.subr.bf16.mxu0 0
        %1768 = vmatpush1.bf16.msra.mxu0 %v1731
        %1769 = vmatprep.subr.bf16.mxu0 0
        %1770 = vmatpush1.bf16.msra.mxu0 %v1730
        %1771 = vmatprep.subr.bf16.mxu0 0
        %1772 = vmatpush1.bf16.msra.mxu0 %v1729
        %1773 = vmatprep.subr.bf16.mxu0 0
        %1774 = vmatpush1.bf16.msra.mxu0 %v1728
        %1775 = vmatprep.subr.bf16.mxu0 0
        %1776 = vmatpush1.bf16.msra.mxu0 %v1727
        %1777 = vmatprep.subr.bf16.mxu0 0
        %1778 = vmatpush1.bf16.msra.mxu0 %v1726
        %1779 = vmatprep.subr.bf16.mxu0 0
        %1780 = vmatpush2.bf16.msra.mxu0 0
        %1781 = vmatprep.subr.bf16.mxu0 0
        %1782 = vmatpush2.bf16.msra.mxu0 0
        %1783 = vmatprep.subr.bf16.mxu0 0
        %1784 = vmatpush2.bf16.msra.mxu0 0
        %1785 = vmatprep.subr.bf16.mxu0 0
        %1786 = vmatpush2.bf16.msra.mxu0 0
        %1787 = vmatprep.subr.bf16.mxu0 0
        %1788 = vmatpush2.bf16.msra.mxu0 0
        %1789 = vmatprep.subr.bf16.mxu0 0
        %1790 = vmatpush2.bf16.msra.mxu0 0
        %1791 = vmatprep.subr.bf16.mxu0 0
        %1792 = vmatpush2.bf16.msra.mxu0 0
        %1793 = vmatprep.subr.bf16.mxu0 0
        %1794 = vmatpush2.bf16.msra.mxu0 %v1734
        %1795 = vmatprep.mubr.bf16.mxu0 %v1761
        %1796 = vmatmul.mubr.bf16.gmra.mxu0 %v1757
        %v1797 = vpop.f32.mrf.mxu0
        %v1798 = vadd.f32 %v1744, %v1797
        %v1799 = vpop.f32.mrf.mxu0
        %v1800 = vpop.f32.mrf.mxu0
        %v1801 = vadd.f32 %v1749, %v1800
        %v1802 = vpop.f32.mrf.mxu0
        %1803 = vdwg.mxu0
        %v1804 = vmax.f32 %v1798, 0.0
        %v1805 = vmax.f32 %v1801, 0.0
        %1806 = vrot.lane.b32.xlu0 %v1804, 5
        %v1807 = vpop.permute.xlu0 %1806
        %1808 = vrot.lane.b32.xlu0 %v1805, 5
        %v1809 = vpop.permute.xlu0 %1808
        %v1810 = vsel %vm1678, %v1807, 0.0
        %v1811 = vsel %vm1678, %v1809, 0.0
        %1812 = vrot.lane.b32.xlu0 %v1804, 4
        %v1813 = vpop.permute.xlu0 %1812
        %1814 = vrot.lane.b32.xlu0 %v1805, 4
        %v1815 = vpop.permute.xlu0 %1814
        %v1816 = vsel %vm1672, %v1813, 0.0
        %v1817 = vsel %vm1672, %v1815, 0.0
        %1818 = vrot.lane.b32.xlu0 %v1804, 3
        %v1819 = vpop.permute.xlu0 %1818
        %1820 = vrot.lane.b32.xlu0 %v1805, 3
        %v1821 = vpop.permute.xlu0 %1820
        %v1822 = vsel %vm1691, %v1819, 0.0
        %v1823 = vsel %vm1691, %v1821, 0.0
        %1824 = vrot.lane.b32.xlu0 %v1804, 1
        %v1825 = vpop.permute.xlu0 %1824
        %1826 = vrot.lane.b32.xlu0 %v1805, 1
        %v1827 = vpop.permute.xlu0 %1826
        %v1828 = vsel %vm1670, %v1825, 0.0
        %v1829 = vsel %vm1670, %v1827, 0.0
        %1830 = vrot.lane.b32.xlu0 %v1804, 127
        %v1831 = vpop.permute.xlu0 %1830
        %1832 = vrot.lane.b32.xlu0 %v1805, 127
        %v1833 = vpop.permute.xlu0 %1832
        %v1834 = vsel %vm1671, %v1831, 0.0
        %v1835 = vsel %vm1671, %v1833, 0.0
        %1836 = vrot.lane.b32.xlu0 %v1804, 125
        %v1837 = vpop.permute.xlu0 %1836
        %1838 = vrot.lane.b32.xlu0 %v1805, 125
        %v1839 = vpop.permute.xlu0 %1838
        %v1840 = vsel %vm1710, %v1837, 0.0
        %v1841 = vsel %vm1710, %v1839, 0.0
        %1842 = vrot.lane.b32.xlu0 %v1804, 124
        %v1843 = vpop.permute.xlu0 %1842
        %1844 = vrot.lane.b32.xlu0 %v1805, 124
        %v1845 = vpop.permute.xlu0 %1844
        %v1846 = vsel %vm1673, %v1843, 0.0
        %v1847 = vsel %vm1673, %v1845, 0.0
        %1848 = vrot.lane.b32.xlu0 %v1804, 123
        %v1849 = vpop.permute.xlu0 %1848
        %1850 = vrot.lane.b32.xlu0 %v1805, 123
        %v1851 = vpop.permute.xlu0 %1850
        %v1852 = vsel %vm1723, %v1849, 0.0
        %v1853 = vsel %vm1723, %v1851, 0.0
        %v1854 = vpack.c.bf16 %v1811, %v1810
        %v1855 = vpack.c.bf16 %v1817, %v1816
        %v1856 = vpack.c.bf16 %v1823, %v1822
        %v1857 = vpack.c.bf16 %v1829, %v1828
        %v1858 = vpack.c.bf16 %v1805, %v1804
        %v1859 = vpack.c.bf16 %v1835, %v1834
        %v1860 = vpack.c.bf16 %v1841, %v1840
        %v1861 = vpack.c.bf16 %v1847, %v1846
        %v1862 = vpack.c.bf16 %v1853, %v1852
        %s1863 = scalar_lea.vmem %s1, 112
        %v1864 = vld [vmem:[%s1863] sm:$0xff]
        %v1865 = vld [vmem:[%s1863 + $0x8] sm:$0xff]
        %s1866 = scalar_lea.vmem %s2, 112
        %v1867 = vld [vmem:[%s1866] sm:$0xff]
        %v1868 = vld [vmem:[%s1866 + $0x8] sm:$0xff]
        %1870 = vset.pattern.permute.xlu0 0
        %1871 = vperm.xlu0 %1870, %v1867
        %v1872 = vpop.permute.xlu0 %1871
        %1875 = vset.pattern.permute.xlu0 0
        %1876 = vperm.xlu0 %1875, %v1868
        %v1877 = vpop.permute.xlu0 %1876
        %v1881 = vunpack.c.l.b16 %v1864
        %v1882 = vunpack.c.h.b16 %v1864
        %v1883 = vunpack.c.l.b16 %v1865
        %v1884 = vunpack.c.h.b16 %v1865
        %v1885 = vpack.c.b16 %v1883, %v1881
        %v1886 = vpack.c.b16 %v1884, %v1882
        %v1889 = vsel %vm427, %v1886, 0
        %1891 = vmatprep.subr.bf16.mxu0 0
        %1892 = vmatpush1.bf16.msra.mxu0 %v1861
        %1893 = vmatprep.subr.bf16.mxu0 0
        %1894 = vmatpush1.bf16.msra.mxu0 %v1860
        %1895 = vmatprep.subr.bf16.mxu0 0
        %1896 = vmatpush1.bf16.msra.mxu0 %v1859
        %1897 = vmatprep.subr.bf16.mxu0 0
        %1898 = vmatpush1.bf16.msra.mxu0 %v1858
        %1899 = vmatprep.subr.bf16.mxu0 0
        %1900 = vmatpush1.bf16.msra.mxu0 %v1857
        %1901 = vmatprep.subr.bf16.mxu0 0
        %1902 = vmatpush1.bf16.msra.mxu0 %v1856
        %1903 = vmatprep.subr.bf16.mxu0 0
        %1904 = vmatpush1.bf16.msra.mxu0 %v1855
        %1905 = vmatprep.subr.bf16.mxu0 0
        %1906 = vmatpush1.bf16.msra.mxu0 %v1854
        %1907 = vmatprep.subr.bf16.mxu0 0
        %1908 = vmatpush2.bf16.msra.mxu0 0
        %1909 = vmatprep.subr.bf16.mxu0 0
        %1910 = vmatpush2.bf16.msra.mxu0 0
        %1911 = vmatprep.subr.bf16.mxu0 0
        %1912 = vmatpush2.bf16.msra.mxu0 0
        %1913 = vmatprep.subr.bf16.mxu0 0
        %1914 = vmatpush2.bf16.msra.mxu0 0
        %1915 = vmatprep.subr.bf16.mxu0 0
        %1916 = vmatpush2.bf16.msra.mxu0 0
        %1917 = vmatprep.subr.bf16.mxu0 0
        %1918 = vmatpush2.bf16.msra.mxu0 0
        %1919 = vmatprep.subr.bf16.mxu0 0
        %1920 = vmatpush2.bf16.msra.mxu0 0
        %1921 = vmatprep.subr.bf16.mxu0 0
        %1922 = vmatpush2.bf16.msra.mxu0 %v1862
        %1923 = vmatprep.mubr.bf16.mxu0 %v1889
        %1924 = vmatmul.mubr.bf16.gmra.mxu0 %v1885
        %v1925 = vpop.f32.mrf.mxu0
        %v1926 = vadd.f32 %v1872, %v1925
        %v1927 = vpop.f32.mrf.mxu0
        %v1928 = vpop.f32.mrf.mxu0
        %v1929 = vadd.f32 %v1877, %v1928
        %v1930 = vpop.f32.mrf.mxu0
        %1931 = vdwg.mxu0
        %v1932 = vmax.f32 %v1926, 0.0
        %v1933 = vmax.f32 %v1929, 0.0
        %1934 = vrot.lane.b32.xlu0 %v1932, 5
        %v1935 = vpop.permute.xlu0 %1934
        %1936 = vrot.lane.b32.xlu0 %v1933, 5
        %v1937 = vpop.permute.xlu0 %1936
        %v1938 = vsel %vm1678, %v1935, 0.0
        %v1939 = vsel %vm1678, %v1937, 0.0
        %1940 = vrot.lane.b32.xlu0 %v1932, 4
        %v1941 = vpop.permute.xlu0 %1940
        %1942 = vrot.lane.b32.xlu0 %v1933, 4
        %v1943 = vpop.permute.xlu0 %1942
        %v1944 = vsel %vm1672, %v1941, 0.0
        %v1945 = vsel %vm1672, %v1943, 0.0
        %1946 = vrot.lane.b32.xlu0 %v1932, 3
        %v1947 = vpop.permute.xlu0 %1946
        %1948 = vrot.lane.b32.xlu0 %v1933, 3
        %v1949 = vpop.permute.xlu0 %1948
        %v1950 = vsel %vm1691, %v1947, 0.0
        %v1951 = vsel %vm1691, %v1949, 0.0
        %1952 = vrot.lane.b32.xlu0 %v1932, 1
        %v1953 = vpop.permute.xlu0 %1952
        %1954 = vrot.lane.b32.xlu0 %v1933, 1
        %v1955 = vpop.permute.xlu0 %1954
        %v1956 = vsel %vm1670, %v1953, 0.0
        %v1957 = vsel %vm1670, %v1955, 0.0
        %1958 = vrot.lane.b32.xlu0 %v1932, 127
        %v1959 = vpop.permute.xlu0 %1958
        %1960 = vrot.lane.b32.xlu0 %v1933, 127
        %v1961 = vpop.permute.xlu0 %1960
        %v1962 = vsel %vm1671, %v1959, 0.0
        %v1963 = vsel %vm1671, %v1961, 0.0
        %1964 = vrot.lane.b32.xlu0 %v1932, 125
        %v1965 = vpop.permute.xlu0 %1964
        %1966 = vrot.lane.b32.xlu0 %v1933, 125
        %v1967 = vpop.permute.xlu0 %1966
        %v1968 = vsel %vm1710, %v1965, 0.0
        %v1969 = vsel %vm1710, %v1967, 0.0
        %1970 = vrot.lane.b32.xlu0 %v1932, 124
        %v1971 = vpop.permute.xlu0 %1970
        %1972 = vrot.lane.b32.xlu0 %v1933, 124
        %v1973 = vpop.permute.xlu0 %1972
        %v1974 = vsel %vm1673, %v1971, 0.0
        %v1975 = vsel %vm1673, %v1973, 0.0
        %1976 = vrot.lane.b32.xlu0 %v1932, 123
        %v1977 = vpop.permute.xlu0 %1976
        %1978 = vrot.lane.b32.xlu0 %v1933, 123
        %v1979 = vpop.permute.xlu0 %1978
        %v1980 = vsel %vm1723, %v1977, 0.0
        %v1981 = vsel %vm1723, %v1979, 0.0
        %v1982 = vpack.c.bf16 %v1939, %v1938
        %v1983 = vpack.c.bf16 %v1945, %v1944
        %v1984 = vpack.c.bf16 %v1951, %v1950
        %v1985 = vpack.c.bf16 %v1957, %v1956
        %v1986 = vpack.c.bf16 %v1933, %v1932
        %v1987 = vpack.c.bf16 %v1963, %v1962
        %v1988 = vpack.c.bf16 %v1969, %v1968
        %v1989 = vpack.c.bf16 %v1975, %v1974
        %v1990 = vpack.c.bf16 %v1981, %v1980
        %s1991 = scalar_lea.vmem %s1, 128
        %v1992 = vld [vmem:[%s1991] sm:$0xff]
        %v1993 = vld [vmem:[%s1991 + $0x8] sm:$0xff]
        %s1994 = scalar_lea.vmem %s2, 128
        %v1995 = vld [vmem:[%s1994] sm:$0xff]
        %v1996 = vld [vmem:[%s1994 + $0x8] sm:$0xff]
        %1998 = vset.pattern.permute.xlu0 0
        %1999 = vperm.xlu0 %1998, %v1995
        %v2000 = vpop.permute.xlu0 %1999
        %2003 = vset.pattern.permute.xlu0 0
        %2004 = vperm.xlu0 %2003, %v1996
        %v2005 = vpop.permute.xlu0 %2004
        %v2009 = vunpack.c.l.b16 %v1992
        %v2010 = vunpack.c.h.b16 %v1992
        %v2011 = vunpack.c.l.b16 %v1993
        %v2012 = vunpack.c.h.b16 %v1993
        %v2013 = vpack.c.b16 %v2011, %v2009
        %v2014 = vpack.c.b16 %v2012, %v2010
        %v2017 = vsel %vm427, %v2014, 0
        %2019 = vmatprep.subr.bf16.mxu0 0
        %2020 = vmatpush1.bf16.msra.mxu0 %v1989
        %2021 = vmatprep.subr.bf16.mxu0 0
        %2022 = vmatpush1.bf16.msra.mxu0 %v1988
        %2023 = vmatprep.subr.bf16.mxu0 0
        %2024 = vmatpush1.bf16.msra.mxu0 %v1987
        %2025 = vmatprep.subr.bf16.mxu0 0
        %2026 = vmatpush1.bf16.msra.mxu0 %v1986
        %2027 = vmatprep.subr.bf16.mxu0 0
        %2028 = vmatpush1.bf16.msra.mxu0 %v1985
        %2029 = vmatprep.subr.bf16.mxu0 0
        %2030 = vmatpush1.bf16.msra.mxu0 %v1984
        %2031 = vmatprep.subr.bf16.mxu0 0
        %2032 = vmatpush1.bf16.msra.mxu0 %v1983
        %2033 = vmatprep.subr.bf16.mxu0 0
        %2034 = vmatpush1.bf16.msra.mxu0 %v1982
        %2035 = vmatprep.subr.bf16.mxu0 0
        %2036 = vmatpush2.bf16.msra.mxu0 0
        %2037 = vmatprep.subr.bf16.mxu0 0
        %2038 = vmatpush2.bf16.msra.mxu0 0
        %2039 = vmatprep.subr.bf16.mxu0 0
        %2040 = vmatpush2.bf16.msra.mxu0 0
        %2041 = vmatprep.subr.bf16.mxu0 0
        %2042 = vmatpush2.bf16.msra.mxu0 0
        %2043 = vmatprep.subr.bf16.mxu0 0
        %2044 = vmatpush2.bf16.msra.mxu0 0
        %2045 = vmatprep.subr.bf16.mxu0 0
        %2046 = vmatpush2.bf16.msra.mxu0 0
        %2047 = vmatprep.subr.bf16.mxu0 0
        %2048 = vmatpush2.bf16.msra.mxu0 0
        %2049 = vmatprep.subr.bf16.mxu0 0
        %2050 = vmatpush2.bf16.msra.mxu0 %v1990
        %2051 = vmatprep.mubr.bf16.mxu0 %v2017
        %2052 = vmatmul.mubr.bf16.gmra.mxu0 %v2013
        %v2053 = vpop.f32.mrf.mxu0
        %v2054 = vadd.f32 %v2000, %v2053
        %v2055 = vpop.f32.mrf.mxu0
        %v2056 = vpop.f32.mrf.mxu0
        %v2057 = vadd.f32 %v2005, %v2056
        %v2058 = vpop.f32.mrf.mxu0
        %2059 = vdwg.mxu0
        %v2060 = vmax.f32 %v2054, 0.0
        %v2061 = vmax.f32 %v2057, 0.0
        %v2062 = vsel %vm269, %v2060, 0.0
        %v2063 = vsel %vm269, %v2061, 0.0
        %2064 = vadd.xlane.f32.xlu0 %v2062
        %v2065 = vpop.xlane.xlu0 %2064
        %2066 = vadd.xlane.f32.xlu0 %v2063
        %v2067 = vpop.xlane.xlu0 %2066
        %v2068 = vmul.f32 %v2065, 0.0625
        %v2069 = vmul.f32 %v2067, 0.0625
        %v2070 = vld [vmem:[%s3] sm:$0xff]
        %v2071 = vld [vmem:[%s3 + $0x8] sm:$0xff]
        %v2072 = vmul.f32 %v2070, %v2068
        %v2073 = vmul.f32 %v2071, %v2069
        %vm2074 = vcmask 80896
        %v2075 = vsel %vm2074, %v2072, 0.0
        %v2076 = vsel %vm2074, %v2073, 0.0
        %v2077 = vadd.f32 %v2075, %v2076
        %v2078 = vrot.slane %v2077, 4
        %v2079 = vadd.f32 %v2077, %v2078
        %v2080 = vrot.slane %v2079, 2
        %v2081 = vadd.f32 %v2079, %v2080
        %v2082 = vrot.slane %v2081, 1
        %v2083 = vadd.f32 %v2081, %v2082
        %v2084 = vld [vmem:[%s4] sm:$0x1]
        %v2085 = vadd.f32 %v2083, %v2084
        %vm2086 = vcmask 73728
        %2087 = vst.msk [vmem:[%s216] sm:$0x1] %vm2086, %v2085
        %s2088 = sand.u32 %s137, 1
        %s2089 = scalar_lea.sflag [#allocation3], %s2088
        %s2090 = sand.u32 %s137, 1
        %s2091 = scalar_lea.vmem [#allocation2], %s2090
        // Predicated region
        $region41: #{layer13s_forward.1} parent=39 // pred_check
          %p2092 = pneg %p147
        $region42: #{layer13s_forward.1} parent=39 // pred_check_branch
          %2094 = sbr.rel (%p2092) target = $region44
        $region43: #{layer13s_forward.1} parent=39 // pred_region
          %s2096 = ssub.s32 16, 16
          %2097 = vsyncadd %s2089, %s2096
          %s2098 = smul.addr %s19, 16
          %s2099 = scalar_lea.hbm %s5, %s2098
          %s2101 = sshll.u32 %s2091, 4
          %s2102 = int_to_ptr.vmem [resolvable:$true] %s2101
          %2104 = dma.vmem_to_hbm [thread:$0]  %s2102, 16, %s2099, %s2089
        $region44: #{layer13s_forward.1} parent=39 // pred_fallthru
          _
      $region40: #{layer13s_forward.1} parent=5 // pred_fallthru
        _
      %p2105 = scmp.le.s32.totalorder 2, %s14
      // Predicated region
      $region45: #{layer13s_forward.1} parent=5 // pred_check
        %p2106 = pneg %p2105
      $region46: #{layer13s_forward.1} parent=5 // pred_check_branch
        %2108 = sbr.rel (%p2106) target = $region48
      $region47: #{layer13s_forward.1} parent=5 // pred_region
        %s2109 = ssub.s32 %s14, 2
        // Predicated region
        $region49: #{layer13s_forward.1} parent=47 // pred_check
          %p2110 = pneg %p153
        $region50: #{layer13s_forward.1} parent=47 // pred_check_branch
          %2112 = sbr.rel (%p2110) target = $region52
        $region51: #{layer13s_forward.1} parent=47 // pred_region
          %s2113 = sand.u32 %s138, 1
          %s2114 = scalar_lea.sflag [#allocation3], %s2113
          %s2115 = sand.u32 %s138, 1
          %s2116 = scalar_lea.vmem [#allocation2], %s2115
          %2117 = dma.done %s2114, 16
        $region52: #{layer13s_forward.1} parent=47 // pred_fallthru
          _
      $region48: #{layer13s_forward.1} parent=5 // pred_fallthru
        _
    $region6: #{layer13s_forward.1} parent=1 // loop_footer
      %s18 = sadd.s32 1, %s14
    $region7: #{layer13s_forward.1} parent=1 // loop_footer_branch
      %13 = sbr.rel target = $region3
    $region8: #{layer13s_forward.1} parent=1 // loop_exit
      _
    %2118 = vsyncpa [#allocation3], 1
    %s2119 = scalar_lea.sflag [#allocation3], 1
    %2120 = vsyncpa %s2119, 1

</llo_original>
